<compile_context>
chip_gen: v7x
topology: tpu7x:2x2x1
jax: 0.10.0
libtpu: 0.0.40
codegen_flags: <defaults>
</compile_context>

<pallas_src>
import jax
import jax.numpy as jnp
from jax.experimental import pallas as pl
from jax.experimental.pallas import tpu as pltpu

# ---------------------------------------------------------------------------
# Model configuration (small, consistent with the module's constructor args)
# ---------------------------------------------------------------------------
VOCAB = 20
EMBED = 16
HIDDEN_DIMS = [32, 32]          # one single-layer GRU per entry
OUTPUT_DIM = 16                 # bottleneck size
NUM_LAYERS = len(HIDDEN_DIMS)
SUM_H = sum(HIDDEN_DIMS)

# Padded TPU-friendly layout
BP = 8          # batch padded to a full sublane group
FP = 128        # every feature dim (E, 3*H, O, sum(H), vocab) -> one lane group

assert all(3 * h <= FP for h in HIDDEN_DIMS)
assert max(EMBED, OUTPUT_DIM, SUM_H, VOCAB) <= FP


# ---------------------------------------------------------------------------
# Fused encoder kernel
# ---------------------------------------------------------------------------
def make_encoder_kernel(num_layers, hidden_dims, seq_len, batch):
    T, B, Bp, Fp = seq_len, batch, BP, FP

    def kernel(*refs):
        it = iter(refs)
        ids_ref = next(it)                                   # (T, B) int32, SMEM
        tab_ref = next(it)                                   # (Fp, Fp) padded emb table
        noise_ref = next(it)                                 # (Bp, Fp)
        layers = [tuple(next(it) for _ in range(4))          # wih, whh, bih(+bhr,bhz), bhn
                  for _ in range(num_layers)]
        w1 = [next(it) for _ in range(num_layers)]           # Linear1 row blocks
        b1_ref = next(it)                                    # (1, Fp)
        w2_ref = next(it)                                    # (Fp, Fp)
        b2_ref = next(it)                                    # (1, Fp)
        seq_out_ref = next(it)                               # (T*Bp, Fp) output
        states_ref = next(it)                                # (Bp, Fp)   output
        dec_ref = next(it)                                   # (Bp, Fp)   output
        lay_scratch = next(it)                               # (T*Bp, Fp)
        gi_scratch = next(it)                                # (T*Bp, Fp)

        # ---- Embedding lookup inside the kernel ---------------------------
        # Token ids live in SMEM; build a one-hot matrix (in gi_scratch) with
        # iota/compare/select and materialise emb with one MXU matmul.
        lane_iota = jax.lax.broadcasted_iota(jnp.int32, (Bp, Fp), 1)
        row_iota = jax.lax.broadcasted_iota(jnp.int32, (Bp, Fp), 0)
        for t in range(T):
            oh = jnp.zeros((Bp, Fp), jnp.float32)
            for b in range(B):                               # padded rows stay 0
                tok = ids_ref[t, b]
                oh = jnp.where((row_iota == b) & (lane_iota == tok), 1.0, oh)
            gi_scratch[t * Bp:(t + 1) * Bp, :] = oh
        # emb (T*Bp, Fp): one-hot @ table; table row 0 (padding_idx) is zero.
        lay_scratch[...] = jnp.dot(gi_scratch[...], tab_ref[...],
                                   preferred_element_type=jnp.float32)

        # ---- Stacked single-layer GRUs (gates packed into one lane block) -
        def run_gru(src_ref, wih_ref, whh_ref, bih_ref, bhn_ref, dst_ref, H):
            # Hoisted input->hidden projection for the whole sequence:
            # one (T*Bp,Fp)@(Fp,Fp) MXU matmul; b_ih already has b_hr/b_hz folded.
            gi_scratch[...] = (
                jnp.dot(src_ref[...], wih_ref[...],
                        preferred_element_type=jnp.float32) + bih_ref[...])
            whh = whh_ref[...]     # (Fp,Fp) = 16 vregs, register-resident RHS
            bhn = bhn_ref[...]     # b_hn at lanes [2H,3H), zero elsewhere
            h = jnp.zeros((Bp, Fp), jnp.float32)
            # Serial recurrence, fully unrolled (T is small and static).
            # For T >> 32 switch to lax.fori_loop(unroll=2..4) to bound vregs.
            for t in range(T):
                lo = t * Bp
                gi = gi_scratch[lo:lo + Bp, :]               # [gi_r|gi_z|gi_n|0]
                gh = jnp.dot(h, whh,
                             preferred_element_type=jnp.float32)  # [gh_r|gh_z|gh_n|0]
                pre = gi + gh
                sig = jax.nn.sigmoid(pre)                    # r at [0,H), z at [H,2H)
                # align r onto the n block (XLU roll; out[i] = in[i-shift])
                r_at_n = pltpu.roll(sig, 2 * H, 1)           # r now at [2H,3H)
                n_all = jnp.tanh(gi + r_at_n * (gh + bhn))   # n at [2H,3H)
                z_h = pltpu.roll(sig, Fp - H, 1)             # z -> lanes [0,H)
                n_h = pltpu.roll(n_all, Fp - 2 * H, 1)       # n -> lanes [0,H)
                h = n_h + z_h * (h - n_h)                    # = (1-z)*n + z*h
                dst_ref[lo:lo + Bp, :] = h
            return h                                         # final hidden state

        finals = []
        src = lay_scratch
        for l in range(num_layers):
            wih_ref, whh_ref, bih_ref, bhn_ref = layers[l]
            dst = seq_out_ref if l == num_layers - 1 else lay_scratch
            finals.append(run_gru(src, wih_ref, whh_ref, bih_ref, bhn_ref,
                                  dst, hidden_dims[l]))
            src = dst

        # ---- Bottleneck: states = tanh(cat(finals)@W1 + b1 + noise) -------
        # (concat folded into a sum of per-layer block matmuls)
        s = b1_ref[...] + noise_ref[...]
        for l in range(num_layers):
            s = s + jnp.dot(finals[l], w1[l][...],
                            preferred_element_type=jnp.float32)
        s = jnp.tanh(s)
        states_ref[...] = s
        dec_ref[...] = (jnp.dot(s, w2_ref[...],
                                preferred_element_type=jnp.float32)
                        + b2_ref[...])

    return kernel


# ---------------------------------------------------------------------------
# Parameters (logical shapes) and packing into padded kernel operands
# ---------------------------------------------------------------------------
def init_params(key):
    ks = iter(jax.random.split(key, 4 * NUM_LAYERS + 8))

    def nrm(shape, scale=0.1):
        return scale * jax.random.normal(next(ks), shape, dtype=jnp.float32)

    emb = nrm((VOCAB, EMBED)).at[0].set(0.0)       # padding_idx = 0
    dims = [EMBED] + HIDDEN_DIMS
    layers = []
    for l, H in enumerate(HIDDEN_DIMS):
        layers.append(dict(
            wih=nrm((dims[l], 3 * H)),             # (in, 3H), gate order [r, z, n]
            whh=nrm((H, 3 * H)),
            bih=nrm((3 * H,)),
            bhh=nrm((3 * H,)),
        ))
    return dict(
        emb=emb, layers=layers,
        w1=nrm((SUM_H, OUTPUT_DIM)), b1=nrm((OUTPUT_DIM,)),
        w2=nrm((OUTPUT_DIM, SUM_H)), b2=nrm((SUM_H,)),
    )


def _pad(a, shape):
    out = jnp.zeros(shape, jnp.float32)
    return out.at[tuple(slice(0, s) for s in a.shape)].set(a)


def pack_params(p):
    """Pad to TPU layout: batch -> 8 sublanes, features -> 128 lanes.  The 3
    GRU gates of each layer are packed contiguously into ONE 128-lane block
    (3*H = 96 <= 128).  b_hr/b_hz are folded into b_ih; b_hn stays separate
    (it lives inside the r*(...) term).  Zero padding keeps the math exact."""
    ops = []
    for l, lp in enumerate(p["layers"]):
        H = HIDDEN_DIMS[l]
        bih_fold = lp["bih"].at[:2 * H].add(lp["bhh"][:2 * H])
        bhn = jnp.zeros((3 * H,), jnp.float32).at[2 * H:].set(lp["bhh"][2 * H:])
        ops += [_pad(lp["wih"], (FP, FP)),          # rows [0,in), cols [0,3H)
                _pad(lp["whh"], (FP, FP)),          # rows [0,H),  cols [0,3H)
                _pad(bih_fold[None, :], (1, FP)),
                _pad(bhn[None, :], (1, FP))]
    off = 0
    for H in HIDDEN_DIMS:                           # Linear1 split by layer rows
        ops.append(_pad(p["w1"][off:off + H, :], (FP, FP)))
        off += H
    ops.append(_pad(p["b1"][None, :], (1, FP)))
    ops.append(_pad(p["w2"], (FP, FP)))
    ops.append(_pad(p["b2"][None, :], (1, FP)))
    table = _pad(p["emb"], (FP, FP))                # row 0 (padding_idx) is zero
    return dict(table=table, ops=ops)


# ---------------------------------------------------------------------------
# Forward pass (matches Encoder.forward)
# ---------------------------------------------------------------------------
def encoder_forward(packed, x, noise=None):
    """x: (T, B) int32 token ids (seq-major, nn.GRU default layout).
    noise: optional (B, OUTPUT_DIM) gaussian noise (training); None = inference.
    Returns (embedding (T,B,H_last), states (B,O), states_to_dec (B,sum(H)))."""
    T, B = x.shape
    assert B <= BP          # up to 8 sequences per call are free (padded sublanes)
    # TODO(synk): dropout with p>0 not implemented (module default p=0 -> identity).

    noise_p = jnp.zeros((BP, FP), jnp.float32)
    if noise is not None:
        noise_p = noise_p.at[:B, :OUTPUT_DIM].set(noise)

    n_inputs = 3 + 4 * NUM_LAYERS + NUM_LAYERS + 3
    in_specs = ([pl.BlockSpec(memory_space=pltpu.MemorySpace.SMEM)] +        # ids
                [pl.BlockSpec(memory_space=pltpu.MemorySpace.VMEM)] * (n_inputs - 1))

    seq_p, states_p, dec_p = pl.pallas_call(
        make_encoder_kernel(NUM_LAYERS, HIDDEN_DIMS, T, B),
        out_shape=(
            jax.ShapeDtypeStruct((T * BP, FP), jnp.float32),   # last GRU outputs
            jax.ShapeDtypeStruct((BP, FP), jnp.float32),       # states
            jax.ShapeDtypeStruct((BP, FP), jnp.float32),       # states_to_dec
        ),
        in_specs=in_specs,
        scratch_shapes=[
            pltpu.VMEM((T * BP, FP), jnp.float32),   # inter-layer activations
            pltpu.VMEM((T * BP, FP), jnp.float32),   # one-hot ids / hoisted gate proj
        ],
    )(x.astype(jnp.int32), packed["table"], noise_p, *packed["ops"])

    embedding = seq_p.reshape(T, BP, FP)[:, :B, :HIDDEN_DIMS[-1]]
    states = states_p[:B, :OUTPUT_DIM]
    states_to_dec = dec_p[:B, :SUM_H]
    return embedding, states, states_to_dec


# ---------------------------------------------------------------------------
# Plain-JAX reference (direct port of the PyTorch module, training mode)
# ---------------------------------------------------------------------------
def encoder_reference(p, x, noise):
    T, B = x.shape
    hp = jnp.take(p["emb"], x, axis=0)                       # (T, B, E)
    finals = []
    for l, H in enumerate(HIDDEN_DIMS):
        lp = p["layers"][l]
        h = jnp.zeros((B, H), jnp.float32)
        outs = []
        for t in range(T):
            gi = hp[t] @ lp["wih"] + lp["bih"]
            gh = h @ lp["whh"] + lp["bhh"]
            r = jax.nn.sigmoid(gi[:, :H] + gh[:, :H])
            z = jax.nn.sigmoid(gi[:, H:2 * H] + gh[:, H:2 * H])
            n = jnp.tanh(gi[:, 2 * H:] + r * gh[:, 2 * H:])
            h = (1.0 - z) * n + z * h
            outs.append(h)
        hp = jnp.stack(outs, axis=0)
        finals.append(h)
    states = jnp.tanh(jnp.concatenate(finals, axis=1) @ p["w1"] + p["b1"] + noise)
    dec = states @ p["w2"] + p["b2"]
    return hp, states, dec


# ---------------------------------------------------------------------------
if __name__ == "__main__":
    key = jax.random.PRNGKey(0)
    kp, kx, kn = jax.random.split(key, 3)

    params = init_params(kp)
    packed = pack_params(params)

    T, B = 8, 2
    x = jax.random.randint(kx, (T, B), 0, VOCAB, dtype=jnp.int32)
    # Training-mode forward (inference=False): additive gaussian noise drawn
    # outside the kernel from a fixed key (torch.normal equivalent).
    noise = 0.05 * jax.random.normal(kn, (B, OUTPUT_DIM), dtype=jnp.float32)

    fwd = jax.jit(encoder_forward)
    embedding, states, states_to_dec = fwd(packed, x, noise)
    jax.block_until_ready((embedding, states, states_to_dec))

    assert embedding.shape == (T, B, HIDDEN_DIMS[-1])
    assert states.shape == (B, OUTPUT_DIM)
    assert states_to_dec.shape == (B, SUM_H)

    # Numerical cross-check against the plain-JAX port of the PyTorch module.
    with jax.default_matmul_precision("highest"):
        ref_emb, ref_states, ref_dec = encoder_reference(params, x, noise)
    err = max(float(jnp.max(jnp.abs(embedding - ref_emb))),
              float(jnp.max(jnp.abs(states - ref_states))),
              float(jnp.max(jnp.abs(states_to_dec - ref_dec))))
    assert err < 5e-3, f"kernel deviates from reference: max abs err = {err}"

    print("KERNEL_OK")
</pallas_src>

<mosaic_0001>
module attributes {stable_mosaic.version = 11 : i64} {
  func.func @kernel(%arg0: memref<8x2xi32, #tpu.memory_space<smem>>, %arg1: memref<128x128xf32, #tpu.memory_space<vmem>>, %arg2: memref<8x128xf32, #tpu.memory_space<vmem>>, %arg3: memref<128x128xf32, #tpu.memory_space<vmem>>, %arg4: memref<128x128xf32, #tpu.memory_space<vmem>>, %arg5: memref<1x128xf32, #tpu.memory_space<vmem>>, %arg6: memref<1x128xf32, #tpu.memory_space<vmem>>, %arg7: memref<128x128xf32, #tpu.memory_space<vmem>>, %arg8: memref<128x128xf32, #tpu.memory_space<vmem>>, %arg9: memref<1x128xf32, #tpu.memory_space<vmem>>, %arg10: memref<1x128xf32, #tpu.memory_space<vmem>>, %arg11: memref<128x128xf32, #tpu.memory_space<vmem>>, %arg12: memref<128x128xf32, #tpu.memory_space<vmem>>, %arg13: memref<1x128xf32, #tpu.memory_space<vmem>>, %arg14: memref<128x128xf32, #tpu.memory_space<vmem>>, %arg15: memref<1x128xf32, #tpu.memory_space<vmem>>, %arg16: memref<64x128xf32, #tpu.memory_space<vmem>>, %arg17: memref<8x128xf32, #tpu.memory_space<vmem>>, %arg18: memref<8x128xf32, #tpu.memory_space<vmem>>, %arg19: memref<64x128xf32, #tpu.memory_space<vmem>>, %arg20: memref<64x128xf32, #tpu.memory_space<vmem>>) attributes {dimension_semantics = [], scalar_prefetch = 0 : i64, scratch_operands = 2 : i64, tpu.core_type = #tpu.core_type<tc>} {
    %0 = tpu.iota {dimensions = array<i32: 1>} : vector<8x128xi32>
    %1 = tpu.iota {dimensions = array<i32: 0>} : vector<8x128xi32>
    %cst = arith.constant 0.000000e+00 : f32
    %2 = vector.broadcast %cst : f32 to vector<8x128xf32>
    %c0 = arith.constant 0 : index
    %c0_0 = arith.constant 0 : index
    %3 = memref.load %arg0[%c0, %c0_0] : memref<8x2xi32, #tpu.memory_space<smem>>
    %c0_i32 = arith.constant 0 : i32
    %4 = vector.broadcast %c0_i32 : i32 to vector<8x128xi32>
    %5 = arith.cmpi eq, %1, %4 : vector<8x128xi32>
    %6 = vector.broadcast %3 : i32 to vector<8x128xi32>
    %7 = arith.cmpi eq, %0, %6 : vector<8x128xi32>
    %8 = arith.andi %5, %7 : vector<8x128xi1>
    %cst_1 = arith.constant 1.000000e+00 : f32
    %9 = vector.broadcast %cst_1 : f32 to vector<8x128xf32>
    %10 = arith.select %8, %9, %2 : vector<8x128xi1>, vector<8x128xf32>
    %c0_2 = arith.constant 0 : index
    %c1 = arith.constant 1 : index
    %11 = memref.load %arg0[%c0_2, %c1] : memref<8x2xi32, #tpu.memory_space<smem>>
    %c1_i32 = arith.constant 1 : i32
    %12 = vector.broadcast %c1_i32 : i32 to vector<8x128xi32>
    %13 = arith.cmpi eq, %1, %12 : vector<8x128xi32>
    %14 = vector.broadcast %11 : i32 to vector<8x128xi32>
    %15 = arith.cmpi eq, %0, %14 : vector<8x128xi32>
    %16 = arith.andi %13, %15 : vector<8x128xi1>
    %cst_3 = arith.constant 1.000000e+00 : f32
    %17 = vector.broadcast %cst_3 : f32 to vector<8x128xf32>
    %18 = arith.select %16, %17, %10 : vector<8x128xi1>, vector<8x128xf32>
    %c0_4 = arith.constant 0 : index
    %c0_5 = arith.constant 0 : index
    %19 = vector.load %arg20[%c0_4, %c0_5] : memref<64x128xf32, #tpu.memory_space<vmem>>, vector<8x128xf32>
    tpu.vector_store %arg20[%c0_4, %c0_5], %18 {strides = array<i32>} : memref<64x128xf32, #tpu.memory_space<vmem>>, vector<8x128xf32>,
    %cst_6 = arith.constant 0.000000e+00 : f32
    %20 = vector.broadcast %cst_6 : f32 to vector<8x128xf32>
    %c1_7 = arith.constant 1 : index
    %c0_8 = arith.constant 0 : index
    %21 = memref.load %arg0[%c1_7, %c0_8] : memref<8x2xi32, #tpu.memory_space<smem>>
    %c0_i32_9 = arith.constant 0 : i32
    %22 = vector.broadcast %c0_i32_9 : i32 to vector<8x128xi32>
    %23 = arith.cmpi eq, %1, %22 : vector<8x128xi32>
    %24 = vector.broadcast %21 : i32 to vector<8x128xi32>
    %25 = arith.cmpi eq, %0, %24 : vector<8x128xi32>
    %26 = arith.andi %23, %25 : vector<8x128xi1>
    %cst_10 = arith.constant 1.000000e+00 : f32
    %27 = vector.broadcast %cst_10 : f32 to vector<8x128xf32>
    %28 = arith.select %26, %27, %20 : vector<8x128xi1>, vector<8x128xf32>
    %c1_11 = arith.constant 1 : index
    %c1_12 = arith.constant 1 : index
    %29 = memref.load %arg0[%c1_11, %c1_12] : memref<8x2xi32, #tpu.memory_space<smem>>
    %c1_i32_13 = arith.constant 1 : i32
    %30 = vector.broadcast %c1_i32_13 : i32 to vector<8x128xi32>
    %31 = arith.cmpi eq, %1, %30 : vector<8x128xi32>
    %32 = vector.broadcast %29 : i32 to vector<8x128xi32>
    %33 = arith.cmpi eq, %0, %32 : vector<8x128xi32>
    %34 = arith.andi %31, %33 : vector<8x128xi1>
    %cst_14 = arith.constant 1.000000e+00 : f32
    %35 = vector.broadcast %cst_14 : f32 to vector<8x128xf32>
    %36 = arith.select %34, %35, %28 : vector<8x128xi1>, vector<8x128xf32>
    %c8 = arith.constant 8 : index
    %c0_15 = arith.constant 0 : index
    %37 = vector.load %arg20[%c8, %c0_15] : memref<64x128xf32, #tpu.memory_space<vmem>>, vector<8x128xf32>
    tpu.vector_store %arg20[%c8, %c0_15], %36 {strides = array<i32>} : memref<64x128xf32, #tpu.memory_space<vmem>>, vector<8x128xf32>,
    %cst_16 = arith.constant 0.000000e+00 : f32
    %38 = vector.broadcast %cst_16 : f32 to vector<8x128xf32>
    %c2 = arith.constant 2 : index
    %c0_17 = arith.constant 0 : index
    %39 = memref.load %arg0[%c2, %c0_17] : memref<8x2xi32, #tpu.memory_space<smem>>
    %c0_i32_18 = arith.constant 0 : i32
    %40 = vector.broadcast %c0_i32_18 : i32 to vector<8x128xi32>
    %41 = arith.cmpi eq, %1, %40 : vector<8x128xi32>
    %42 = vector.broadcast %39 : i32 to vector<8x128xi32>
    %43 = arith.cmpi eq, %0, %42 : vector<8x128xi32>
    %44 = arith.andi %41, %43 : vector<8x128xi1>
    %cst_19 = arith.constant 1.000000e+00 : f32
    %45 = vector.broadcast %cst_19 : f32 to vector<8x128xf32>
    %46 = arith.select %44, %45, %38 : vector<8x128xi1>, vector<8x128xf32>
    %c2_20 = arith.constant 2 : index
    %c1_21 = arith.constant 1 : index
    %47 = memref.load %arg0[%c2_20, %c1_21] : memref<8x2xi32, #tpu.memory_space<smem>>
    %c1_i32_22 = arith.constant 1 : i32
    %48 = vector.broadcast %c1_i32_22 : i32 to vector<8x128xi32>
    %49 = arith.cmpi eq, %1, %48 : vector<8x128xi32>
    %50 = vector.broadcast %47 : i32 to vector<8x128xi32>
    %51 = arith.cmpi eq, %0, %50 : vector<8x128xi32>
    %52 = arith.andi %49, %51 : vector<8x128xi1>
    %cst_23 = arith.constant 1.000000e+00 : f32
    %53 = vector.broadcast %cst_23 : f32 to vector<8x128xf32>
    %54 = arith.select %52, %53, %46 : vector<8x128xi1>, vector<8x128xf32>
    %c16 = arith.constant 16 : index
    %c0_24 = arith.constant 0 : index
    %55 = vector.load %arg20[%c16, %c0_24] : memref<64x128xf32, #tpu.memory_space<vmem>>, vector<8x128xf32>
    tpu.vector_store %arg20[%c16, %c0_24], %54 {strides = array<i32>} : memref<64x128xf32, #tpu.memory_space<vmem>>, vector<8x128xf32>,
    %cst_25 = arith.constant 0.000000e+00 : f32
    %56 = vector.broadcast %cst_25 : f32 to vector<8x128xf32>
    %c3 = arith.constant 3 : index
    %c0_26 = arith.constant 0 : index
    %57 = memref.load %arg0[%c3, %c0_26] : memref<8x2xi32, #tpu.memory_space<smem>>
    %c0_i32_27 = arith.constant 0 : i32
    %58 = vector.broadcast %c0_i32_27 : i32 to vector<8x128xi32>
    %59 = arith.cmpi eq, %1, %58 : vector<8x128xi32>
    %60 = vector.broadcast %57 : i32 to vector<8x128xi32>
    %61 = arith.cmpi eq, %0, %60 : vector<8x128xi32>
    %62 = arith.andi %59, %61 : vector<8x128xi1>
    %cst_28 = arith.constant 1.000000e+00 : f32
    %63 = vector.broadcast %cst_28 : f32 to vector<8x128xf32>
    %64 = arith.select %62, %63, %56 : vector<8x128xi1>, vector<8x128xf32>
    %c3_29 = arith.constant 3 : index
    %c1_30 = arith.constant 1 : index
    %65 = memref.load %arg0[%c3_29, %c1_30] : memref<8x2xi32, #tpu.memory_space<smem>>
    %c1_i32_31 = arith.constant 1 : i32
    %66 = vector.broadcast %c1_i32_31 : i32 to vector<8x128xi32>
    %67 = arith.cmpi eq, %1, %66 : vector<8x128xi32>
    %68 = vector.broadcast %65 : i32 to vector<8x128xi32>
    %69 = arith.cmpi eq, %0, %68 : vector<8x128xi32>
    %70 = arith.andi %67, %69 : vector<8x128xi1>
    %cst_32 = arith.constant 1.000000e+00 : f32
    %71 = vector.broadcast %cst_32 : f32 to vector<8x128xf32>
    %72 = arith.select %70, %71, %64 : vector<8x128xi1>, vector<8x128xf32>
    %c24 = arith.constant 24 : index
    %c0_33 = arith.constant 0 : index
    %73 = vector.load %arg20[%c24, %c0_33] : memref<64x128xf32, #tpu.memory_space<vmem>>, vector<8x128xf32>
    tpu.vector_store %arg20[%c24, %c0_33], %72 {strides = array<i32>} : memref<64x128xf32, #tpu.memory_space<vmem>>, vector<8x128xf32>,
    %cst_34 = arith.constant 0.000000e+00 : f32
    %74 = vector.broadcast %cst_34 : f32 to vector<8x128xf32>
    %c4 = arith.constant 4 : index
    %c0_35 = arith.constant 0 : index
    %75 = memref.load %arg0[%c4, %c0_35] : memref<8x2xi32, #tpu.memory_space<smem>>
    %c0_i32_36 = arith.constant 0 : i32
    %76 = vector.broadcast %c0_i32_36 : i32 to vector<8x128xi32>
    %77 = arith.cmpi eq, %1, %76 : vector<8x128xi32>
    %78 = vector.broadcast %75 : i32 to vector<8x128xi32>
    %79 = arith.cmpi eq, %0, %78 : vector<8x128xi32>
    %80 = arith.andi %77, %79 : vector<8x128xi1>
    %cst_37 = arith.constant 1.000000e+00 : f32
    %81 = vector.broadcast %cst_37 : f32 to vector<8x128xf32>
    %82 = arith.select %80, %81, %74 : vector<8x128xi1>, vector<8x128xf32>
    %c4_38 = arith.constant 4 : index
    %c1_39 = arith.constant 1 : index
    %83 = memref.load %arg0[%c4_38, %c1_39] : memref<8x2xi32, #tpu.memory_space<smem>>
    %c1_i32_40 = arith.constant 1 : i32
    %84 = vector.broadcast %c1_i32_40 : i32 to vector<8x128xi32>
    %85 = arith.cmpi eq, %1, %84 : vector<8x128xi32>
    %86 = vector.broadcast %83 : i32 to vector<8x128xi32>
    %87 = arith.cmpi eq, %0, %86 : vector<8x128xi32>
    %88 = arith.andi %85, %87 : vector<8x128xi1>
    %cst_41 = arith.constant 1.000000e+00 : f32
    %89 = vector.broadcast %cst_41 : f32 to vector<8x128xf32>
    %90 = arith.select %88, %89, %82 : vector<8x128xi1>, vector<8x128xf32>
    %c32 = arith.constant 32 : index
    %c0_42 = arith.constant 0 : index
    %91 = vector.load %arg20[%c32, %c0_42] : memref<64x128xf32, #tpu.memory_space<vmem>>, vector<8x128xf32>
    tpu.vector_store %arg20[%c32, %c0_42], %90 {strides = array<i32>} : memref<64x128xf32, #tpu.memory_space<vmem>>, vector<8x128xf32>,
    %cst_43 = arith.constant 0.000000e+00 : f32
    %92 = vector.broadcast %cst_43 : f32 to vector<8x128xf32>
    %c5 = arith.constant 5 : index
    %c0_44 = arith.constant 0 : index
    %93 = memref.load %arg0[%c5, %c0_44] : memref<8x2xi32, #tpu.memory_space<smem>>
    %c0_i32_45 = arith.constant 0 : i32
    %94 = vector.broadcast %c0_i32_45 : i32 to vector<8x128xi32>
    %95 = arith.cmpi eq, %1, %94 : vector<8x128xi32>
    %96 = vector.broadcast %93 : i32 to vector<8x128xi32>
    %97 = arith.cmpi eq, %0, %96 : vector<8x128xi32>
    %98 = arith.andi %95, %97 : vector<8x128xi1>
    %cst_46 = arith.constant 1.000000e+00 : f32
    %99 = vector.broadcast %cst_46 : f32 to vector<8x128xf32>
    %100 = arith.select %98, %99, %92 : vector<8x128xi1>, vector<8x128xf32>
    %c5_47 = arith.constant 5 : index
    %c1_48 = arith.constant 1 : index
    %101 = memref.load %arg0[%c5_47, %c1_48] : memref<8x2xi32, #tpu.memory_space<smem>>
    %c1_i32_49 = arith.constant 1 : i32
    %102 = vector.broadcast %c1_i32_49 : i32 to vector<8x128xi32>
    %103 = arith.cmpi eq, %1, %102 : vector<8x128xi32>
    %104 = vector.broadcast %101 : i32 to vector<8x128xi32>
    %105 = arith.cmpi eq, %0, %104 : vector<8x128xi32>
    %106 = arith.andi %103, %105 : vector<8x128xi1>
    %cst_50 = arith.constant 1.000000e+00 : f32
    %107 = vector.broadcast %cst_50 : f32 to vector<8x128xf32>
    %108 = arith.select %106, %107, %100 : vector<8x128xi1>, vector<8x128xf32>
    %c40 = arith.constant 40 : index
    %c0_51 = arith.constant 0 : index
    %109 = vector.load %arg20[%c40, %c0_51] : memref<64x128xf32, #tpu.memory_space<vmem>>, vector<8x128xf32>
    tpu.vector_store %arg20[%c40, %c0_51], %108 {strides = array<i32>} : memref<64x128xf32, #tpu.memory_space<vmem>>, vector<8x128xf32>,
    %cst_52 = arith.constant 0.000000e+00 : f32
    %110 = vector.broadcast %cst_52 : f32 to vector<8x128xf32>
    %c6 = arith.constant 6 : index
    %c0_53 = arith.constant 0 : index
    %111 = memref.load %arg0[%c6, %c0_53] : memref<8x2xi32, #tpu.memory_space<smem>>
    %c0_i32_54 = arith.constant 0 : i32
    %112 = vector.broadcast %c0_i32_54 : i32 to vector<8x128xi32>
    %113 = arith.cmpi eq, %1, %112 : vector<8x128xi32>
    %114 = vector.broadcast %111 : i32 to vector<8x128xi32>
    %115 = arith.cmpi eq, %0, %114 : vector<8x128xi32>
    %116 = arith.andi %113, %115 : vector<8x128xi1>
    %cst_55 = arith.constant 1.000000e+00 : f32
    %117 = vector.broadcast %cst_55 : f32 to vector<8x128xf32>
    %118 = arith.select %116, %117, %110 : vector<8x128xi1>, vector<8x128xf32>
    %c6_56 = arith.constant 6 : index
    %c1_57 = arith.constant 1 : index
    %119 = memref.load %arg0[%c6_56, %c1_57] : memref<8x2xi32, #tpu.memory_space<smem>>
    %c1_i32_58 = arith.constant 1 : i32
    %120 = vector.broadcast %c1_i32_58 : i32 to vector<8x128xi32>
    %121 = arith.cmpi eq, %1, %120 : vector<8x128xi32>
    %122 = vector.broadcast %119 : i32 to vector<8x128xi32>
    %123 = arith.cmpi eq, %0, %122 : vector<8x128xi32>
    %124 = arith.andi %121, %123 : vector<8x128xi1>
    %cst_59 = arith.constant 1.000000e+00 : f32
    %125 = vector.broadcast %cst_59 : f32 to vector<8x128xf32>
    %126 = arith.select %124, %125, %118 : vector<8x128xi1>, vector<8x128xf32>
    %c48 = arith.constant 48 : index
    %c0_60 = arith.constant 0 : index
    %127 = vector.load %arg20[%c48, %c0_60] : memref<64x128xf32, #tpu.memory_space<vmem>>, vector<8x128xf32>
    tpu.vector_store %arg20[%c48, %c0_60], %126 {strides = array<i32>} : memref<64x128xf32, #tpu.memory_space<vmem>>, vector<8x128xf32>,
    %cst_61 = arith.constant 0.000000e+00 : f32
    %128 = vector.broadcast %cst_61 : f32 to vector<8x128xf32>
    %c7 = arith.constant 7 : index
    %c0_62 = arith.constant 0 : index
    %129 = memref.load %arg0[%c7, %c0_62] : memref<8x2xi32, #tpu.memory_space<smem>>
    %c0_i32_63 = arith.constant 0 : i32
    %130 = vector.broadcast %c0_i32_63 : i32 to vector<8x128xi32>
    %131 = arith.cmpi eq, %1, %130 : vector<8x128xi32>
    %132 = vector.broadcast %129 : i32 to vector<8x128xi32>
    %133 = arith.cmpi eq, %0, %132 : vector<8x128xi32>
    %134 = arith.andi %131, %133 : vector<8x128xi1>
    %cst_64 = arith.constant 1.000000e+00 : f32
    %135 = vector.broadcast %cst_64 : f32 to vector<8x128xf32>
    %136 = arith.select %134, %135, %128 : vector<8x128xi1>, vector<8x128xf32>
    %c7_65 = arith.constant 7 : index
    %c1_66 = arith.constant 1 : index
    %137 = memref.load %arg0[%c7_65, %c1_66] : memref<8x2xi32, #tpu.memory_space<smem>>
    %c1_i32_67 = arith.constant 1 : i32
    %138 = vector.broadcast %c1_i32_67 : i32 to vector<8x128xi32>
    %139 = arith.cmpi eq, %1, %138 : vector<8x128xi32>
    %140 = vector.broadcast %137 : i32 to vector<8x128xi32>
    %141 = arith.cmpi eq, %0, %140 : vector<8x128xi32>
    %142 = arith.andi %139, %141 : vector<8x128xi1>
    %cst_68 = arith.constant 1.000000e+00 : f32
    %143 = vector.broadcast %cst_68 : f32 to vector<8x128xf32>
    %144 = arith.select %142, %143, %136 : vector<8x128xi1>, vector<8x128xf32>
    %c56 = arith.constant 56 : index
    %c0_69 = arith.constant 0 : index
    %145 = vector.load %arg20[%c56, %c0_69] : memref<64x128xf32, #tpu.memory_space<vmem>>, vector<8x128xf32>
    tpu.vector_store %arg20[%c56, %c0_69], %144 {strides = array<i32>} : memref<64x128xf32, #tpu.memory_space<vmem>>, vector<8x128xf32>,
    %c0_70 = arith.constant 0 : index
    %c0_71 = arith.constant 0 : index
    %146 = vector.load %arg20[%c0_70, %c0_71] : memref<64x128xf32, #tpu.memory_space<vmem>>, vector<64x128xf32>
    %c0_72 = arith.constant 0 : index
    %c0_73 = arith.constant 0 : index
    %147 = vector.load %arg1[%c0_72, %c0_73] : memref<128x128xf32, #tpu.memory_space<vmem>>, vector<128x128xf32>
    %cst_74 = arith.constant dense<0.000000e+00> : vector<64x128xf32>
    %148 = tpu.matmul %146, %147, %cst_74 {dimension_numbers = #tpu.dot_dimension_numbers<[1], [0], [0], [1], [0, 0, 1, 1], [], []>} : vector<64x128xf32>, vector<128x128xf32>, vector<64x128xf32> -> vector<64x128xf32>
    %c0_75 = arith.constant 0 : index
    %c0_76 = arith.constant 0 : index
    %149 = vector.load %arg19[%c0_75, %c0_76] : memref<64x128xf32, #tpu.memory_space<vmem>>, vector<64x128xf32>
    tpu.vector_store %arg19[%c0_75, %c0_76], %148 {strides = array<i32>} : memref<64x128xf32, #tpu.memory_space<vmem>>, vector<64x128xf32>,
    %c0_77 = arith.constant 0 : index
    %c0_78 = arith.constant 0 : index
    %150 = vector.load %arg19[%c0_77, %c0_78] : memref<64x128xf32, #tpu.memory_space<vmem>>, vector<64x128xf32>
    %c0_79 = arith.constant 0 : index
    %c0_80 = arith.constant 0 : index
    %151 = vector.load %arg3[%c0_79, %c0_80] : memref<128x128xf32, #tpu.memory_space<vmem>>, vector<128x128xf32>
    %cst_81 = arith.constant dense<0.000000e+00> : vector<64x128xf32>
    %152 = tpu.matmul %150, %151, %cst_81 {dimension_numbers = #tpu.dot_dimension_numbers<[1], [0], [0], [1], [0, 0, 1, 1], [], []>} : vector<64x128xf32>, vector<128x128xf32>, vector<64x128xf32> -> vector<64x128xf32>
    %c0_82 = arith.constant 0 : index
    %c0_83 = arith.constant 0 : index
    %153 = vector.load %arg5[%c0_82, %c0_83] : memref<1x128xf32, #tpu.memory_space<vmem>>, vector<1x128xf32>
    %154 = vector.broadcast %153 : vector<1x128xf32> to vector<64x128xf32>
    %155 = arith.addf %152, %154 : vector<64x128xf32>
    %c0_84 = arith.constant 0 : index
    %c0_85 = arith.constant 0 : index
    %156 = vector.load %arg20[%c0_84, %c0_85] : memref<64x128xf32, #tpu.memory_space<vmem>>, vector<64x128xf32>
    tpu.vector_store %arg20[%c0_84, %c0_85], %155 {strides = array<i32>} : memref<64x128xf32, #tpu.memory_space<vmem>>, vector<64x128xf32>,
    %c0_86 = arith.constant 0 : index
    %c0_87 = arith.constant 0 : index
    %157 = vector.load %arg4[%c0_86, %c0_87] : memref<128x128xf32, #tpu.memory_space<vmem>>, vector<128x128xf32>
    %c0_88 = arith.constant 0 : index
    %c0_89 = arith.constant 0 : index
    %158 = vector.load %arg6[%c0_88, %c0_89] : memref<1x128xf32, #tpu.memory_space<vmem>>, vector<1x128xf32>
    %cst_90 = arith.constant 0.000000e+00 : f32
    %159 = vector.broadcast %cst_90 : f32 to vector<8x128xf32>
    %c0_91 = arith.constant 0 : index
    %c0_92 = arith.constant 0 : index
    %160 = vector.load %arg20[%c0_91, %c0_92] : memref<64x128xf32, #tpu.memory_space<vmem>>, vector<8x128xf32>
    %cst_93 = arith.constant dense<0.000000e+00> : vector<8x128xf32>
    %161 = tpu.matmul %159, %157, %cst_93 {dimension_numbers = #tpu.dot_dimension_numbers<[1], [0], [0], [1], [0, 0, 1, 1], [], []>} : vector<8x128xf32>, vector<128x128xf32>, vector<8x128xf32> -> vector<8x128xf32>
    %162 = arith.addf %160, %161 : vector<8x128xf32>
    %163 = arith.negf %162 : vector<8x128xf32>
    %164 = math.exp %163 : vector<8x128xf32>
    %cst_94 = arith.constant 1.000000e+00 : f32
    %165 = vector.broadcast %cst_94 : f32 to vector<8x128xf32>
    %166 = arith.addf %165, %164 : vector<8x128xf32>
    %167 = arith.divf %165, %166 : vector<8x128xf32>
    %c64_i32 = arith.constant 64 : i32
    %168 = tpu.dynamic_rotate %167 by %c64_i32 dim 1 : vector<8x128xf32>, i32 -> vector<8x128xf32>
    %169 = vector.broadcast %158 : vector<1x128xf32> to vector<8x128xf32>
    %170 = arith.addf %161, %169 : vector<8x128xf32>
    %171 = arith.mulf %168, %170 : vector<8x128xf32>
    %172 = arith.addf %160, %171 : vector<8x128xf32>
    %173 = math.tanh %172 : vector<8x128xf32>
    %c96_i32 = arith.constant 96 : i32
    %174 = tpu.dynamic_rotate %167 by %c96_i32 dim 1 : vector<8x128xf32>, i32 -> vector<8x128xf32>
    %c64_i32_95 = arith.constant 64 : i32
    %175 = tpu.dynamic_rotate %173 by %c64_i32_95 dim 1 : vector<8x128xf32>, i32 -> vector<8x128xf32>
    %176 = arith.subf %159, %175 : vector<8x128xf32>
    %177 = arith.mulf %174, %176 : vector<8x128xf32>
    %178 = arith.addf %175, %177 : vector<8x128xf32>
    %c0_96 = arith.constant 0 : index
    %c0_97 = arith.constant 0 : index
    %179 = vector.load %arg19[%c0_96, %c0_97] : memref<64x128xf32, #tpu.memory_space<vmem>>, vector<8x128xf32>
    tpu.vector_store %arg19[%c0_96, %c0_97], %178 {strides = array<i32>} : memref<64x128xf32, #tpu.memory_space<vmem>>, vector<8x128xf32>,
    %c8_98 = arith.constant 8 : index
    %c0_99 = arith.constant 0 : index
    %180 = vector.load %arg20[%c8_98, %c0_99] : memref<64x128xf32, #tpu.memory_space<vmem>>, vector<8x128xf32>
    %cst_100 = arith.constant dense<0.000000e+00> : vector<8x128xf32>
    %181 = tpu.matmul %178, %157, %cst_100 {dimension_numbers = #tpu.dot_dimension_numbers<[1], [0], [0], [1], [0, 0, 1, 1], [], []>} : vector<8x128xf32>, vector<128x128xf32>, vector<8x128xf32> -> vector<8x128xf32>
    %182 = arith.addf %180, %181 : vector<8x128xf32>
    %183 = arith.negf %182 : vector<8x128xf32>
    %184 = math.exp %183 : vector<8x128xf32>
    %cst_101 = arith.constant 1.000000e+00 : f32
    %185 = vector.broadcast %cst_101 : f32 to vector<8x128xf32>
    %186 = arith.addf %185, %184 : vector<8x128xf32>
    %187 = arith.divf %185, %186 : vector<8x128xf32>
    %c64_i32_102 = arith.constant 64 : i32
    %188 = tpu.dynamic_rotate %187 by %c64_i32_102 dim 1 : vector<8x128xf32>, i32 -> vector<8x128xf32>
    %189 = vector.broadcast %158 : vector<1x128xf32> to vector<8x128xf32>
    %190 = arith.addf %181, %189 : vector<8x128xf32>
    %191 = arith.mulf %188, %190 : vector<8x128xf32>
    %192 = arith.addf %180, %191 : vector<8x128xf32>
    %193 = math.tanh %192 : vector<8x128xf32>
    %c96_i32_103 = arith.constant 96 : i32
    %194 = tpu.dynamic_rotate %187 by %c96_i32_103 dim 1 : vector<8x128xf32>, i32 -> vector<8x128xf32>
    %c64_i32_104 = arith.constant 64 : i32
    %195 = tpu.dynamic_rotate %193 by %c64_i32_104 dim 1 : vector<8x128xf32>, i32 -> vector<8x128xf32>
    %196 = arith.subf %178, %195 : vector<8x128xf32>
    %197 = arith.mulf %194, %196 : vector<8x128xf32>
    %198 = arith.addf %195, %197 : vector<8x128xf32>
    %c8_105 = arith.constant 8 : index
    %c0_106 = arith.constant 0 : index
    %199 = vector.load %arg19[%c8_105, %c0_106] : memref<64x128xf32, #tpu.memory_space<vmem>>, vector<8x128xf32>
    tpu.vector_store %arg19[%c8_105, %c0_106], %198 {strides = array<i32>} : memref<64x128xf32, #tpu.memory_space<vmem>>, vector<8x128xf32>,
    %c16_107 = arith.constant 16 : index
    %c0_108 = arith.constant 0 : index
    %200 = vector.load %arg20[%c16_107, %c0_108] : memref<64x128xf32, #tpu.memory_space<vmem>>, vector<8x128xf32>
    %cst_109 = arith.constant dense<0.000000e+00> : vector<8x128xf32>
    %201 = tpu.matmul %198, %157, %cst_109 {dimension_numbers = #tpu.dot_dimension_numbers<[1], [0], [0], [1], [0, 0, 1, 1], [], []>} : vector<8x128xf32>, vector<128x128xf32>, vector<8x128xf32> -> vector<8x128xf32>
    %202 = arith.addf %200, %201 : vector<8x128xf32>
    %203 = arith.negf %202 : vector<8x128xf32>
    %204 = math.exp %203 : vector<8x128xf32>
    %cst_110 = arith.constant 1.000000e+00 : f32
    %205 = vector.broadcast %cst_110 : f32 to vector<8x128xf32>
    %206 = arith.addf %205, %204 : vector<8x128xf32>
    %207 = arith.divf %205, %206 : vector<8x128xf32>
    %c64_i32_111 = arith.constant 64 : i32
    %208 = tpu.dynamic_rotate %207 by %c64_i32_111 dim 1 : vector<8x128xf32>, i32 -> vector<8x128xf32>
    %209 = vector.broadcast %158 : vector<1x128xf32> to vector<8x128xf32>
    %210 = arith.addf %201, %209 : vector<8x128xf32>
    %211 = arith.mulf %208, %210 : vector<8x128xf32>
    %212 = arith.addf %200, %211 : vector<8x128xf32>
    %213 = math.tanh %212 : vector<8x128xf32>
    %c96_i32_112 = arith.constant 96 : i32
    %214 = tpu.dynamic_rotate %207 by %c96_i32_112 dim 1 : vector<8x128xf32>, i32 -> vector<8x128xf32>
    %c64_i32_113 = arith.constant 64 : i32
    %215 = tpu.dynamic_rotate %213 by %c64_i32_113 dim 1 : vector<8x128xf32>, i32 -> vector<8x128xf32>
    %216 = arith.subf %198, %215 : vector<8x128xf32>
    %217 = arith.mulf %214, %216 : vector<8x128xf32>
    %218 = arith.addf %215, %217 : vector<8x128xf32>
    %c16_114 = arith.constant 16 : index
    %c0_115 = arith.constant 0 : index
    %219 = vector.load %arg19[%c16_114, %c0_115] : memref<64x128xf32, #tpu.memory_space<vmem>>, vector<8x128xf32>
    tpu.vector_store %arg19[%c16_114, %c0_115], %218 {strides = array<i32>} : memref<64x128xf32, #tpu.memory_space<vmem>>, vector<8x128xf32>,
    %c24_116 = arith.constant 24 : index
    %c0_117 = arith.constant 0 : index
    %220 = vector.load %arg20[%c24_116, %c0_117] : memref<64x128xf32, #tpu.memory_space<vmem>>, vector<8x128xf32>
    %cst_118 = arith.constant dense<0.000000e+00> : vector<8x128xf32>
    %221 = tpu.matmul %218, %157, %cst_118 {dimension_numbers = #tpu.dot_dimension_numbers<[1], [0], [0], [1], [0, 0, 1, 1], [], []>} : vector<8x128xf32>, vector<128x128xf32>, vector<8x128xf32> -> vector<8x128xf32>
    %222 = arith.addf %220, %221 : vector<8x128xf32>
    %223 = arith.negf %222 : vector<8x128xf32>
    %224 = math.exp %223 : vector<8x128xf32>
    %cst_119 = arith.constant 1.000000e+00 : f32
    %225 = vector.broadcast %cst_119 : f32 to vector<8x128xf32>
    %226 = arith.addf %225, %224 : vector<8x128xf32>
    %227 = arith.divf %225, %226 : vector<8x128xf32>
    %c64_i32_120 = arith.constant 64 : i32
    %228 = tpu.dynamic_rotate %227 by %c64_i32_120 dim 1 : vector<8x128xf32>, i32 -> vector<8x128xf32>
    %229 = vector.broadcast %158 : vector<1x128xf32> to vector<8x128xf32>
    %230 = arith.addf %221, %229 : vector<8x128xf32>
    %231 = arith.mulf %228, %230 : vector<8x128xf32>
    %232 = arith.addf %220, %231 : vector<8x128xf32>
    %233 = math.tanh %232 : vector<8x128xf32>
    %c96_i32_121 = arith.constant 96 : i32
    %234 = tpu.dynamic_rotate %227 by %c96_i32_121 dim 1 : vector<8x128xf32>, i32 -> vector<8x128xf32>
    %c64_i32_122 = arith.constant 64 : i32
    %235 = tpu.dynamic_rotate %233 by %c64_i32_122 dim 1 : vector<8x128xf32>, i32 -> vector<8x128xf32>
    %236 = arith.subf %218, %235 : vector<8x128xf32>
    %237 = arith.mulf %234, %236 : vector<8x128xf32>
    %238 = arith.addf %235, %237 : vector<8x128xf32>
    %c24_123 = arith.constant 24 : index
    %c0_124 = arith.constant 0 : index
    %239 = vector.load %arg19[%c24_123, %c0_124] : memref<64x128xf32, #tpu.memory_space<vmem>>, vector<8x128xf32>
    tpu.vector_store %arg19[%c24_123, %c0_124], %238 {strides = array<i32>} : memref<64x128xf32, #tpu.memory_space<vmem>>, vector<8x128xf32>,
    %c32_125 = arith.constant 32 : index
    %c0_126 = arith.constant 0 : index
    %240 = vector.load %arg20[%c32_125, %c0_126] : memref<64x128xf32, #tpu.memory_space<vmem>>, vector<8x128xf32>
    %cst_127 = arith.constant dense<0.000000e+00> : vector<8x128xf32>
    %241 = tpu.matmul %238, %157, %cst_127 {dimension_numbers = #tpu.dot_dimension_numbers<[1], [0], [0], [1], [0, 0, 1, 1], [], []>} : vector<8x128xf32>, vector<128x128xf32>, vector<8x128xf32> -> vector<8x128xf32>
    %242 = arith.addf %240, %241 : vector<8x128xf32>
    %243 = arith.negf %242 : vector<8x128xf32>
    %244 = math.exp %243 : vector<8x128xf32>
    %cst_128 = arith.constant 1.000000e+00 : f32
    %245 = vector.broadcast %cst_128 : f32 to vector<8x128xf32>
    %246 = arith.addf %245, %244 : vector<8x128xf32>
    %247 = arith.divf %245, %246 : vector<8x128xf32>
    %c64_i32_129 = arith.constant 64 : i32
    %248 = tpu.dynamic_rotate %247 by %c64_i32_129 dim 1 : vector<8x128xf32>, i32 -> vector<8x128xf32>
    %249 = vector.broadcast %158 : vector<1x128xf32> to vector<8x128xf32>
    %250 = arith.addf %241, %249 : vector<8x128xf32>
    %251 = arith.mulf %248, %250 : vector<8x128xf32>
    %252 = arith.addf %240, %251 : vector<8x128xf32>
    %253 = math.tanh %252 : vector<8x128xf32>
    %c96_i32_130 = arith.constant 96 : i32
    %254 = tpu.dynamic_rotate %247 by %c96_i32_130 dim 1 : vector<8x128xf32>, i32 -> vector<8x128xf32>
    %c64_i32_131 = arith.constant 64 : i32
    %255 = tpu.dynamic_rotate %253 by %c64_i32_131 dim 1 : vector<8x128xf32>, i32 -> vector<8x128xf32>
    %256 = arith.subf %238, %255 : vector<8x128xf32>
    %257 = arith.mulf %254, %256 : vector<8x128xf32>
    %258 = arith.addf %255, %257 : vector<8x128xf32>
    %c32_132 = arith.constant 32 : index
    %c0_133 = arith.constant 0 : index
    %259 = vector.load %arg19[%c32_132, %c0_133] : memref<64x128xf32, #tpu.memory_space<vmem>>, vector<8x128xf32>
    tpu.vector_store %arg19[%c32_132, %c0_133], %258 {strides = array<i32>} : memref<64x128xf32, #tpu.memory_space<vmem>>, vector<8x128xf32>,
    %c40_134 = arith.constant 40 : index
    %c0_135 = arith.constant 0 : index
    %260 = vector.load %arg20[%c40_134, %c0_135] : memref<64x128xf32, #tpu.memory_space<vmem>>, vector<8x128xf32>
    %cst_136 = arith.constant dense<0.000000e+00> : vector<8x128xf32>
    %261 = tpu.matmul %258, %157, %cst_136 {dimension_numbers = #tpu.dot_dimension_numbers<[1], [0], [0], [1], [0, 0, 1, 1], [], []>} : vector<8x128xf32>, vector<128x128xf32>, vector<8x128xf32> -> vector<8x128xf32>
    %262 = arith.addf %260, %261 : vector<8x128xf32>
    %263 = arith.negf %262 : vector<8x128xf32>
    %264 = math.exp %263 : vector<8x128xf32>
    %cst_137 = arith.constant 1.000000e+00 : f32
    %265 = vector.broadcast %cst_137 : f32 to vector<8x128xf32>
    %266 = arith.addf %265, %264 : vector<8x128xf32>
    %267 = arith.divf %265, %266 : vector<8x128xf32>
    %c64_i32_138 = arith.constant 64 : i32
    %268 = tpu.dynamic_rotate %267 by %c64_i32_138 dim 1 : vector<8x128xf32>, i32 -> vector<8x128xf32>
    %269 = vector.broadcast %158 : vector<1x128xf32> to vector<8x128xf32>
    %270 = arith.addf %261, %269 : vector<8x128xf32>
    %271 = arith.mulf %268, %270 : vector<8x128xf32>
    %272 = arith.addf %260, %271 : vector<8x128xf32>
    %273 = math.tanh %272 : vector<8x128xf32>
    %c96_i32_139 = arith.constant 96 : i32
    %274 = tpu.dynamic_rotate %267 by %c96_i32_139 dim 1 : vector<8x128xf32>, i32 -> vector<8x128xf32>
    %c64_i32_140 = arith.constant 64 : i32
    %275 = tpu.dynamic_rotate %273 by %c64_i32_140 dim 1 : vector<8x128xf32>, i32 -> vector<8x128xf32>
    %276 = arith.subf %258, %275 : vector<8x128xf32>
    %277 = arith.mulf %274, %276 : vector<8x128xf32>
    %278 = arith.addf %275, %277 : vector<8x128xf32>
    %c40_141 = arith.constant 40 : index
    %c0_142 = arith.constant 0 : index
    %279 = vector.load %arg19[%c40_141, %c0_142] : memref<64x128xf32, #tpu.memory_space<vmem>>, vector<8x128xf32>
    tpu.vector_store %arg19[%c40_141, %c0_142], %278 {strides = array<i32>} : memref<64x128xf32, #tpu.memory_space<vmem>>, vector<8x128xf32>,
    %c48_143 = arith.constant 48 : index
    %c0_144 = arith.constant 0 : index
    %280 = vector.load %arg20[%c48_143, %c0_144] : memref<64x128xf32, #tpu.memory_space<vmem>>, vector<8x128xf32>
    %cst_145 = arith.constant dense<0.000000e+00> : vector<8x128xf32>
    %281 = tpu.matmul %278, %157, %cst_145 {dimension_numbers = #tpu.dot_dimension_numbers<[1], [0], [0], [1], [0, 0, 1, 1], [], []>} : vector<8x128xf32>, vector<128x128xf32>, vector<8x128xf32> -> vector<8x128xf32>
    %282 = arith.addf %280, %281 : vector<8x128xf32>
    %283 = arith.negf %282 : vector<8x128xf32>
    %284 = math.exp %283 : vector<8x128xf32>
    %cst_146 = arith.constant 1.000000e+00 : f32
    %285 = vector.broadcast %cst_146 : f32 to vector<8x128xf32>
    %286 = arith.addf %285, %284 : vector<8x128xf32>
    %287 = arith.divf %285, %286 : vector<8x128xf32>
    %c64_i32_147 = arith.constant 64 : i32
    %288 = tpu.dynamic_rotate %287 by %c64_i32_147 dim 1 : vector<8x128xf32>, i32 -> vector<8x128xf32>
    %289 = vector.broadcast %158 : vector<1x128xf32> to vector<8x128xf32>
    %290 = arith.addf %281, %289 : vector<8x128xf32>
    %291 = arith.mulf %288, %290 : vector<8x128xf32>
    %292 = arith.addf %280, %291 : vector<8x128xf32>
    %293 = math.tanh %292 : vector<8x128xf32>
    %c96_i32_148 = arith.constant 96 : i32
    %294 = tpu.dynamic_rotate %287 by %c96_i32_148 dim 1 : vector<8x128xf32>, i32 -> vector<8x128xf32>
    %c64_i32_149 = arith.constant 64 : i32
    %295 = tpu.dynamic_rotate %293 by %c64_i32_149 dim 1 : vector<8x128xf32>, i32 -> vector<8x128xf32>
    %296 = arith.subf %278, %295 : vector<8x128xf32>
    %297 = arith.mulf %294, %296 : vector<8x128xf32>
    %298 = arith.addf %295, %297 : vector<8x128xf32>
    %c48_150 = arith.constant 48 : index
    %c0_151 = arith.constant 0 : index
    %299 = vector.load %arg19[%c48_150, %c0_151] : memref<64x128xf32, #tpu.memory_space<vmem>>, vector<8x128xf32>
    tpu.vector_store %arg19[%c48_150, %c0_151], %298 {strides = array<i32>} : memref<64x128xf32, #tpu.memory_space<vmem>>, vector<8x128xf32>,
    %c56_152 = arith.constant 56 : index
    %c0_153 = arith.constant 0 : index
    %300 = vector.load %arg20[%c56_152, %c0_153] : memref<64x128xf32, #tpu.memory_space<vmem>>, vector<8x128xf32>
    %cst_154 = arith.constant dense<0.000000e+00> : vector<8x128xf32>
    %301 = tpu.matmul %298, %157, %cst_154 {dimension_numbers = #tpu.dot_dimension_numbers<[1], [0], [0], [1], [0, 0, 1, 1], [], []>} : vector<8x128xf32>, vector<128x128xf32>, vector<8x128xf32> -> vector<8x128xf32>
    %302 = arith.addf %300, %301 : vector<8x128xf32>
    %303 = arith.negf %302 : vector<8x128xf32>
    %304 = math.exp %303 : vector<8x128xf32>
    %cst_155 = arith.constant 1.000000e+00 : f32
    %305 = vector.broadcast %cst_155 : f32 to vector<8x128xf32>
    %306 = arith.addf %305, %304 : vector<8x128xf32>
    %307 = arith.divf %305, %306 : vector<8x128xf32>
    %c64_i32_156 = arith.constant 64 : i32
    %308 = tpu.dynamic_rotate %307 by %c64_i32_156 dim 1 : vector<8x128xf32>, i32 -> vector<8x128xf32>
    %309 = vector.broadcast %158 : vector<1x128xf32> to vector<8x128xf32>
    %310 = arith.addf %301, %309 : vector<8x128xf32>
    %311 = arith.mulf %308, %310 : vector<8x128xf32>
    %312 = arith.addf %300, %311 : vector<8x128xf32>
    %313 = math.tanh %312 : vector<8x128xf32>
    %c96_i32_157 = arith.constant 96 : i32
    %314 = tpu.dynamic_rotate %307 by %c96_i32_157 dim 1 : vector<8x128xf32>, i32 -> vector<8x128xf32>
    %c64_i32_158 = arith.constant 64 : i32
    %315 = tpu.dynamic_rotate %313 by %c64_i32_158 dim 1 : vector<8x128xf32>, i32 -> vector<8x128xf32>
    %316 = arith.subf %298, %315 : vector<8x128xf32>
    %317 = arith.mulf %314, %316 : vector<8x128xf32>
    %318 = arith.addf %315, %317 : vector<8x128xf32>
    %c56_159 = arith.constant 56 : index
    %c0_160 = arith.constant 0 : index
    %319 = vector.load %arg19[%c56_159, %c0_160] : memref<64x128xf32, #tpu.memory_space<vmem>>, vector<8x128xf32>
    tpu.vector_store %arg19[%c56_159, %c0_160], %318 {strides = array<i32>} : memref<64x128xf32, #tpu.memory_space<vmem>>, vector<8x128xf32>,
    %c0_161 = arith.constant 0 : index
    %c0_162 = arith.constant 0 : index
    %320 = vector.load %arg19[%c0_161, %c0_162] : memref<64x128xf32, #tpu.memory_space<vmem>>, vector<64x128xf32>
    %c0_163 = arith.constant 0 : index
    %c0_164 = arith.constant 0 : index
    %321 = vector.load %arg7[%c0_163, %c0_164] : memref<128x128xf32, #tpu.memory_space<vmem>>, vector<128x128xf32>
    %cst_165 = arith.constant dense<0.000000e+00> : vector<64x128xf32>
    %322 = tpu.matmul %320, %321, %cst_165 {dimension_numbers = #tpu.dot_dimension_numbers<[1], [0], [0], [1], [0, 0, 1, 1], [], []>} : vector<64x128xf32>, vector<128x128xf32>, vector<64x128xf32> -> vector<64x128xf32>
    %c0_166 = arith.constant 0 : index
    %c0_167 = arith.constant 0 : index
    %323 = vector.load %arg9[%c0_166, %c0_167] : memref<1x128xf32, #tpu.memory_space<vmem>>, vector<1x128xf32>
    %324 = vector.broadcast %323 : vector<1x128xf32> to vector<64x128xf32>
    %325 = arith.addf %322, %324 : vector<64x128xf32>
    %c0_168 = arith.constant 0 : index
    %c0_169 = arith.constant 0 : index
    %326 = vector.load %arg20[%c0_168, %c0_169] : memref<64x128xf32, #tpu.memory_space<vmem>>, vector<64x128xf32>
    tpu.vector_store %arg20[%c0_168, %c0_169], %325 {strides = array<i32>} : memref<64x128xf32, #tpu.memory_space<vmem>>, vector<64x128xf32>,
    %c0_170 = arith.constant 0 : index
    %c0_171 = arith.constant 0 : index
    %327 = vector.load %arg8[%c0_170, %c0_171] : memref<128x128xf32, #tpu.memory_space<vmem>>, vector<128x128xf32>
    %c0_172 = arith.constant 0 : index
    %c0_173 = arith.constant 0 : index
    %328 = vector.load %arg10[%c0_172, %c0_173] : memref<1x128xf32, #tpu.memory_space<vmem>>, vector<1x128xf32>
    %cst_174 = arith.constant 0.000000e+00 : f32
    %329 = vector.broadcast %cst_174 : f32 to vector<8x128xf32>
    %c0_175 = arith.constant 0 : index
    %c0_176 = arith.constant 0 : index
    %330 = vector.load %arg20[%c0_175, %c0_176] : memref<64x128xf32, #tpu.memory_space<vmem>>, vector<8x128xf32>
    %cst_177 = arith.constant dense<0.000000e+00> : vector<8x128xf32>
    %331 = tpu.matmul %329, %327, %cst_177 {dimension_numbers = #tpu.dot_dimension_numbers<[1], [0], [0], [1], [0, 0, 1, 1], [], []>} : vector<8x128xf32>, vector<128x128xf32>, vector<8x128xf32> -> vector<8x128xf32>
    %332 = arith.addf %330, %331 : vector<8x128xf32>
    %333 = arith.negf %332 : vector<8x128xf32>
    %334 = math.exp %333 : vector<8x128xf32>
    %cst_178 = arith.constant 1.000000e+00 : f32
    %335 = vector.broadcast %cst_178 : f32 to vector<8x128xf32>
    %336 = arith.addf %335, %334 : vector<8x128xf32>
    %337 = arith.divf %335, %336 : vector<8x128xf32>
    %c64_i32_179 = arith.constant 64 : i32
    %338 = tpu.dynamic_rotate %337 by %c64_i32_179 dim 1 : vector<8x128xf32>, i32 -> vector<8x128xf32>
    %339 = vector.broadcast %328 : vector<1x128xf32> to vector<8x128xf32>
    %340 = arith.addf %331, %339 : vector<8x128xf32>
    %341 = arith.mulf %338, %340 : vector<8x128xf32>
    %342 = arith.addf %330, %341 : vector<8x128xf32>
    %343 = math.tanh %342 : vector<8x128xf32>
    %c96_i32_180 = arith.constant 96 : i32
    %344 = tpu.dynamic_rotate %337 by %c96_i32_180 dim 1 : vector<8x128xf32>, i32 -> vector<8x128xf32>
    %c64_i32_181 = arith.constant 64 : i32
    %345 = tpu.dynamic_rotate %343 by %c64_i32_181 dim 1 : vector<8x128xf32>, i32 -> vector<8x128xf32>
    %346 = arith.subf %329, %345 : vector<8x128xf32>
    %347 = arith.mulf %344, %346 : vector<8x128xf32>
    %348 = arith.addf %345, %347 : vector<8x128xf32>
    %c0_182 = arith.constant 0 : index
    %c0_183 = arith.constant 0 : index
    %349 = vector.load %arg16[%c0_182, %c0_183] : memref<64x128xf32, #tpu.memory_space<vmem>>, vector<8x128xf32>
    tpu.vector_store %arg16[%c0_182, %c0_183], %348 {strides = array<i32>} : memref<64x128xf32, #tpu.memory_space<vmem>>, vector<8x128xf32>,
    %c8_184 = arith.constant 8 : index
    %c0_185 = arith.constant 0 : index
    %350 = vector.load %arg20[%c8_184, %c0_185] : memref<64x128xf32, #tpu.memory_space<vmem>>, vector<8x128xf32>
    %cst_186 = arith.constant dense<0.000000e+00> : vector<8x128xf32>
    %351 = tpu.matmul %348, %327, %cst_186 {dimension_numbers = #tpu.dot_dimension_numbers<[1], [0], [0], [1], [0, 0, 1, 1], [], []>} : vector<8x128xf32>, vector<128x128xf32>, vector<8x128xf32> -> vector<8x128xf32>
    %352 = arith.addf %350, %351 : vector<8x128xf32>
    %353 = arith.negf %352 : vector<8x128xf32>
    %354 = math.exp %353 : vector<8x128xf32>
    %cst_187 = arith.constant 1.000000e+00 : f32
    %355 = vector.broadcast %cst_187 : f32 to vector<8x128xf32>
    %356 = arith.addf %355, %354 : vector<8x128xf32>
    %357 = arith.divf %355, %356 : vector<8x128xf32>
    %c64_i32_188 = arith.constant 64 : i32
    %358 = tpu.dynamic_rotate %357 by %c64_i32_188 dim 1 : vector<8x128xf32>, i32 -> vector<8x128xf32>
    %359 = vector.broadcast %328 : vector<1x128xf32> to vector<8x128xf32>
    %360 = arith.addf %351, %359 : vector<8x128xf32>
    %361 = arith.mulf %358, %360 : vector<8x128xf32>
    %362 = arith.addf %350, %361 : vector<8x128xf32>
    %363 = math.tanh %362 : vector<8x128xf32>
    %c96_i32_189 = arith.constant 96 : i32
    %364 = tpu.dynamic_rotate %357 by %c96_i32_189 dim 1 : vector<8x128xf32>, i32 -> vector<8x128xf32>
    %c64_i32_190 = arith.constant 64 : i32
    %365 = tpu.dynamic_rotate %363 by %c64_i32_190 dim 1 : vector<8x128xf32>, i32 -> vector<8x128xf32>
    %366 = arith.subf %348, %365 : vector<8x128xf32>
    %367 = arith.mulf %364, %366 : vector<8x128xf32>
    %368 = arith.addf %365, %367 : vector<8x128xf32>
    %c8_191 = arith.constant 8 : index
    %c0_192 = arith.constant 0 : index
    %369 = vector.load %arg16[%c8_191, %c0_192] : memref<64x128xf32, #tpu.memory_space<vmem>>, vector<8x128xf32>
    tpu.vector_store %arg16[%c8_191, %c0_192], %368 {strides = array<i32>} : memref<64x128xf32, #tpu.memory_space<vmem>>, vector<8x128xf32>,
    %c16_193 = arith.constant 16 : index
    %c0_194 = arith.constant 0 : index
    %370 = vector.load %arg20[%c16_193, %c0_194] : memref<64x128xf32, #tpu.memory_space<vmem>>, vector<8x128xf32>
    %cst_195 = arith.constant dense<0.000000e+00> : vector<8x128xf32>
    %371 = tpu.matmul %368, %327, %cst_195 {dimension_numbers = #tpu.dot_dimension_numbers<[1], [0], [0], [1], [0, 0, 1, 1], [], []>} : vector<8x128xf32>, vector<128x128xf32>, vector<8x128xf32> -> vector<8x128xf32>
    %372 = arith.addf %370, %371 : vector<8x128xf32>
    %373 = arith.negf %372 : vector<8x128xf32>
    %374 = math.exp %373 : vector<8x128xf32>
    %cst_196 = arith.constant 1.000000e+00 : f32
    %375 = vector.broadcast %cst_196 : f32 to vector<8x128xf32>
    %376 = arith.addf %375, %374 : vector<8x128xf32>
    %377 = arith.divf %375, %376 : vector<8x128xf32>
    %c64_i32_197 = arith.constant 64 : i32
    %378 = tpu.dynamic_rotate %377 by %c64_i32_197 dim 1 : vector<8x128xf32>, i32 -> vector<8x128xf32>
    %379 = vector.broadcast %328 : vector<1x128xf32> to vector<8x128xf32>
    %380 = arith.addf %371, %379 : vector<8x128xf32>
    %381 = arith.mulf %378, %380 : vector<8x128xf32>
    %382 = arith.addf %370, %381 : vector<8x128xf32>
    %383 = math.tanh %382 : vector<8x128xf32>
    %c96_i32_198 = arith.constant 96 : i32
    %384 = tpu.dynamic_rotate %377 by %c96_i32_198 dim 1 : vector<8x128xf32>, i32 -> vector<8x128xf32>
    %c64_i32_199 = arith.constant 64 : i32
    %385 = tpu.dynamic_rotate %383 by %c64_i32_199 dim 1 : vector<8x128xf32>, i32 -> vector<8x128xf32>
    %386 = arith.subf %368, %385 : vector<8x128xf32>
    %387 = arith.mulf %384, %386 : vector<8x128xf32>
    %388 = arith.addf %385, %387 : vector<8x128xf32>
    %c16_200 = arith.constant 16 : index
    %c0_201 = arith.constant 0 : index
    %389 = vector.load %arg16[%c16_200, %c0_201] : memref<64x128xf32, #tpu.memory_space<vmem>>, vector<8x128xf32>
    tpu.vector_store %arg16[%c16_200, %c0_201], %388 {strides = array<i32>} : memref<64x128xf32, #tpu.memory_space<vmem>>, vector<8x128xf32>,
    %c24_202 = arith.constant 24 : index
    %c0_203 = arith.constant 0 : index
    %390 = vector.load %arg20[%c24_202, %c0_203] : memref<64x128xf32, #tpu.memory_space<vmem>>, vector<8x128xf32>
    %cst_204 = arith.constant dense<0.000000e+00> : vector<8x128xf32>
    %391 = tpu.matmul %388, %327, %cst_204 {dimension_numbers = #tpu.dot_dimension_numbers<[1], [0], [0], [1], [0, 0, 1, 1], [], []>} : vector<8x128xf32>, vector<128x128xf32>, vector<8x128xf32> -> vector<8x128xf32>
    %392 = arith.addf %390, %391 : vector<8x128xf32>
    %393 = arith.negf %392 : vector<8x128xf32>
    %394 = math.exp %393 : vector<8x128xf32>
    %cst_205 = arith.constant 1.000000e+00 : f32
    %395 = vector.broadcast %cst_205 : f32 to vector<8x128xf32>
    %396 = arith.addf %395, %394 : vector<8x128xf32>
    %397 = arith.divf %395, %396 : vector<8x128xf32>
    %c64_i32_206 = arith.constant 64 : i32
    %398 = tpu.dynamic_rotate %397 by %c64_i32_206 dim 1 : vector<8x128xf32>, i32 -> vector<8x128xf32>
    %399 = vector.broadcast %328 : vector<1x128xf32> to vector<8x128xf32>
    %400 = arith.addf %391, %399 : vector<8x128xf32>
    %401 = arith.mulf %398, %400 : vector<8x128xf32>
    %402 = arith.addf %390, %401 : vector<8x128xf32>
    %403 = math.tanh %402 : vector<8x128xf32>
    %c96_i32_207 = arith.constant 96 : i32
    %404 = tpu.dynamic_rotate %397 by %c96_i32_207 dim 1 : vector<8x128xf32>, i32 -> vector<8x128xf32>
    %c64_i32_208 = arith.constant 64 : i32
    %405 = tpu.dynamic_rotate %403 by %c64_i32_208 dim 1 : vector<8x128xf32>, i32 -> vector<8x128xf32>
    %406 = arith.subf %388, %405 : vector<8x128xf32>
    %407 = arith.mulf %404, %406 : vector<8x128xf32>
    %408 = arith.addf %405, %407 : vector<8x128xf32>
    %c24_209 = arith.constant 24 : index
    %c0_210 = arith.constant 0 : index
    %409 = vector.load %arg16[%c24_209, %c0_210] : memref<64x128xf32, #tpu.memory_space<vmem>>, vector<8x128xf32>
    tpu.vector_store %arg16[%c24_209, %c0_210], %408 {strides = array<i32>} : memref<64x128xf32, #tpu.memory_space<vmem>>, vector<8x128xf32>,
    %c32_211 = arith.constant 32 : index
    %c0_212 = arith.constant 0 : index
    %410 = vector.load %arg20[%c32_211, %c0_212] : memref<64x128xf32, #tpu.memory_space<vmem>>, vector<8x128xf32>
    %cst_213 = arith.constant dense<0.000000e+00> : vector<8x128xf32>
    %411 = tpu.matmul %408, %327, %cst_213 {dimension_numbers = #tpu.dot_dimension_numbers<[1], [0], [0], [1], [0, 0, 1, 1], [], []>} : vector<8x128xf32>, vector<128x128xf32>, vector<8x128xf32> -> vector<8x128xf32>
    %412 = arith.addf %410, %411 : vector<8x128xf32>
    %413 = arith.negf %412 : vector<8x128xf32>
    %414 = math.exp %413 : vector<8x128xf32>
    %cst_214 = arith.constant 1.000000e+00 : f32
    %415 = vector.broadcast %cst_214 : f32 to vector<8x128xf32>
    %416 = arith.addf %415, %414 : vector<8x128xf32>
    %417 = arith.divf %415, %416 : vector<8x128xf32>
    %c64_i32_215 = arith.constant 64 : i32
    %418 = tpu.dynamic_rotate %417 by %c64_i32_215 dim 1 : vector<8x128xf32>, i32 -> vector<8x128xf32>
    %419 = vector.broadcast %328 : vector<1x128xf32> to vector<8x128xf32>
    %420 = arith.addf %411, %419 : vector<8x128xf32>
    %421 = arith.mulf %418, %420 : vector<8x128xf32>
    %422 = arith.addf %410, %421 : vector<8x128xf32>
    %423 = math.tanh %422 : vector<8x128xf32>
    %c96_i32_216 = arith.constant 96 : i32
    %424 = tpu.dynamic_rotate %417 by %c96_i32_216 dim 1 : vector<8x128xf32>, i32 -> vector<8x128xf32>
    %c64_i32_217 = arith.constant 64 : i32
    %425 = tpu.dynamic_rotate %423 by %c64_i32_217 dim 1 : vector<8x128xf32>, i32 -> vector<8x128xf32>
    %426 = arith.subf %408, %425 : vector<8x128xf32>
    %427 = arith.mulf %424, %426 : vector<8x128xf32>
    %428 = arith.addf %425, %427 : vector<8x128xf32>
    %c32_218 = arith.constant 32 : index
    %c0_219 = arith.constant 0 : index
    %429 = vector.load %arg16[%c32_218, %c0_219] : memref<64x128xf32, #tpu.memory_space<vmem>>, vector<8x128xf32>
    tpu.vector_store %arg16[%c32_218, %c0_219], %428 {strides = array<i32>} : memref<64x128xf32, #tpu.memory_space<vmem>>, vector<8x128xf32>,
    %c40_220 = arith.constant 40 : index
    %c0_221 = arith.constant 0 : index
    %430 = vector.load %arg20[%c40_220, %c0_221] : memref<64x128xf32, #tpu.memory_space<vmem>>, vector<8x128xf32>
    %cst_222 = arith.constant dense<0.000000e+00> : vector<8x128xf32>
    %431 = tpu.matmul %428, %327, %cst_222 {dimension_numbers = #tpu.dot_dimension_numbers<[1], [0], [0], [1], [0, 0, 1, 1], [], []>} : vector<8x128xf32>, vector<128x128xf32>, vector<8x128xf32> -> vector<8x128xf32>
    %432 = arith.addf %430, %431 : vector<8x128xf32>
    %433 = arith.negf %432 : vector<8x128xf32>
    %434 = math.exp %433 : vector<8x128xf32>
    %cst_223 = arith.constant 1.000000e+00 : f32
    %435 = vector.broadcast %cst_223 : f32 to vector<8x128xf32>
    %436 = arith.addf %435, %434 : vector<8x128xf32>
    %437 = arith.divf %435, %436 : vector<8x128xf32>
    %c64_i32_224 = arith.constant 64 : i32
    %438 = tpu.dynamic_rotate %437 by %c64_i32_224 dim 1 : vector<8x128xf32>, i32 -> vector<8x128xf32>
    %439 = vector.broadcast %328 : vector<1x128xf32> to vector<8x128xf32>
    %440 = arith.addf %431, %439 : vector<8x128xf32>
    %441 = arith.mulf %438, %440 : vector<8x128xf32>
    %442 = arith.addf %430, %441 : vector<8x128xf32>
    %443 = math.tanh %442 : vector<8x128xf32>
    %c96_i32_225 = arith.constant 96 : i32
    %444 = tpu.dynamic_rotate %437 by %c96_i32_225 dim 1 : vector<8x128xf32>, i32 -> vector<8x128xf32>
    %c64_i32_226 = arith.constant 64 : i32
    %445 = tpu.dynamic_rotate %443 by %c64_i32_226 dim 1 : vector<8x128xf32>, i32 -> vector<8x128xf32>
    %446 = arith.subf %428, %445 : vector<8x128xf32>
    %447 = arith.mulf %444, %446 : vector<8x128xf32>
    %448 = arith.addf %445, %447 : vector<8x128xf32>
    %c40_227 = arith.constant 40 : index
    %c0_228 = arith.constant 0 : index
    %449 = vector.load %arg16[%c40_227, %c0_228] : memref<64x128xf32, #tpu.memory_space<vmem>>, vector<8x128xf32>
    tpu.vector_store %arg16[%c40_227, %c0_228], %448 {strides = array<i32>} : memref<64x128xf32, #tpu.memory_space<vmem>>, vector<8x128xf32>,
    %c48_229 = arith.constant 48 : index
    %c0_230 = arith.constant 0 : index
    %450 = vector.load %arg20[%c48_229, %c0_230] : memref<64x128xf32, #tpu.memory_space<vmem>>, vector<8x128xf32>
    %cst_231 = arith.constant dense<0.000000e+00> : vector<8x128xf32>
    %451 = tpu.matmul %448, %327, %cst_231 {dimension_numbers = #tpu.dot_dimension_numbers<[1], [0], [0], [1], [0, 0, 1, 1], [], []>} : vector<8x128xf32>, vector<128x128xf32>, vector<8x128xf32> -> vector<8x128xf32>
    %452 = arith.addf %450, %451 : vector<8x128xf32>
    %453 = arith.negf %452 : vector<8x128xf32>
    %454 = math.exp %453 : vector<8x128xf32>
    %cst_232 = arith.constant 1.000000e+00 : f32
    %455 = vector.broadcast %cst_232 : f32 to vector<8x128xf32>
    %456 = arith.addf %455, %454 : vector<8x128xf32>
    %457 = arith.divf %455, %456 : vector<8x128xf32>
    %c64_i32_233 = arith.constant 64 : i32
    %458 = tpu.dynamic_rotate %457 by %c64_i32_233 dim 1 : vector<8x128xf32>, i32 -> vector<8x128xf32>
    %459 = vector.broadcast %328 : vector<1x128xf32> to vector<8x128xf32>
    %460 = arith.addf %451, %459 : vector<8x128xf32>
    %461 = arith.mulf %458, %460 : vector<8x128xf32>
    %462 = arith.addf %450, %461 : vector<8x128xf32>
    %463 = math.tanh %462 : vector<8x128xf32>
    %c96_i32_234 = arith.constant 96 : i32
    %464 = tpu.dynamic_rotate %457 by %c96_i32_234 dim 1 : vector<8x128xf32>, i32 -> vector<8x128xf32>
    %c64_i32_235 = arith.constant 64 : i32
    %465 = tpu.dynamic_rotate %463 by %c64_i32_235 dim 1 : vector<8x128xf32>, i32 -> vector<8x128xf32>
    %466 = arith.subf %448, %465 : vector<8x128xf32>
    %467 = arith.mulf %464, %466 : vector<8x128xf32>
    %468 = arith.addf %465, %467 : vector<8x128xf32>
    %c48_236 = arith.constant 48 : index
    %c0_237 = arith.constant 0 : index
    %469 = vector.load %arg16[%c48_236, %c0_237] : memref<64x128xf32, #tpu.memory_space<vmem>>, vector<8x128xf32>
    tpu.vector_store %arg16[%c48_236, %c0_237], %468 {strides = array<i32>} : memref<64x128xf32, #tpu.memory_space<vmem>>, vector<8x128xf32>,
    %c56_238 = arith.constant 56 : index
    %c0_239 = arith.constant 0 : index
    %470 = vector.load %arg20[%c56_238, %c0_239] : memref<64x128xf32, #tpu.memory_space<vmem>>, vector<8x128xf32>
    %cst_240 = arith.constant dense<0.000000e+00> : vector<8x128xf32>
    %471 = tpu.matmul %468, %327, %cst_240 {dimension_numbers = #tpu.dot_dimension_numbers<[1], [0], [0], [1], [0, 0, 1, 1], [], []>} : vector<8x128xf32>, vector<128x128xf32>, vector<8x128xf32> -> vector<8x128xf32>
    %472 = arith.addf %470, %471 : vector<8x128xf32>
    %473 = arith.negf %472 : vector<8x128xf32>
    %474 = math.exp %473 : vector<8x128xf32>
    %cst_241 = arith.constant 1.000000e+00 : f32
    %475 = vector.broadcast %cst_241 : f32 to vector<8x128xf32>
    %476 = arith.addf %475, %474 : vector<8x128xf32>
    %477 = arith.divf %475, %476 : vector<8x128xf32>
    %c64_i32_242 = arith.constant 64 : i32
    %478 = tpu.dynamic_rotate %477 by %c64_i32_242 dim 1 : vector<8x128xf32>, i32 -> vector<8x128xf32>
    %479 = vector.broadcast %328 : vector<1x128xf32> to vector<8x128xf32>
    %480 = arith.addf %471, %479 : vector<8x128xf32>
    %481 = arith.mulf %478, %480 : vector<8x128xf32>
    %482 = arith.addf %470, %481 : vector<8x128xf32>
    %483 = math.tanh %482 : vector<8x128xf32>
    %c96_i32_243 = arith.constant 96 : i32
    %484 = tpu.dynamic_rotate %477 by %c96_i32_243 dim 1 : vector<8x128xf32>, i32 -> vector<8x128xf32>
    %c64_i32_244 = arith.constant 64 : i32
    %485 = tpu.dynamic_rotate %483 by %c64_i32_244 dim 1 : vector<8x128xf32>, i32 -> vector<8x128xf32>
    %486 = arith.subf %468, %485 : vector<8x128xf32>
    %487 = arith.mulf %484, %486 : vector<8x128xf32>
    %488 = arith.addf %485, %487 : vector<8x128xf32>
    %c56_245 = arith.constant 56 : index
    %c0_246 = arith.constant 0 : index
    %489 = vector.load %arg16[%c56_245, %c0_246] : memref<64x128xf32, #tpu.memory_space<vmem>>, vector<8x128xf32>
    tpu.vector_store %arg16[%c56_245, %c0_246], %488 {strides = array<i32>} : memref<64x128xf32, #tpu.memory_space<vmem>>, vector<8x128xf32>,
    %c0_247 = arith.constant 0 : index
    %c0_248 = arith.constant 0 : index
    %490 = vector.load %arg13[%c0_247, %c0_248] : memref<1x128xf32, #tpu.memory_space<vmem>>, vector<1x128xf32>
    %c0_249 = arith.constant 0 : index
    %c0_250 = arith.constant 0 : index
    %491 = vector.load %arg2[%c0_249, %c0_250] : memref<8x128xf32, #tpu.memory_space<vmem>>, vector<8x128xf32>
    %492 = vector.broadcast %490 : vector<1x128xf32> to vector<8x128xf32>
    %493 = arith.addf %492, %491 : vector<8x128xf32>
    %c0_251 = arith.constant 0 : index
    %c0_252 = arith.constant 0 : index
    %494 = vector.load %arg11[%c0_251, %c0_252] : memref<128x128xf32, #tpu.memory_space<vmem>>, vector<128x128xf32>
    %cst_253 = arith.constant dense<0.000000e+00> : vector<8x128xf32>
    %495 = tpu.matmul %318, %494, %cst_253 {dimension_numbers = #tpu.dot_dimension_numbers<[1], [0], [0], [1], [0, 0, 1, 1], [], []>} : vector<8x128xf32>, vector<128x128xf32>, vector<8x128xf32> -> vector<8x128xf32>
    %496 = arith.addf %493, %495 : vector<8x128xf32>
    %c0_254 = arith.constant 0 : index
    %c0_255 = arith.constant 0 : index
    %497 = vector.load %arg12[%c0_254, %c0_255] : memref<128x128xf32, #tpu.memory_space<vmem>>, vector<128x128xf32>
    %cst_256 = arith.constant dense<0.000000e+00> : vector<8x128xf32>
    %498 = tpu.matmul %488, %497, %cst_256 {dimension_numbers = #tpu.dot_dimension_numbers<[1], [0], [0], [1], [0, 0, 1, 1], [], []>} : vector<8x128xf32>, vector<128x128xf32>, vector<8x128xf32> -> vector<8x128xf32>
    %499 = arith.addf %496, %498 : vector<8x128xf32>
    %500 = math.tanh %499 : vector<8x128xf32>
    %c0_257 = arith.constant 0 : index
    %c0_258 = arith.constant 0 : index
    %501 = vector.load %arg17[%c0_257, %c0_258] : memref<8x128xf32, #tpu.memory_space<vmem>>, vector<8x128xf32>
    tpu.vector_store %arg17[%c0_257, %c0_258], %500 {strides = array<i32>} : memref<8x128xf32, #tpu.memory_space<vmem>>, vector<8x128xf32>,
    %c0_259 = arith.constant 0 : index
    %c0_260 = arith.constant 0 : index
    %502 = vector.load %arg14[%c0_259, %c0_260] : memref<128x128xf32, #tpu.memory_space<vmem>>, vector<128x128xf32>
    %cst_261 = arith.constant dense<0.000000e+00> : vector<8x128xf32>
    %503 = tpu.matmul %500, %502, %cst_261 {dimension_numbers = #tpu.dot_dimension_numbers<[1], [0], [0], [1], [0, 0, 1, 1], [], []>} : vector<8x128xf32>, vector<128x128xf32>, vector<8x128xf32> -> vector<8x128xf32>
    %c0_262 = arith.constant 0 : index
    %c0_263 = arith.constant 0 : index
    %504 = vector.load %arg15[%c0_262, %c0_263] : memref<1x128xf32, #tpu.memory_space<vmem>>, vector<1x128xf32>
    %505 = vector.broadcast %504 : vector<1x128xf32> to vector<8x128xf32>
    %506 = arith.addf %503, %505 : vector<8x128xf32>
    %c0_264 = arith.constant 0 : index
    %c0_265 = arith.constant 0 : index
    %507 = vector.load %arg18[%c0_264, %c0_265] : memref<8x128xf32, #tpu.memory_space<vmem>>, vector<8x128xf32>
    tpu.vector_store %arg18[%c0_264, %c0_265], %506 {strides = array<i32>} : memref<8x128xf32, #tpu.memory_space<vmem>>, vector<8x128xf32>,
    return
  }
}

</mosaic_0001>

<llo_original>
// kernel: encoder_forward.1
$region0: #{encoder_forward.1}
  #allocation0 [shape = 'u32[]', space=smem, size = 0x4, offset = 0x4, fixed_abs, tag = 'smem constant byte address 0x4 - core index']
  #allocation1 [shape = 'u32[144,128]{1,0:T(1,128)}', space=vmem, size = 0x12000, scoped, tag = 'internal scratch']
  #allocation2 [shape = 'f32[64,128]{1,0:T(8,128)}', space=vmem, size = 0x8000, scoped, tag = 'scratch operand']
  #allocation3 [shape = 'f32[64,128]{1,0:T(8,128)}', space=vmem, size = 0x8000, scoped, tag = 'scratch operand']
  %s0 = inlined_call_operand.vmem [shape: s32[8,2], index: 0, kind: input, shape index: {}]
  %s1 = inlined_call_operand.hbm [shape: f32[128,128], index: 1, kind: input, shape index: {}]
  %s2 = inlined_call_operand.vmem [shape: f32[8,128], index: 2, kind: input, shape index: {}]
  %s3 = inlined_call_operand.hbm [shape: f32[128,128], index: 3, kind: input, shape index: {}]
  %s4 = inlined_call_operand.hbm [shape: f32[128,128], index: 4, kind: input, shape index: {}]
  %s5 = inlined_call_operand.vmem [shape: f32[1,128], index: 5, kind: input, shape index: {}]
  %s6 = inlined_call_operand.vmem [shape: f32[1,128], index: 6, kind: input, shape index: {}]
  %s7 = inlined_call_operand.hbm [shape: f32[128,128], index: 7, kind: input, shape index: {}]
  %s8 = inlined_call_operand.hbm [shape: f32[128,128], index: 8, kind: input, shape index: {}]
  %s9 = inlined_call_operand.vmem [shape: f32[1,128], index: 9, kind: input, shape index: {}]
  %s10 = inlined_call_operand.vmem [shape: f32[1,128], index: 10, kind: input, shape index: {}]
  %s11 = inlined_call_operand.hbm [shape: f32[128,128], index: 11, kind: input, shape index: {}]
  %s12 = inlined_call_operand.hbm [shape: f32[128,128], index: 12, kind: input, shape index: {}]
  %s13 = inlined_call_operand.vmem [shape: f32[1,128], index: 13, kind: input, shape index: {}]
  %s14 = inlined_call_operand.hbm [shape: f32[128,128], index: 14, kind: input, shape index: {}]
  %s15 = inlined_call_operand.vmem [shape: f32[1,128], index: 15, kind: input, shape index: {}]
  %s16 = inlined_call_operand.vmem [shape: f32[64,128], index: 16, kind: output, shape index: {0}]
  %s17 = inlined_call_operand.vmem [shape: f32[8,128], index: 17, kind: output, shape index: {1}]
  %s18 = inlined_call_operand.vmem [shape: f32[8,128], index: 18, kind: output, shape index: {2}]
  %19 = xla_tuple %s16, %s17, %s18
  %s20 = sld [smem:[#allocation0]]
  $region126: #{encoder_forward.1} parent=0
    _
  %s22 = ssub.s32 1, %s20
  %s23 = scalar_select 0, %s22, %s20
  $region1: #{encoder_forward.1} parent=0
    #allocation4 [shape = 'u8[4096]{0}', space=smem, size = 0x1000, scoped, tag = 'input window, operand 0, single buffered']
    #allocation5 [shape = 's32[1]{0}', space=sflag, size = 0x4, scoped, tag = 'scoped memory for encoder_forward.1']
    #allocation6 [shape = 's32[1]{0}', space=sflag, size = 0x4, scoped, tag = 'scoped memory for encoder_forward.1']
    #allocation7 [shape = 'u8[65536]{0}', space=vmem, size = 0x10000, scoped, tag = 'input window, operand 1, single buffered']
    #allocation8 [shape = 'u8[65536]{0}', space=vmem, size = 0x10000, scoped, tag = 'input window, operand 3, single buffered']
    #allocation9 [shape = 's32[1]{0}', space=sflag, size = 0x4, scoped, tag = 'scoped memory for encoder_forward.1']
    #allocation10 [shape = 'u8[65536]{0}', space=vmem, size = 0x10000, scoped, tag = 'input window, operand 4, single buffered']
    #allocation11 [shape = 'u8[65536]{0}', space=vmem, size = 0x10000, scoped, tag = 'input window, operand 7, single buffered']
    #allocation12 [shape = 's32[1]{0}', space=sflag, size = 0x4, scoped, tag = 'scoped memory for encoder_forward.1']
    #allocation13 [shape = 'u8[65536]{0}', space=vmem, size = 0x10000, scoped, tag = 'input window, operand 8, single buffered']
    #allocation14 [shape = 'u8[65536]{0}', space=vmem, size = 0x10000, scoped, tag = 'input window, operand 11, single buffered']
    #allocation15 [shape = 's32[1]{0}', space=sflag, size = 0x4, scoped, tag = 'scoped memory for encoder_forward.1']
    #allocation16 [shape = 'u8[65536]{0}', space=vmem, size = 0x10000, scoped, tag = 'input window, operand 12, single buffered']
    #allocation17 [shape = 'u8[65536]{0}', space=vmem, size = 0x10000, scoped, tag = 'input window, operand 14, single buffered']
    #allocation18 [shape = 's32[1]{0}', space=sflag, size = 0x4, scoped, tag = 'scoped memory for encoder_forward.1']
    %24 = vsyncpa [#allocation6], 0
    %25 = vsyncpa [#allocation5], 0
    %26 = vsyncpa [#allocation9], 0
    %27 = vsyncpa [#allocation12], 0
    %28 = vsyncpa [#allocation15], 0
    %29 = vsyncpa [#allocation18], 0
    // Predicated region
    $region2: #{encoder_forward.1} parent=1 // pred_check
      _
    $region3: #{encoder_forward.1} parent=1 // pred_check_branch
      %31 = sbr.rel (0) target = $region5
    $region4: #{encoder_forward.1} parent=1 // pred_region
      %s33 = ssub.s32 128, 128
      %34 = vsyncadd [#allocation6], %s33
      %s36 = sshll.u32 %s0, 4
      %s37 = int_to_ptr.vmem [resolvable:$true] %s36
      %39 = dma.vmem_to_smem %s37, 128, [#allocation4], [#allocation6]
    $region5: #{encoder_forward.1} parent=1 // pred_fallthru
      _
    // Predicated region
    $region6: #{encoder_forward.1} parent=1 // pred_check
      _
    $region7: #{encoder_forward.1} parent=1 // pred_check_branch
      %41 = sbr.rel (0) target = $region9
    $region8: #{encoder_forward.1} parent=1 // pred_region
      %s43 = ssub.s32 2048, 2048
      %44 = vsyncadd [#allocation5], %s43
      %s45 = sshll.u32 [#allocation7], 4
      %s46 = int_to_ptr.vmem [resolvable:$true] %s45
      %51 = dma.hbm_to_vmem [thread:$0]  %s1, 2048, %s46, [#allocation5], 128, 128, 8
    $region9: #{encoder_forward.1} parent=1 // pred_fallthru
      _
    // Predicated region
    $region10: #{encoder_forward.1} parent=1 // pred_check
      _
    $region11: #{encoder_forward.1} parent=1 // pred_check_branch
      %53 = sbr.rel (0) target = $region13
    $region12: #{encoder_forward.1} parent=1 // pred_region
      _
    $region13: #{encoder_forward.1} parent=1 // pred_fallthru
      _
    // Predicated region
    $region14: #{encoder_forward.1} parent=1 // pred_check
      _
    $region15: #{encoder_forward.1} parent=1 // pred_check_branch
      %55 = sbr.rel (0) target = $region17
    $region16: #{encoder_forward.1} parent=1 // pred_region
      %s57 = ssub.s32 2048, 2048
      %58 = vsyncadd [#allocation9], %s57
      %s59 = sshll.u32 [#allocation8], 4
      %s60 = int_to_ptr.vmem [resolvable:$true] %s59
      %65 = dma.hbm_to_vmem [thread:$0]  %s3, 2048, %s60, [#allocation9], 128, 128, 8
    $region17: #{encoder_forward.1} parent=1 // pred_fallthru
      _
    // Predicated region
    $region18: #{encoder_forward.1} parent=1 // pred_check
      _
    $region19: #{encoder_forward.1} parent=1 // pred_check_branch
      %67 = sbr.rel (0) target = $region21
    $region20: #{encoder_forward.1} parent=1 // pred_region
      %s69 = ssub.s32 2048, 2048
      %70 = vsyncadd [#allocation9], %s69
      %s71 = sshll.u32 [#allocation10], 4
      %s72 = int_to_ptr.vmem [resolvable:$true] %s71
      %77 = dma.hbm_to_vmem [thread:$0]  %s4, 2048, %s72, [#allocation9], 128, 128, 8
    $region21: #{encoder_forward.1} parent=1 // pred_fallthru
      _
    // Predicated region
    $region22: #{encoder_forward.1} parent=1 // pred_check
      _
    $region23: #{encoder_forward.1} parent=1 // pred_check_branch
      %79 = sbr.rel (0) target = $region25
    $region24: #{encoder_forward.1} parent=1 // pred_region
      _
    $region25: #{encoder_forward.1} parent=1 // pred_fallthru
      _
    // Predicated region
    $region26: #{encoder_forward.1} parent=1 // pred_check
      _
    $region27: #{encoder_forward.1} parent=1 // pred_check_branch
      %81 = sbr.rel (0) target = $region29
    $region28: #{encoder_forward.1} parent=1 // pred_region
      _
    $region29: #{encoder_forward.1} parent=1 // pred_fallthru
      _
    // Predicated region
    $region30: #{encoder_forward.1} parent=1 // pred_check
      _
    $region31: #{encoder_forward.1} parent=1 // pred_check_branch
      %83 = sbr.rel (0) target = $region33
    $region32: #{encoder_forward.1} parent=1 // pred_region
      %s85 = ssub.s32 2048, 2048
      %86 = vsyncadd [#allocation12], %s85
      %s87 = sshll.u32 [#allocation11], 4
      %s88 = int_to_ptr.vmem [resolvable:$true] %s87
      %93 = dma.hbm_to_vmem [thread:$0]  %s7, 2048, %s88, [#allocation12], 128, 128, 8
    $region33: #{encoder_forward.1} parent=1 // pred_fallthru
      _
    // Predicated region
    $region34: #{encoder_forward.1} parent=1 // pred_check
      _
    $region35: #{encoder_forward.1} parent=1 // pred_check_branch
      %95 = sbr.rel (0) target = $region37
    $region36: #{encoder_forward.1} parent=1 // pred_region
      %s97 = ssub.s32 2048, 2048
      %98 = vsyncadd [#allocation12], %s97
      %s99 = sshll.u32 [#allocation13], 4
      %s100 = int_to_ptr.vmem [resolvable:$true] %s99
      %105 = dma.hbm_to_vmem [thread:$0]  %s8, 2048, %s100, [#allocation12], 128, 128, 8
    $region37: #{encoder_forward.1} parent=1 // pred_fallthru
      _
    // Predicated region
    $region38: #{encoder_forward.1} parent=1 // pred_check
      _
    $region39: #{encoder_forward.1} parent=1 // pred_check_branch
      %107 = sbr.rel (0) target = $region41
    $region40: #{encoder_forward.1} parent=1 // pred_region
      _
    $region41: #{encoder_forward.1} parent=1 // pred_fallthru
      _
    // Predicated region
    $region42: #{encoder_forward.1} parent=1 // pred_check
      _
    $region43: #{encoder_forward.1} parent=1 // pred_check_branch
      %109 = sbr.rel (0) target = $region45
    $region44: #{encoder_forward.1} parent=1 // pred_region
      _
    $region45: #{encoder_forward.1} parent=1 // pred_fallthru
      _
    // Predicated region
    $region46: #{encoder_forward.1} parent=1 // pred_check
      _
    $region47: #{encoder_forward.1} parent=1 // pred_check_branch
      %111 = sbr.rel (0) target = $region49
    $region48: #{encoder_forward.1} parent=1 // pred_region
      %s113 = ssub.s32 2048, 2048
      %114 = vsyncadd [#allocation15], %s113
      %s115 = sshll.u32 [#allocation14], 4
      %s116 = int_to_ptr.vmem [resolvable:$true] %s115
      %121 = dma.hbm_to_vmem [thread:$0]  %s11, 2048, %s116, [#allocation15], 128, 128, 8
    $region49: #{encoder_forward.1} parent=1 // pred_fallthru
      _
    // Predicated region
    $region50: #{encoder_forward.1} parent=1 // pred_check
      _
    $region51: #{encoder_forward.1} parent=1 // pred_check_branch
      %123 = sbr.rel (0) target = $region53
    $region52: #{encoder_forward.1} parent=1 // pred_region
      %s125 = ssub.s32 2048, 2048
      %126 = vsyncadd [#allocation15], %s125
      %s127 = sshll.u32 [#allocation16], 4
      %s128 = int_to_ptr.vmem [resolvable:$true] %s127
      %133 = dma.hbm_to_vmem [thread:$0]  %s12, 2048, %s128, [#allocation15], 128, 128, 8
    $region53: #{encoder_forward.1} parent=1 // pred_fallthru
      _
    // Predicated region
    $region54: #{encoder_forward.1} parent=1 // pred_check
      _
    $region55: #{encoder_forward.1} parent=1 // pred_check_branch
      %135 = sbr.rel (0) target = $region57
    $region56: #{encoder_forward.1} parent=1 // pred_region
      _
    $region57: #{encoder_forward.1} parent=1 // pred_fallthru
      _
    // Predicated region
    $region58: #{encoder_forward.1} parent=1 // pred_check
      _
    $region59: #{encoder_forward.1} parent=1 // pred_check_branch
      %137 = sbr.rel (0) target = $region61
    $region60: #{encoder_forward.1} parent=1 // pred_region
      %s139 = ssub.s32 2048, 2048
      %140 = vsyncadd [#allocation18], %s139
      %s141 = sshll.u32 [#allocation17], 4
      %s142 = int_to_ptr.vmem [resolvable:$true] %s141
      %147 = dma.hbm_to_vmem [thread:$0]  %s14, 2048, %s142, [#allocation18], 128, 128, 8
    $region61: #{encoder_forward.1} parent=1 // pred_fallthru
      _
    // Predicated region
    $region62: #{encoder_forward.1} parent=1 // pred_check
      _
    $region63: #{encoder_forward.1} parent=1 // pred_check_branch
      %149 = sbr.rel (0) target = $region65
    $region64: #{encoder_forward.1} parent=1 // pred_region
      _
    $region65: #{encoder_forward.1} parent=1 // pred_fallthru
      _
    // Predicated region
    $region66: #{encoder_forward.1} parent=1 // pred_check
      _
    $region67: #{encoder_forward.1} parent=1 // pred_check_branch
      %151 = sbr.rel (0) target = $region69
    $region68: #{encoder_forward.1} parent=1 // pred_region
      %152 = dma.done [#allocation6], 128
    $region69: #{encoder_forward.1} parent=1 // pred_fallthru
      _
    // Predicated region
    $region70: #{encoder_forward.1} parent=1 // pred_check
      _
    $region71: #{encoder_forward.1} parent=1 // pred_check_branch
      %154 = sbr.rel (0) target = $region73
    $region72: #{encoder_forward.1} parent=1 // pred_region
      %155 = dma.done [#allocation5], 2048
    $region73: #{encoder_forward.1} parent=1 // pred_fallthru
      _
    // Predicated region
    $region74: #{encoder_forward.1} parent=1 // pred_check
      _
    $region75: #{encoder_forward.1} parent=1 // pred_check_branch
      %157 = sbr.rel (0) target = $region77
    $region76: #{encoder_forward.1} parent=1 // pred_region
      %158 = dma.done [#allocation9], 2048
    $region77: #{encoder_forward.1} parent=1 // pred_fallthru
      _
    // Predicated region
    $region78: #{encoder_forward.1} parent=1 // pred_check
      _
    $region79: #{encoder_forward.1} parent=1 // pred_check_branch
      %160 = sbr.rel (0) target = $region81
    $region80: #{encoder_forward.1} parent=1 // pred_region
      %161 = dma.done [#allocation9], 2048
    $region81: #{encoder_forward.1} parent=1 // pred_fallthru
      _
    // Predicated region
    $region82: #{encoder_forward.1} parent=1 // pred_check
      _
    $region83: #{encoder_forward.1} parent=1 // pred_check_branch
      %163 = sbr.rel (0) target = $region85
    $region84: #{encoder_forward.1} parent=1 // pred_region
      %164 = dma.done [#allocation12], 2048
    $region85: #{encoder_forward.1} parent=1 // pred_fallthru
      _
    // Predicated region
    $region86: #{encoder_forward.1} parent=1 // pred_check
      _
    $region87: #{encoder_forward.1} parent=1 // pred_check_branch
      %166 = sbr.rel (0) target = $region89
    $region88: #{encoder_forward.1} parent=1 // pred_region
      %167 = dma.done [#allocation12], 2048
    $region89: #{encoder_forward.1} parent=1 // pred_fallthru
      _
    // Predicated region
    $region90: #{encoder_forward.1} parent=1 // pred_check
      _
    $region91: #{encoder_forward.1} parent=1 // pred_check_branch
      %169 = sbr.rel (0) target = $region93
    $region92: #{encoder_forward.1} parent=1 // pred_region
      %170 = dma.done [#allocation15], 2048
    $region93: #{encoder_forward.1} parent=1 // pred_fallthru
      _
    // Predicated region
    $region94: #{encoder_forward.1} parent=1 // pred_check
      _
    $region95: #{encoder_forward.1} parent=1 // pred_check_branch
      %172 = sbr.rel (0) target = $region97
    $region96: #{encoder_forward.1} parent=1 // pred_region
      %173 = dma.done [#allocation15], 2048
    $region97: #{encoder_forward.1} parent=1 // pred_fallthru
      _
    // Predicated region
    $region98: #{encoder_forward.1} parent=1 // pred_check
      _
    $region99: #{encoder_forward.1} parent=1 // pred_check_branch
      %175 = sbr.rel (0) target = $region101
    $region100: #{encoder_forward.1} parent=1 // pred_region
      %176 = dma.done [#allocation18], 2048
    $region101: #{encoder_forward.1} parent=1 // pred_fallthru
      _
    %177 = sfence
    %v178 = vlaneseq
    %v179 = vand.u32 %v178, 127
    %v180 = vlaneseq
    %v181 = vshrl.u32 %v180, 7
    %s182 = sld [smem:[#allocation4]]
    %vm183 = vcmp.eq.s32.totalorder %v181, 0
    %v184 = vstv %s182
    %vm185 = vcmp.eq.s32.totalorder %v179, %v184
    %vm186 = vmand %vm183, %vm185
    %v187 = vsel %vm186, 1.0, 0.0
    %s188 = sld [smem:[#allocation4 + $0x1]]
    %vm189 = vcmp.eq.s32.totalorder %v181, 1
    %v190 = vstv %s188
    %vm191 = vcmp.eq.s32.totalorder %v179, %v190
    %vm192 = vmand %vm189, %vm191
    %v193 = vsel %vm192, 1.0, %v187
    %194 = vst [vmem:[#allocation3] sm:$0xff] %v193
    %s195 = sld [smem:[#allocation4 + $0x80]]
    %v196 = vstv %s195
    %vm197 = vcmp.eq.s32.totalorder %v179, %v196
    %vm198 = vmand %vm183, %vm197
    %v199 = vsel %vm198, 1.0, 0.0
    %s200 = sld [smem:[#allocation4 + $0x81]]
    %v201 = vstv %s200
    %vm202 = vcmp.eq.s32.totalorder %v179, %v201
    %vm203 = vmand %vm189, %vm202
    %v204 = vsel %vm203, 1.0, %v199
    %205 = vst [vmem:[#allocation3 + $0x8] sm:$0xff] %v204
    %s206 = sld [smem:[#allocation4 + $0x100]]
    %v207 = vstv %s206
    %vm208 = vcmp.eq.s32.totalorder %v179, %v207
    %vm209 = vmand %vm183, %vm208
    %v210 = vsel %vm209, 1.0, 0.0
    %s211 = sld [smem:[#allocation4 + $0x101]]
    %v212 = vstv %s211
    %vm213 = vcmp.eq.s32.totalorder %v179, %v212
    %vm214 = vmand %vm189, %vm213
    %v215 = vsel %vm214, 1.0, %v210
    %216 = vst [vmem:[#allocation3 + $0x10] sm:$0xff] %v215
    %s217 = sld [smem:[#allocation4 + $0x180]]
    %v218 = vstv %s217
    %vm219 = vcmp.eq.s32.totalorder %v179, %v218
    %vm220 = vmand %vm183, %vm219
    %v221 = vsel %vm220, 1.0, 0.0
    %s222 = sld [smem:[#allocation4 + $0x181]]
    %v223 = vstv %s222
    %vm224 = vcmp.eq.s32.totalorder %v179, %v223
    %vm225 = vmand %vm189, %vm224
    %v226 = vsel %vm225, 1.0, %v221
    %227 = vst [vmem:[#allocation3 + $0x18] sm:$0xff] %v226
    %s228 = sld [smem:[#allocation4 + $0x200]]
    %v229 = vstv %s228
    %vm230 = vcmp.eq.s32.totalorder %v179, %v229
    %vm231 = vmand %vm183, %vm230
    %v232 = vsel %vm231, 1.0, 0.0
    %s233 = sld [smem:[#allocation4 + $0x201]]
    %v234 = vstv %s233
    %vm235 = vcmp.eq.s32.totalorder %v179, %v234
    %vm236 = vmand %vm189, %vm235
    %v237 = vsel %vm236, 1.0, %v232
    %238 = vst [vmem:[#allocation3 + $0x20] sm:$0xff] %v237
    %s239 = sld [smem:[#allocation4 + $0x280]]
    %v240 = vstv %s239
    %vm241 = vcmp.eq.s32.totalorder %v179, %v240
    %vm242 = vmand %vm183, %vm241
    %v243 = vsel %vm242, 1.0, 0.0
    %s244 = sld [smem:[#allocation4 + $0x281]]
    %v245 = vstv %s244
    %vm246 = vcmp.eq.s32.totalorder %v179, %v245
    %vm247 = vmand %vm189, %vm246
    %v248 = vsel %vm247, 1.0, %v243
    %249 = vst [vmem:[#allocation3 + $0x28] sm:$0xff] %v248
    %s250 = sld [smem:[#allocation4 + $0x300]]
    %v251 = vstv %s250
    %vm252 = vcmp.eq.s32.totalorder %v179, %v251
    %vm253 = vmand %vm183, %vm252
    %v254 = vsel %vm253, 1.0, 0.0
    %s255 = sld [smem:[#allocation4 + $0x301]]
    %v256 = vstv %s255
    %vm257 = vcmp.eq.s32.totalorder %v179, %v256
    %vm258 = vmand %vm189, %vm257
    %v259 = vsel %vm258, 1.0, %v254
    %260 = vst [vmem:[#allocation3 + $0x30] sm:$0xff] %v259
    %s261 = sld [smem:[#allocation4 + $0x380]]
    %v262 = vstv %s261
    %vm263 = vcmp.eq.s32.totalorder %v179, %v262
    %vm264 = vmand %vm183, %vm263
    %v265 = vsel %vm264, 1.0, 0.0
    %s266 = sld [smem:[#allocation4 + $0x381]]
    %v267 = vstv %s266
    %vm268 = vcmp.eq.s32.totalorder %v179, %v267
    %vm269 = vmand %vm189, %vm268
    %v270 = vsel %vm269, 1.0, %v265
    %271 = vst [vmem:[#allocation3 + $0x38] sm:$0xff] %v270
    %v272 = vld [vmem:[#allocation3] sm:$0xff]
    %v273 = vld [vmem:[#allocation3 + $0x8] sm:$0xff]
    %v274 = vld [vmem:[#allocation3 + $0x10] sm:$0xff]
    %v275 = vld [vmem:[#allocation3 + $0x18] sm:$0xff]
    %v276 = vld [vmem:[#allocation3 + $0x20] sm:$0xff]
    %v277 = vld [vmem:[#allocation3 + $0x28] sm:$0xff]
    %v278 = vld [vmem:[#allocation3 + $0x30] sm:$0xff]
    %v279 = vld [vmem:[#allocation3 + $0x38] sm:$0xff]
    %v280 = vld [vmem:[#allocation7] sm:$0xff]
    %v281 = vld [vmem:[#allocation7 + $0x8] sm:$0xff]
    %v282 = vld [vmem:[#allocation7 + $0x10] sm:$0xff]
    %v283 = vld [vmem:[#allocation7 + $0x18] sm:$0xff]
    %v284 = vld [vmem:[#allocation7 + $0x20] sm:$0xff]
    %v285 = vld [vmem:[#allocation7 + $0x28] sm:$0xff]
    %v286 = vld [vmem:[#allocation7 + $0x30] sm:$0xff]
    %v287 = vld [vmem:[#allocation7 + $0x38] sm:$0xff]
    %v288 = vld [vmem:[#allocation7 + $0x40] sm:$0xff]
    %v289 = vld [vmem:[#allocation7 + $0x48] sm:$0xff]
    %v290 = vld [vmem:[#allocation7 + $0x50] sm:$0xff]
    %v291 = vld [vmem:[#allocation7 + $0x58] sm:$0xff]
    %v292 = vld [vmem:[#allocation7 + $0x60] sm:$0xff]
    %v293 = vld [vmem:[#allocation7 + $0x68] sm:$0xff]
    %v294 = vld [vmem:[#allocation7 + $0x70] sm:$0xff]
    %v295 = vld [vmem:[#allocation7 + $0x78] sm:$0xff]
    %296 = vmatprep.subr.mxu0 0.0
    %297 = vmatpush1.msra.mxu0 %v280
    %298 = vmatprep.subr.mxu0 0.0
    %299 = vmatpush1.msra.mxu0 %v281
    %300 = vmatprep.subr.mxu0 0.0
    %301 = vmatpush1.msra.mxu0 %v282
    %302 = vmatprep.subr.mxu0 0.0
    %303 = vmatpush1.msra.mxu0 %v283
    %304 = vmatprep.subr.mxu0 0.0
    %305 = vmatpush1.msra.mxu0 %v284
    %306 = vmatprep.subr.mxu0 0.0
    %307 = vmatpush1.msra.mxu0 %v285
    %308 = vmatprep.subr.mxu0 0.0
    %309 = vmatpush1.msra.mxu0 %v286
    %310 = vmatprep.subr.mxu0 0.0
    %311 = vmatpush1.msra.mxu0 %v287
    %312 = vmatprep.subr.mxu0 0.0
    %313 = vmatpush1.msra.mxu0 %v288
    %314 = vmatprep.subr.mxu0 0.0
    %315 = vmatpush1.msra.mxu0 %v289
    %316 = vmatprep.subr.mxu0 0.0
    %317 = vmatpush1.msra.mxu0 %v290
    %318 = vmatprep.subr.mxu0 0.0
    %319 = vmatpush1.msra.mxu0 %v291
    %320 = vmatprep.subr.mxu0 0.0
    %321 = vmatpush1.msra.mxu0 %v292
    %322 = vmatprep.subr.mxu0 0.0
    %323 = vmatpush1.msra.mxu0 %v293
    %324 = vmatprep.subr.mxu0 0.0
    %325 = vmatpush1.msra.mxu0 %v294
    %326 = vmatprep.subr.mxu0 0.0
    %327 = vmatpush1.msra.mxu0 %v295
    %328 = vmatprep.subr.mxu0 0.0
    %329 = vmatpush1.msra.mxu0 0.0
    %330 = vmatprep.subr.mxu0 0.0
    %331 = vmatpush1.msra.mxu0 0.0
    %332 = vmatprep.subr.mxu0 0.0
    %333 = vmatpush1.msra.mxu0 0.0
    %334 = vmatprep.subr.mxu0 0.0
    %335 = vmatpush1.msra.mxu0 0.0
    %336 = vmatprep.subr.mxu0 0.0
    %337 = vmatpush1.msra.mxu0 0.0
    %338 = vmatprep.subr.mxu0 0.0
    %339 = vmatpush1.msra.mxu0 0.0
    %340 = vmatprep.subr.mxu0 0.0
    %341 = vmatpush1.msra.mxu0 0.0
    %342 = vmatprep.subr.mxu0 0.0
    %343 = vmatpush1.msra.mxu0 0.0
    %344 = vmatprep.subr.mxu0 0.0
    %345 = vmatpush1.msra.mxu0 0.0
    %346 = vmatprep.subr.mxu0 0.0
    %347 = vmatpush1.msra.mxu0 0.0
    %348 = vmatprep.subr.mxu0 0.0
    %349 = vmatpush1.msra.mxu0 0.0
    %350 = vmatprep.subr.mxu0 0.0
    %351 = vmatpush1.msra.mxu0 0.0
    %352 = vmatprep.subr.mxu0 0.0
    %353 = vmatpush1.msra.mxu0 0.0
    %354 = vmatprep.subr.mxu0 0.0
    %355 = vmatpush1.msra.mxu0 0.0
    %356 = vmatprep.subr.mxu0 0.0
    %357 = vmatpush1.msra.mxu0 0.0
    %358 = vmatprep.subr.mxu0 0.0
    %359 = vmatpush1.msra.mxu0 0.0
    %360 = vmatprep.mubr.f32.mxu0 0.0
    %361 = vmatmul.mubr.f32.gmra.mrb[0].mxu0 %v272
    %v362 = vpop.f32.mrb[0].mxu0
    %v363 = vadd.f32 0.0, %v362
    %v364 = vpop.f32.mrb[0].mxu0
    %365 = vmatprep.mubr.f32.mxu0 0.0
    %366 = vmatmul.mubr.f32.gmra.mrb[0].mxu0 %v273
    %v367 = vpop.f32.mrb[0].mxu0
    %v368 = vadd.f32 0.0, %v367
    %v369 = vpop.f32.mrb[0].mxu0
    %370 = vmatprep.mubr.f32.mxu0 0.0
    %371 = vmatmul.mubr.f32.gmra.mrb[0].mxu0 %v274
    %v372 = vpop.f32.mrb[0].mxu0
    %v373 = vadd.f32 0.0, %v372
    %v374 = vpop.f32.mrb[0].mxu0
    %375 = vmatprep.mubr.f32.mxu0 0.0
    %376 = vmatmul.mubr.f32.gmra.mrb[0].mxu0 %v275
    %v377 = vpop.f32.mrb[0].mxu0
    %v378 = vadd.f32 0.0, %v377
    %v379 = vpop.f32.mrb[0].mxu0
    %380 = vmatprep.mubr.f32.mxu0 0.0
    %381 = vmatmul.mubr.f32.gmra.mrb[0].mxu0 %v276
    %v382 = vpop.f32.mrb[0].mxu0
    %v383 = vadd.f32 0.0, %v382
    %v384 = vpop.f32.mrb[0].mxu0
    %385 = vmatprep.mubr.f32.mxu0 0.0
    %386 = vmatmul.mubr.f32.gmra.mrb[0].mxu0 %v277
    %v387 = vpop.f32.mrb[0].mxu0
    %v388 = vadd.f32 0.0, %v387
    %v389 = vpop.f32.mrb[0].mxu0
    %390 = vmatprep.mubr.f32.mxu0 0.0
    %391 = vmatmul.mubr.f32.gmra.mrb[0].mxu0 %v278
    %v392 = vpop.f32.mrb[0].mxu0
    %v393 = vadd.f32 0.0, %v392
    %v394 = vpop.f32.mrb[0].mxu0
    %395 = vmatprep.mubr.f32.mxu0 0.0
    %396 = vmatmul.mubr.f32.gmra.mrb[0].mxu0 %v279
    %v397 = vpop.f32.mrb[0].mxu0
    %v398 = vadd.f32 0.0, %v397
    %v399 = vpop.f32.mrb[0].mxu0
    %400 = vdwg.mxu0
    %401 = vst [vmem:[#allocation2] sm:$0xff] %v363
    %402 = vst [vmem:[#allocation2 + $0x8] sm:$0xff] %v368
    %403 = vst [vmem:[#allocation2 + $0x10] sm:$0xff] %v373
    %404 = vst [vmem:[#allocation2 + $0x18] sm:$0xff] %v378
    %405 = vst [vmem:[#allocation2 + $0x20] sm:$0xff] %v383
    %406 = vst [vmem:[#allocation2 + $0x28] sm:$0xff] %v388
    %407 = vst [vmem:[#allocation2 + $0x30] sm:$0xff] %v393
    %408 = vst [vmem:[#allocation2 + $0x38] sm:$0xff] %v398
    %v409 = vld [vmem:[#allocation2] sm:$0xff]
    %v410 = vld [vmem:[#allocation2 + $0x8] sm:$0xff]
    %v411 = vld [vmem:[#allocation2 + $0x10] sm:$0xff]
    %v412 = vld [vmem:[#allocation2 + $0x18] sm:$0xff]
    %v413 = vld [vmem:[#allocation2 + $0x20] sm:$0xff]
    %v414 = vld [vmem:[#allocation2 + $0x28] sm:$0xff]
    %v415 = vld [vmem:[#allocation2 + $0x30] sm:$0xff]
    %v416 = vld [vmem:[#allocation2 + $0x38] sm:$0xff]
    %v417 = vld [vmem:[#allocation8] sm:$0xff]
    %v418 = vld [vmem:[#allocation8 + $0x8] sm:$0xff]
    %v419 = vld [vmem:[#allocation8 + $0x10] sm:$0xff]
    %v420 = vld [vmem:[#allocation8 + $0x18] sm:$0xff]
    %v421 = vld [vmem:[#allocation8 + $0x20] sm:$0xff]
    %v422 = vld [vmem:[#allocation8 + $0x28] sm:$0xff]
    %v423 = vld [vmem:[#allocation8 + $0x30] sm:$0xff]
    %v424 = vld [vmem:[#allocation8 + $0x38] sm:$0xff]
    %v425 = vld [vmem:[#allocation8 + $0x40] sm:$0xff]
    %v426 = vld [vmem:[#allocation8 + $0x48] sm:$0xff]
    %v427 = vld [vmem:[#allocation8 + $0x50] sm:$0xff]
    %v428 = vld [vmem:[#allocation8 + $0x58] sm:$0xff]
    %v429 = vld [vmem:[#allocation8 + $0x60] sm:$0xff]
    %v430 = vld [vmem:[#allocation8 + $0x68] sm:$0xff]
    %v431 = vld [vmem:[#allocation8 + $0x70] sm:$0xff]
    %v432 = vld [vmem:[#allocation8 + $0x78] sm:$0xff]
    %v433 = vld [vmem:[%s5] sm:$0x1]
    %v435 = vlaneseq
    %v436 = vshrl.u32 %v435, 7
    %v437 = vsub.s32 0, %v436
    %v438 = vrot.slane %v433, %v437
    %440 = vmatprep.subr.mxu0 0.0
    %441 = vmatpush1.msra.mxu0 %v417
    %442 = vmatprep.subr.mxu0 0.0
    %443 = vmatpush1.msra.mxu0 %v418
    %444 = vmatprep.subr.mxu0 0.0
    %445 = vmatpush1.msra.mxu0 %v419
    %446 = vmatprep.subr.mxu0 0.0
    %447 = vmatpush1.msra.mxu0 %v420
    %448 = vmatprep.subr.mxu0 0.0
    %449 = vmatpush1.msra.mxu0 %v421
    %450 = vmatprep.subr.mxu0 0.0
    %451 = vmatpush1.msra.mxu0 %v422
    %452 = vmatprep.subr.mxu0 0.0
    %453 = vmatpush1.msra.mxu0 %v423
    %454 = vmatprep.subr.mxu0 0.0
    %455 = vmatpush1.msra.mxu0 %v424
    %456 = vmatprep.subr.mxu0 0.0
    %457 = vmatpush1.msra.mxu0 %v425
    %458 = vmatprep.subr.mxu0 0.0
    %459 = vmatpush1.msra.mxu0 %v426
    %460 = vmatprep.subr.mxu0 0.0
    %461 = vmatpush1.msra.mxu0 %v427
    %462 = vmatprep.subr.mxu0 0.0
    %463 = vmatpush1.msra.mxu0 %v428
    %464 = vmatprep.subr.mxu0 0.0
    %465 = vmatpush1.msra.mxu0 %v429
    %466 = vmatprep.subr.mxu0 0.0
    %467 = vmatpush1.msra.mxu0 %v430
    %468 = vmatprep.subr.mxu0 0.0
    %469 = vmatpush1.msra.mxu0 %v431
    %470 = vmatprep.subr.mxu0 0.0
    %471 = vmatpush1.msra.mxu0 %v432
    %472 = vmatprep.subr.mxu0 0.0
    %473 = vmatpush1.msra.mxu0 0.0
    %474 = vmatprep.subr.mxu0 0.0
    %475 = vmatpush1.msra.mxu0 0.0
    %476 = vmatprep.subr.mxu0 0.0
    %477 = vmatpush1.msra.mxu0 0.0
    %478 = vmatprep.subr.mxu0 0.0
    %479 = vmatpush1.msra.mxu0 0.0
    %480 = vmatprep.subr.mxu0 0.0
    %481 = vmatpush1.msra.mxu0 0.0
    %482 = vmatprep.subr.mxu0 0.0
    %483 = vmatpush1.msra.mxu0 0.0
    %484 = vmatprep.subr.mxu0 0.0
    %485 = vmatpush1.msra.mxu0 0.0
    %486 = vmatprep.subr.mxu0 0.0
    %487 = vmatpush1.msra.mxu0 0.0
    %488 = vmatprep.subr.mxu0 0.0
    %489 = vmatpush1.msra.mxu0 0.0
    %490 = vmatprep.subr.mxu0 0.0
    %491 = vmatpush1.msra.mxu0 0.0
    %492 = vmatprep.subr.mxu0 0.0
    %493 = vmatpush1.msra.mxu0 0.0
    %494 = vmatprep.subr.mxu0 0.0
    %495 = vmatpush1.msra.mxu0 0.0
    %496 = vmatprep.subr.mxu0 0.0
    %497 = vmatpush1.msra.mxu0 0.0
    %498 = vmatprep.subr.mxu0 0.0
    %499 = vmatpush1.msra.mxu0 0.0
    %500 = vmatprep.subr.mxu0 0.0
    %501 = vmatpush1.msra.mxu0 0.0
    %502 = vmatprep.subr.mxu0 0.0
    %503 = vmatpush1.msra.mxu0 0.0
    %504 = vmatprep.mubr.f32.mxu0 0.0
    %505 = vmatmul.mubr.f32.gmra.mrb[0].mxu0 %v409
    %v506 = vpop.f32.mrb[0].mxu0
    %v507 = vadd.f32 %v438, %v506
    %v508 = vpop.f32.mrb[0].mxu0
    %509 = vmatprep.mubr.f32.mxu0 0.0
    %510 = vmatmul.mubr.f32.gmra.mrb[0].mxu0 %v410
    %v511 = vpop.f32.mrb[0].mxu0
    %v512 = vadd.f32 %v438, %v511
    %v513 = vpop.f32.mrb[0].mxu0
    %514 = vmatprep.mubr.f32.mxu0 0.0
    %515 = vmatmul.mubr.f32.gmra.mrb[0].mxu0 %v411
    %v516 = vpop.f32.mrb[0].mxu0
    %v517 = vadd.f32 %v438, %v516
    %v518 = vpop.f32.mrb[0].mxu0
    %519 = vmatprep.mubr.f32.mxu0 0.0
    %520 = vmatmul.mubr.f32.gmra.mrb[0].mxu0 %v412
    %v521 = vpop.f32.mrb[0].mxu0
    %v522 = vadd.f32 %v438, %v521
    %v523 = vpop.f32.mrb[0].mxu0
    %524 = vmatprep.mubr.f32.mxu0 0.0
    %525 = vmatmul.mubr.f32.gmra.mrb[0].mxu0 %v413
    %v526 = vpop.f32.mrb[0].mxu0
    %v527 = vadd.f32 %v438, %v526
    %v528 = vpop.f32.mrb[0].mxu0
    %529 = vmatprep.mubr.f32.mxu0 0.0
    %530 = vmatmul.mubr.f32.gmra.mrb[0].mxu0 %v414
    %v531 = vpop.f32.mrb[0].mxu0
    %v532 = vadd.f32 %v438, %v531
    %v533 = vpop.f32.mrb[0].mxu0
    %534 = vmatprep.mubr.f32.mxu0 0.0
    %535 = vmatmul.mubr.f32.gmra.mrb[0].mxu0 %v415
    %v536 = vpop.f32.mrb[0].mxu0
    %v537 = vadd.f32 %v438, %v536
    %v538 = vpop.f32.mrb[0].mxu0
    %539 = vmatprep.mubr.f32.mxu0 0.0
    %540 = vmatmul.mubr.f32.gmra.mrb[0].mxu0 %v416
    %v541 = vpop.f32.mrb[0].mxu0
    %v542 = vadd.f32 %v438, %v541
    %v543 = vpop.f32.mrb[0].mxu0
    %544 = vdwg.mxu0
    %545 = vst [vmem:[#allocation3] sm:$0xff] %v507
    %546 = vst [vmem:[#allocation3 + $0x8] sm:$0xff] %v512
    %547 = vst [vmem:[#allocation3 + $0x10] sm:$0xff] %v517
    %548 = vst [vmem:[#allocation3 + $0x18] sm:$0xff] %v522
    %549 = vst [vmem:[#allocation3 + $0x20] sm:$0xff] %v527
    %550 = vst [vmem:[#allocation3 + $0x28] sm:$0xff] %v532
    %551 = vst [vmem:[#allocation3 + $0x30] sm:$0xff] %v537
    %552 = vst [vmem:[#allocation3 + $0x38] sm:$0xff] %v542
    %v553 = vld [vmem:[#allocation10] sm:$0xff]
    %v554 = vld [vmem:[#allocation10 + $0x8] sm:$0xff]
    %v555 = vld [vmem:[#allocation10 + $0x10] sm:$0xff]
    %v556 = vld [vmem:[#allocation10 + $0x18] sm:$0xff]
    %v557 = vld [vmem:[#allocation10 + $0x20] sm:$0xff]
    %v558 = vld [vmem:[#allocation10 + $0x28] sm:$0xff]
    %v559 = vld [vmem:[#allocation10 + $0x30] sm:$0xff]
    %v560 = vld [vmem:[#allocation10 + $0x38] sm:$0xff]
    %v561 = vld [vmem:[#allocation10 + $0x40] sm:$0xff]
    %v562 = vld [vmem:[#allocation10 + $0x48] sm:$0xff]
    %v563 = vld [vmem:[#allocation10 + $0x50] sm:$0xff]
    %v564 = vld [vmem:[#allocation10 + $0x58] sm:$0xff]
    %v565 = vld [vmem:[#allocation10 + $0x60] sm:$0xff]
    %v566 = vld [vmem:[#allocation10 + $0x68] sm:$0xff]
    %v567 = vld [vmem:[#allocation10 + $0x70] sm:$0xff]
    %v568 = vld [vmem:[#allocation10 + $0x78] sm:$0xff]
    %v569 = vld [vmem:[%s6] sm:$0x1]
    %v570 = vld [vmem:[#allocation3] sm:$0xff]
    %571 = vmatprep.subr.mxu0 0.0
    %572 = vmatpush1.msra.mxu0 %v553
    %573 = vmatprep.subr.mxu0 0.0
    %574 = vmatpush1.msra.mxu0 %v554
    %575 = vmatprep.subr.mxu0 0.0
    %576 = vmatpush1.msra.mxu0 %v555
    %577 = vmatprep.subr.mxu0 0.0
    %578 = vmatpush1.msra.mxu0 %v556
    %579 = vmatprep.subr.mxu0 0.0
    %580 = vmatpush1.msra.mxu0 %v557
    %581 = vmatprep.subr.mxu0 0.0
    %582 = vmatpush1.msra.mxu0 %v558
    %583 = vmatprep.subr.mxu0 0.0
    %584 = vmatpush1.msra.mxu0 %v559
    %585 = vmatprep.subr.mxu0 0.0
    %586 = vmatpush1.msra.mxu0 %v560
    %587 = vmatprep.subr.mxu0 0.0
    %588 = vmatpush1.msra.mxu0 %v561
    %589 = vmatprep.subr.mxu0 0.0
    %590 = vmatpush1.msra.mxu0 %v562
    %591 = vmatprep.subr.mxu0 0.0
    %592 = vmatpush1.msra.mxu0 %v563
    %593 = vmatprep.subr.mxu0 0.0
    %594 = vmatpush1.msra.mxu0 %v564
    %595 = vmatprep.subr.mxu0 0.0
    %596 = vmatpush1.msra.mxu0 %v565
    %597 = vmatprep.subr.mxu0 0.0
    %598 = vmatpush1.msra.mxu0 %v566
    %599 = vmatprep.subr.mxu0 0.0
    %600 = vmatpush1.msra.mxu0 %v567
    %601 = vmatprep.subr.mxu0 0.0
    %602 = vmatpush1.msra.mxu0 %v568
    %603 = vmatprep.subr.mxu0 0.0
    %604 = vmatpush1.msra.mxu0 0.0
    %605 = vmatprep.subr.mxu0 0.0
    %606 = vmatpush1.msra.mxu0 0.0
    %607 = vmatprep.subr.mxu0 0.0
    %608 = vmatpush1.msra.mxu0 0.0
    %609 = vmatprep.subr.mxu0 0.0
    %610 = vmatpush1.msra.mxu0 0.0
    %611 = vmatprep.subr.mxu0 0.0
    %612 = vmatpush1.msra.mxu0 0.0
    %613 = vmatprep.subr.mxu0 0.0
    %614 = vmatpush1.msra.mxu0 0.0
    %615 = vmatprep.subr.mxu0 0.0
    %616 = vmatpush1.msra.mxu0 0.0
    %617 = vmatprep.subr.mxu0 0.0
    %618 = vmatpush1.msra.mxu0 0.0
    %619 = vmatprep.subr.mxu0 0.0
    %620 = vmatpush1.msra.mxu0 0.0
    %621 = vmatprep.subr.mxu0 0.0
    %622 = vmatpush1.msra.mxu0 0.0
    %623 = vmatprep.subr.mxu0 0.0
    %624 = vmatpush1.msra.mxu0 0.0
    %625 = vmatprep.subr.mxu0 0.0
    %626 = vmatpush1.msra.mxu0 0.0
    %627 = vmatprep.subr.mxu0 0.0
    %628 = vmatpush1.msra.mxu0 0.0
    %629 = vmatprep.subr.mxu0 0.0
    %630 = vmatpush1.msra.mxu0 0.0
    %631 = vmatprep.subr.mxu0 0.0
    %632 = vmatpush1.msra.mxu0 0.0
    %633 = vmatprep.subr.mxu0 0.0
    %634 = vmatpush1.msra.mxu0 0.0
    %635 = vmatprep.mubr.f32.mxu0 0.0
    %636 = vmatmul.mubr.f32.gmra.mrb[0].mxu0 0.0
    %v637 = vpop.f32.mrb[0].mxu0
    %v638 = vadd.f32 0.0, %v637
    %v639 = vpop.f32.mrb[0].mxu0
    %640 = vdwg.mxu0
    %v641 = vadd.f32 %v570, %v638
    %v642 = vxor.u32 %v641, 2147483648
    %v643 = vmul.f32 %v642, 1.442695
    %v644 = vpow.pop %v643
    %v645 = vadd.f32 %v644, 1.0
    %v646 = vrcp.pop %v645
    %v647 = vmul.f32 1.0, %v646
    %648 = vrot.lane.b32.xlu0 %v647, 64
    %v649 = vpop.permute.xlu0 %648
    %v651 = vlaneseq
    %v652 = vshrl.u32 %v651, 7
    %v653 = vsub.s32 0, %v652
    %v654 = vrot.slane %v569, %v653
    %v656 = vadd.f32 %v638, %v654
    %v657 = vmul.f32 %v649, %v656
    %v658 = vadd.f32 %v570, %v657
    %v659 = vtanh.pop %v658
    %660 = vrot.lane.b32.xlu0 %v647, 96
    %v661 = vpop.permute.xlu0 %660
    %662 = vrot.lane.b32.xlu0 %v659, 64
    %v663 = vpop.permute.xlu0 %662
    %v664 = vsub.f32 0.0, %v663
    %v665 = vmul.f32 %v661, %v664
    %v666 = vadd.f32 %v663, %v665
    %667 = vst [vmem:[#allocation2] sm:$0xff] %v666
    %v668 = vld [vmem:[#allocation3 + $0x8] sm:$0xff]
    %669 = vmatprep.subr.mxu0 0.0
    %670 = vmatpush1.msra.mxu0 %v553
    %671 = vmatprep.subr.mxu0 0.0
    %672 = vmatpush1.msra.mxu0 %v554
    %673 = vmatprep.subr.mxu0 0.0
    %674 = vmatpush1.msra.mxu0 %v555
    %675 = vmatprep.subr.mxu0 0.0
    %676 = vmatpush1.msra.mxu0 %v556
    %677 = vmatprep.subr.mxu0 0.0
    %678 = vmatpush1.msra.mxu0 %v557
    %679 = vmatprep.subr.mxu0 0.0
    %680 = vmatpush1.msra.mxu0 %v558
    %681 = vmatprep.subr.mxu0 0.0
    %682 = vmatpush1.msra.mxu0 %v559
    %683 = vmatprep.subr.mxu0 0.0
    %684 = vmatpush1.msra.mxu0 %v560
    %685 = vmatprep.subr.mxu0 0.0
    %686 = vmatpush1.msra.mxu0 %v561
    %687 = vmatprep.subr.mxu0 0.0
    %688 = vmatpush1.msra.mxu0 %v562
    %689 = vmatprep.subr.mxu0 0.0
    %690 = vmatpush1.msra.mxu0 %v563
    %691 = vmatprep.subr.mxu0 0.0
    %692 = vmatpush1.msra.mxu0 %v564
    %693 = vmatprep.subr.mxu0 0.0
    %694 = vmatpush1.msra.mxu0 %v565
    %695 = vmatprep.subr.mxu0 0.0
    %696 = vmatpush1.msra.mxu0 %v566
    %697 = vmatprep.subr.mxu0 0.0
    %698 = vmatpush1.msra.mxu0 %v567
    %699 = vmatprep.subr.mxu0 0.0
    %700 = vmatpush1.msra.mxu0 %v568
    %701 = vmatprep.subr.mxu0 0.0
    %702 = vmatpush1.msra.mxu0 0.0
    %703 = vmatprep.subr.mxu0 0.0
    %704 = vmatpush1.msra.mxu0 0.0
    %705 = vmatprep.subr.mxu0 0.0
    %706 = vmatpush1.msra.mxu0 0.0
    %707 = vmatprep.subr.mxu0 0.0
    %708 = vmatpush1.msra.mxu0 0.0
    %709 = vmatprep.subr.mxu0 0.0
    %710 = vmatpush1.msra.mxu0 0.0
    %711 = vmatprep.subr.mxu0 0.0
    %712 = vmatpush1.msra.mxu0 0.0
    %713 = vmatprep.subr.mxu0 0.0
    %714 = vmatpush1.msra.mxu0 0.0
    %715 = vmatprep.subr.mxu0 0.0
    %716 = vmatpush1.msra.mxu0 0.0
    %717 = vmatprep.subr.mxu0 0.0
    %718 = vmatpush1.msra.mxu0 0.0
    %719 = vmatprep.subr.mxu0 0.0
    %720 = vmatpush1.msra.mxu0 0.0
    %721 = vmatprep.subr.mxu0 0.0
    %722 = vmatpush1.msra.mxu0 0.0
    %723 = vmatprep.subr.mxu0 0.0
    %724 = vmatpush1.msra.mxu0 0.0
    %725 = vmatprep.subr.mxu0 0.0
    %726 = vmatpush1.msra.mxu0 0.0
    %727 = vmatprep.subr.mxu0 0.0
    %728 = vmatpush1.msra.mxu0 0.0
    %729 = vmatprep.subr.mxu0 0.0
    %730 = vmatpush1.msra.mxu0 0.0
    %731 = vmatprep.subr.mxu0 0.0
    %732 = vmatpush1.msra.mxu0 0.0
    %733 = vmatprep.mubr.f32.mxu0 0.0
    %734 = vmatmul.mubr.f32.gmra.mrb[0].mxu0 %v666
    %v735 = vpop.f32.mrb[0].mxu0
    %v736 = vadd.f32 0.0, %v735
    %v737 = vpop.f32.mrb[0].mxu0
    %738 = vdwg.mxu0
    %v739 = vadd.f32 %v668, %v736
    %v740 = vxor.u32 %v739, 2147483648
    %v741 = vmul.f32 %v740, 1.442695
    %v742 = vpow.pop %v741
    %v743 = vadd.f32 %v742, 1.0
    %v744 = vrcp.pop %v743
    %v745 = vmul.f32 1.0, %v744
    %746 = vrot.lane.b32.xlu0 %v745, 64
    %v747 = vpop.permute.xlu0 %746
    %v748 = vadd.f32 %v736, %v654
    %v749 = vmul.f32 %v747, %v748
    %v750 = vadd.f32 %v668, %v749
    %v751 = vtanh.pop %v750
    %752 = vrot.lane.b32.xlu0 %v745, 96
    %v753 = vpop.permute.xlu0 %752
    %754 = vrot.lane.b32.xlu0 %v751, 64
    %v755 = vpop.permute.xlu0 %754
    %v756 = vsub.f32 %v666, %v755
    %v757 = vmul.f32 %v753, %v756
    %v758 = vadd.f32 %v755, %v757
    %759 = vst [vmem:[#allocation2 + $0x8] sm:$0xff] %v758
    %v760 = vld [vmem:[#allocation3 + $0x10] sm:$0xff]
    %761 = vmatprep.subr.mxu0 0.0
    %762 = vmatpush1.msra.mxu0 %v553
    %763 = vmatprep.subr.mxu0 0.0
    %764 = vmatpush1.msra.mxu0 %v554
    %765 = vmatprep.subr.mxu0 0.0
    %766 = vmatpush1.msra.mxu0 %v555
    %767 = vmatprep.subr.mxu0 0.0
    %768 = vmatpush1.msra.mxu0 %v556
    %769 = vmatprep.subr.mxu0 0.0
    %770 = vmatpush1.msra.mxu0 %v557
    %771 = vmatprep.subr.mxu0 0.0
    %772 = vmatpush1.msra.mxu0 %v558
    %773 = vmatprep.subr.mxu0 0.0
    %774 = vmatpush1.msra.mxu0 %v559
    %775 = vmatprep.subr.mxu0 0.0
    %776 = vmatpush1.msra.mxu0 %v560
    %777 = vmatprep.subr.mxu0 0.0
    %778 = vmatpush1.msra.mxu0 %v561
    %779 = vmatprep.subr.mxu0 0.0
    %780 = vmatpush1.msra.mxu0 %v562
    %781 = vmatprep.subr.mxu0 0.0
    %782 = vmatpush1.msra.mxu0 %v563
    %783 = vmatprep.subr.mxu0 0.0
    %784 = vmatpush1.msra.mxu0 %v564
    %785 = vmatprep.subr.mxu0 0.0
    %786 = vmatpush1.msra.mxu0 %v565
    %787 = vmatprep.subr.mxu0 0.0
    %788 = vmatpush1.msra.mxu0 %v566
    %789 = vmatprep.subr.mxu0 0.0
    %790 = vmatpush1.msra.mxu0 %v567
    %791 = vmatprep.subr.mxu0 0.0
    %792 = vmatpush1.msra.mxu0 %v568
    %793 = vmatprep.subr.mxu0 0.0
    %794 = vmatpush1.msra.mxu0 0.0
    %795 = vmatprep.subr.mxu0 0.0
    %796 = vmatpush1.msra.mxu0 0.0
    %797 = vmatprep.subr.mxu0 0.0
    %798 = vmatpush1.msra.mxu0 0.0
    %799 = vmatprep.subr.mxu0 0.0
    %800 = vmatpush1.msra.mxu0 0.0
    %801 = vmatprep.subr.mxu0 0.0
    %802 = vmatpush1.msra.mxu0 0.0
    %803 = vmatprep.subr.mxu0 0.0
    %804 = vmatpush1.msra.mxu0 0.0
    %805 = vmatprep.subr.mxu0 0.0
    %806 = vmatpush1.msra.mxu0 0.0
    %807 = vmatprep.subr.mxu0 0.0
    %808 = vmatpush1.msra.mxu0 0.0
    %809 = vmatprep.subr.mxu0 0.0
    %810 = vmatpush1.msra.mxu0 0.0
    %811 = vmatprep.subr.mxu0 0.0
    %812 = vmatpush1.msra.mxu0 0.0
    %813 = vmatprep.subr.mxu0 0.0
    %814 = vmatpush1.msra.mxu0 0.0
    %815 = vmatprep.subr.mxu0 0.0
    %816 = vmatpush1.msra.mxu0 0.0
    %817 = vmatprep.subr.mxu0 0.0
    %818 = vmatpush1.msra.mxu0 0.0
    %819 = vmatprep.subr.mxu0 0.0
    %820 = vmatpush1.msra.mxu0 0.0
    %821 = vmatprep.subr.mxu0 0.0
    %822 = vmatpush1.msra.mxu0 0.0
    %823 = vmatprep.subr.mxu0 0.0
    %824 = vmatpush1.msra.mxu0 0.0
    %825 = vmatprep.mubr.f32.mxu0 0.0
    %826 = vmatmul.mubr.f32.gmra.mrb[0].mxu0 %v758
    %v827 = vpop.f32.mrb[0].mxu0
    %v828 = vadd.f32 0.0, %v827
    %v829 = vpop.f32.mrb[0].mxu0
    %830 = vdwg.mxu0
    %v831 = vadd.f32 %v760, %v828
    %v832 = vxor.u32 %v831, 2147483648
    %v833 = vmul.f32 %v832, 1.442695
    %v834 = vpow.pop %v833
    %v835 = vadd.f32 %v834, 1.0
    %v836 = vrcp.pop %v835
    %v837 = vmul.f32 1.0, %v836
    %838 = vrot.lane.b32.xlu0 %v837, 64
    %v839 = vpop.permute.xlu0 %838
    %v840 = vadd.f32 %v828, %v654
    %v841 = vmul.f32 %v839, %v840
    %v842 = vadd.f32 %v760, %v841
    %v843 = vtanh.pop %v842
    %844 = vrot.lane.b32.xlu0 %v837, 96
    %v845 = vpop.permute.xlu0 %844
    %846 = vrot.lane.b32.xlu0 %v843, 64
    %v847 = vpop.permute.xlu0 %846
    %v848 = vsub.f32 %v758, %v847
    %v849 = vmul.f32 %v845, %v848
    %v850 = vadd.f32 %v847, %v849
    %851 = vst [vmem:[#allocation2 + $0x10] sm:$0xff] %v850
    %v852 = vld [vmem:[#allocation3 + $0x18] sm:$0xff]
    %853 = vmatprep.subr.mxu0 0.0
    %854 = vmatpush1.msra.mxu0 %v553
    %855 = vmatprep.subr.mxu0 0.0
    %856 = vmatpush1.msra.mxu0 %v554
    %857 = vmatprep.subr.mxu0 0.0
    %858 = vmatpush1.msra.mxu0 %v555
    %859 = vmatprep.subr.mxu0 0.0
    %860 = vmatpush1.msra.mxu0 %v556
    %861 = vmatprep.subr.mxu0 0.0
    %862 = vmatpush1.msra.mxu0 %v557
    %863 = vmatprep.subr.mxu0 0.0
    %864 = vmatpush1.msra.mxu0 %v558
    %865 = vmatprep.subr.mxu0 0.0
    %866 = vmatpush1.msra.mxu0 %v559
    %867 = vmatprep.subr.mxu0 0.0
    %868 = vmatpush1.msra.mxu0 %v560
    %869 = vmatprep.subr.mxu0 0.0
    %870 = vmatpush1.msra.mxu0 %v561
    %871 = vmatprep.subr.mxu0 0.0
    %872 = vmatpush1.msra.mxu0 %v562
    %873 = vmatprep.subr.mxu0 0.0
    %874 = vmatpush1.msra.mxu0 %v563
    %875 = vmatprep.subr.mxu0 0.0
    %876 = vmatpush1.msra.mxu0 %v564
    %877 = vmatprep.subr.mxu0 0.0
    %878 = vmatpush1.msra.mxu0 %v565
    %879 = vmatprep.subr.mxu0 0.0
    %880 = vmatpush1.msra.mxu0 %v566
    %881 = vmatprep.subr.mxu0 0.0
    %882 = vmatpush1.msra.mxu0 %v567
    %883 = vmatprep.subr.mxu0 0.0
    %884 = vmatpush1.msra.mxu0 %v568
    %885 = vmatprep.subr.mxu0 0.0
    %886 = vmatpush1.msra.mxu0 0.0
    %887 = vmatprep.subr.mxu0 0.0
    %888 = vmatpush1.msra.mxu0 0.0
    %889 = vmatprep.subr.mxu0 0.0
    %890 = vmatpush1.msra.mxu0 0.0
    %891 = vmatprep.subr.mxu0 0.0
    %892 = vmatpush1.msra.mxu0 0.0
    %893 = vmatprep.subr.mxu0 0.0
    %894 = vmatpush1.msra.mxu0 0.0
    %895 = vmatprep.subr.mxu0 0.0
    %896 = vmatpush1.msra.mxu0 0.0
    %897 = vmatprep.subr.mxu0 0.0
    %898 = vmatpush1.msra.mxu0 0.0
    %899 = vmatprep.subr.mxu0 0.0
    %900 = vmatpush1.msra.mxu0 0.0
    %901 = vmatprep.subr.mxu0 0.0
    %902 = vmatpush1.msra.mxu0 0.0
    %903 = vmatprep.subr.mxu0 0.0
    %904 = vmatpush1.msra.mxu0 0.0
    %905 = vmatprep.subr.mxu0 0.0
    %906 = vmatpush1.msra.mxu0 0.0
    %907 = vmatprep.subr.mxu0 0.0
    %908 = vmatpush1.msra.mxu0 0.0
    %909 = vmatprep.subr.mxu0 0.0
    %910 = vmatpush1.msra.mxu0 0.0
    %911 = vmatprep.subr.mxu0 0.0
    %912 = vmatpush1.msra.mxu0 0.0
    %913 = vmatprep.subr.mxu0 0.0
    %914 = vmatpush1.msra.mxu0 0.0
    %915 = vmatprep.subr.mxu0 0.0
    %916 = vmatpush1.msra.mxu0 0.0
    %917 = vmatprep.mubr.f32.mxu0 0.0
    %918 = vmatmul.mubr.f32.gmra.mrb[0].mxu0 %v850
    %v919 = vpop.f32.mrb[0].mxu0
    %v920 = vadd.f32 0.0, %v919
    %v921 = vpop.f32.mrb[0].mxu0
    %922 = vdwg.mxu0
    %v923 = vadd.f32 %v852, %v920
    %v924 = vxor.u32 %v923, 2147483648
    %v925 = vmul.f32 %v924, 1.442695
    %v926 = vpow.pop %v925
    %v927 = vadd.f32 %v926, 1.0
    %v928 = vrcp.pop %v927
    %v929 = vmul.f32 1.0, %v928
    %930 = vrot.lane.b32.xlu0 %v929, 64
    %v931 = vpop.permute.xlu0 %930
    %v932 = vadd.f32 %v920, %v654
    %v933 = vmul.f32 %v931, %v932
    %v934 = vadd.f32 %v852, %v933
    %v935 = vtanh.pop %v934
    %936 = vrot.lane.b32.xlu0 %v929, 96
    %v937 = vpop.permute.xlu0 %936
    %938 = vrot.lane.b32.xlu0 %v935, 64
    %v939 = vpop.permute.xlu0 %938
    %v940 = vsub.f32 %v850, %v939
    %v941 = vmul.f32 %v937, %v940
    %v942 = vadd.f32 %v939, %v941
    %943 = vst [vmem:[#allocation2 + $0x18] sm:$0xff] %v942
    %v944 = vld [vmem:[#allocation3 + $0x20] sm:$0xff]
    %945 = vmatprep.subr.mxu0 0.0
    %946 = vmatpush1.msra.mxu0 %v553
    %947 = vmatprep.subr.mxu0 0.0
    %948 = vmatpush1.msra.mxu0 %v554
    %949 = vmatprep.subr.mxu0 0.0
    %950 = vmatpush1.msra.mxu0 %v555
    %951 = vmatprep.subr.mxu0 0.0
    %952 = vmatpush1.msra.mxu0 %v556
    %953 = vmatprep.subr.mxu0 0.0
    %954 = vmatpush1.msra.mxu0 %v557
    %955 = vmatprep.subr.mxu0 0.0
    %956 = vmatpush1.msra.mxu0 %v558
    %957 = vmatprep.subr.mxu0 0.0
    %958 = vmatpush1.msra.mxu0 %v559
    %959 = vmatprep.subr.mxu0 0.0
    %960 = vmatpush1.msra.mxu0 %v560
    %961 = vmatprep.subr.mxu0 0.0
    %962 = vmatpush1.msra.mxu0 %v561
    %963 = vmatprep.subr.mxu0 0.0
    %964 = vmatpush1.msra.mxu0 %v562
    %965 = vmatprep.subr.mxu0 0.0
    %966 = vmatpush1.msra.mxu0 %v563
    %967 = vmatprep.subr.mxu0 0.0
    %968 = vmatpush1.msra.mxu0 %v564
    %969 = vmatprep.subr.mxu0 0.0
    %970 = vmatpush1.msra.mxu0 %v565
    %971 = vmatprep.subr.mxu0 0.0
    %972 = vmatpush1.msra.mxu0 %v566
    %973 = vmatprep.subr.mxu0 0.0
    %974 = vmatpush1.msra.mxu0 %v567
    %975 = vmatprep.subr.mxu0 0.0
    %976 = vmatpush1.msra.mxu0 %v568
    %977 = vmatprep.subr.mxu0 0.0
    %978 = vmatpush1.msra.mxu0 0.0
    %979 = vmatprep.subr.mxu0 0.0
    %980 = vmatpush1.msra.mxu0 0.0
    %981 = vmatprep.subr.mxu0 0.0
    %982 = vmatpush1.msra.mxu0 0.0
    %983 = vmatprep.subr.mxu0 0.0
    %984 = vmatpush1.msra.mxu0 0.0
    %985 = vmatprep.subr.mxu0 0.0
    %986 = vmatpush1.msra.mxu0 0.0
    %987 = vmatprep.subr.mxu0 0.0
    %988 = vmatpush1.msra.mxu0 0.0
    %989 = vmatprep.subr.mxu0 0.0
    %990 = vmatpush1.msra.mxu0 0.0
    %991 = vmatprep.subr.mxu0 0.0
    %992 = vmatpush1.msra.mxu0 0.0
    %993 = vmatprep.subr.mxu0 0.0
    %994 = vmatpush1.msra.mxu0 0.0
    %995 = vmatprep.subr.mxu0 0.0
    %996 = vmatpush1.msra.mxu0 0.0
    %997 = vmatprep.subr.mxu0 0.0
    %998 = vmatpush1.msra.mxu0 0.0
    %999 = vmatprep.subr.mxu0 0.0
    %1000 = vmatpush1.msra.mxu0 0.0
    %1001 = vmatprep.subr.mxu0 0.0
    %1002 = vmatpush1.msra.mxu0 0.0
    %1003 = vmatprep.subr.mxu0 0.0
    %1004 = vmatpush1.msra.mxu0 0.0
    %1005 = vmatprep.subr.mxu0 0.0
    %1006 = vmatpush1.msra.mxu0 0.0
    %1007 = vmatprep.subr.mxu0 0.0
    %1008 = vmatpush1.msra.mxu0 0.0
    %1009 = vmatprep.mubr.f32.mxu0 0.0
    %1010 = vmatmul.mubr.f32.gmra.mrb[0].mxu0 %v942
    %v1011 = vpop.f32.mrb[0].mxu0
    %v1012 = vadd.f32 0.0, %v1011
    %v1013 = vpop.f32.mrb[0].mxu0
    %1014 = vdwg.mxu0
    %v1015 = vadd.f32 %v944, %v1012
    %v1016 = vxor.u32 %v1015, 2147483648
    %v1017 = vmul.f32 %v1016, 1.442695
    %v1018 = vpow.pop %v1017
    %v1019 = vadd.f32 %v1018, 1.0
    %v1020 = vrcp.pop %v1019
    %v1021 = vmul.f32 1.0, %v1020
    %1022 = vrot.lane.b32.xlu0 %v1021, 64
    %v1023 = vpop.permute.xlu0 %1022
    %v1024 = vadd.f32 %v1012, %v654
    %v1025 = vmul.f32 %v1023, %v1024
    %v1026 = vadd.f32 %v944, %v1025
    %v1027 = vtanh.pop %v1026
    %1028 = vrot.lane.b32.xlu0 %v1021, 96
    %v1029 = vpop.permute.xlu0 %1028
    %1030 = vrot.lane.b32.xlu0 %v1027, 64
    %v1031 = vpop.permute.xlu0 %1030
    %v1032 = vsub.f32 %v942, %v1031
    %v1033 = vmul.f32 %v1029, %v1032
    %v1034 = vadd.f32 %v1031, %v1033
    %1035 = vst [vmem:[#allocation2 + $0x20] sm:$0xff] %v1034
    %v1036 = vld [vmem:[#allocation3 + $0x28] sm:$0xff]
    %1037 = vmatprep.subr.mxu0 0.0
    %1038 = vmatpush1.msra.mxu0 %v553
    %1039 = vmatprep.subr.mxu0 0.0
    %1040 = vmatpush1.msra.mxu0 %v554
    %1041 = vmatprep.subr.mxu0 0.0
    %1042 = vmatpush1.msra.mxu0 %v555
    %1043 = vmatprep.subr.mxu0 0.0
    %1044 = vmatpush1.msra.mxu0 %v556
    %1045 = vmatprep.subr.mxu0 0.0
    %1046 = vmatpush1.msra.mxu0 %v557
    %1047 = vmatprep.subr.mxu0 0.0
    %1048 = vmatpush1.msra.mxu0 %v558
    %1049 = vmatprep.subr.mxu0 0.0
    %1050 = vmatpush1.msra.mxu0 %v559
    %1051 = vmatprep.subr.mxu0 0.0
    %1052 = vmatpush1.msra.mxu0 %v560
    %1053 = vmatprep.subr.mxu0 0.0
    %1054 = vmatpush1.msra.mxu0 %v561
    %1055 = vmatprep.subr.mxu0 0.0
    %1056 = vmatpush1.msra.mxu0 %v562
    %1057 = vmatprep.subr.mxu0 0.0
    %1058 = vmatpush1.msra.mxu0 %v563
    %1059 = vmatprep.subr.mxu0 0.0
    %1060 = vmatpush1.msra.mxu0 %v564
    %1061 = vmatprep.subr.mxu0 0.0
    %1062 = vmatpush1.msra.mxu0 %v565
    %1063 = vmatprep.subr.mxu0 0.0
    %1064 = vmatpush1.msra.mxu0 %v566
    %1065 = vmatprep.subr.mxu0 0.0
    %1066 = vmatpush1.msra.mxu0 %v567
    %1067 = vmatprep.subr.mxu0 0.0
    %1068 = vmatpush1.msra.mxu0 %v568
    %1069 = vmatprep.subr.mxu0 0.0
    %1070 = vmatpush1.msra.mxu0 0.0
    %1071 = vmatprep.subr.mxu0 0.0
    %1072 = vmatpush1.msra.mxu0 0.0
    %1073 = vmatprep.subr.mxu0 0.0
    %1074 = vmatpush1.msra.mxu0 0.0
    %1075 = vmatprep.subr.mxu0 0.0
    %1076 = vmatpush1.msra.mxu0 0.0
    %1077 = vmatprep.subr.mxu0 0.0
    %1078 = vmatpush1.msra.mxu0 0.0
    %1079 = vmatprep.subr.mxu0 0.0
    %1080 = vmatpush1.msra.mxu0 0.0
    %1081 = vmatprep.subr.mxu0 0.0
    %1082 = vmatpush1.msra.mxu0 0.0
    %1083 = vmatprep.subr.mxu0 0.0
    %1084 = vmatpush1.msra.mxu0 0.0
    %1085 = vmatprep.subr.mxu0 0.0
    %1086 = vmatpush1.msra.mxu0 0.0
    %1087 = vmatprep.subr.mxu0 0.0
    %1088 = vmatpush1.msra.mxu0 0.0
    %1089 = vmatprep.subr.mxu0 0.0
    %1090 = vmatpush1.msra.mxu0 0.0
    %1091 = vmatprep.subr.mxu0 0.0
    %1092 = vmatpush1.msra.mxu0 0.0
    %1093 = vmatprep.subr.mxu0 0.0
    %1094 = vmatpush1.msra.mxu0 0.0
    %1095 = vmatprep.subr.mxu0 0.0
    %1096 = vmatpush1.msra.mxu0 0.0
    %1097 = vmatprep.subr.mxu0 0.0
    %1098 = vmatpush1.msra.mxu0 0.0
    %1099 = vmatprep.subr.mxu0 0.0
    %1100 = vmatpush1.msra.mxu0 0.0
    %1101 = vmatprep.mubr.f32.mxu0 0.0
    %1102 = vmatmul.mubr.f32.gmra.mrb[0].mxu0 %v1034
    %v1103 = vpop.f32.mrb[0].mxu0
    %v1104 = vadd.f32 0.0, %v1103
    %v1105 = vpop.f32.mrb[0].mxu0
    %1106 = vdwg.mxu0
    %v1107 = vadd.f32 %v1036, %v1104
    %v1108 = vxor.u32 %v1107, 2147483648
    %v1109 = vmul.f32 %v1108, 1.442695
    %v1110 = vpow.pop %v1109
    %v1111 = vadd.f32 %v1110, 1.0
    %v1112 = vrcp.pop %v1111
    %v1113 = vmul.f32 1.0, %v1112
    %1114 = vrot.lane.b32.xlu0 %v1113, 64
    %v1115 = vpop.permute.xlu0 %1114
    %v1116 = vadd.f32 %v1104, %v654
    %v1117 = vmul.f32 %v1115, %v1116
    %v1118 = vadd.f32 %v1036, %v1117
    %v1119 = vtanh.pop %v1118
    %1120 = vrot.lane.b32.xlu0 %v1113, 96
    %v1121 = vpop.permute.xlu0 %1120
    %1122 = vrot.lane.b32.xlu0 %v1119, 64
    %v1123 = vpop.permute.xlu0 %1122
    %v1124 = vsub.f32 %v1034, %v1123
    %v1125 = vmul.f32 %v1121, %v1124
    %v1126 = vadd.f32 %v1123, %v1125
    %1127 = vst [vmem:[#allocation2 + $0x28] sm:$0xff] %v1126
    %v1128 = vld [vmem:[#allocation3 + $0x30] sm:$0xff]
    %1129 = vmatprep.subr.mxu0 0.0
    %1130 = vmatpush1.msra.mxu0 %v553
    %1131 = vmatprep.subr.mxu0 0.0
    %1132 = vmatpush1.msra.mxu0 %v554
    %1133 = vmatprep.subr.mxu0 0.0
    %1134 = vmatpush1.msra.mxu0 %v555
    %1135 = vmatprep.subr.mxu0 0.0
    %1136 = vmatpush1.msra.mxu0 %v556
    %1137 = vmatprep.subr.mxu0 0.0
    %1138 = vmatpush1.msra.mxu0 %v557
    %1139 = vmatprep.subr.mxu0 0.0
    %1140 = vmatpush1.msra.mxu0 %v558
    %1141 = vmatprep.subr.mxu0 0.0
    %1142 = vmatpush1.msra.mxu0 %v559
    %1143 = vmatprep.subr.mxu0 0.0
    %1144 = vmatpush1.msra.mxu0 %v560
    %1145 = vmatprep.subr.mxu0 0.0
    %1146 = vmatpush1.msra.mxu0 %v561
    %1147 = vmatprep.subr.mxu0 0.0
    %1148 = vmatpush1.msra.mxu0 %v562
    %1149 = vmatprep.subr.mxu0 0.0
    %1150 = vmatpush1.msra.mxu0 %v563
    %1151 = vmatprep.subr.mxu0 0.0
    %1152 = vmatpush1.msra.mxu0 %v564
    %1153 = vmatprep.subr.mxu0 0.0
    %1154 = vmatpush1.msra.mxu0 %v565
    %1155 = vmatprep.subr.mxu0 0.0
    %1156 = vmatpush1.msra.mxu0 %v566
    %1157 = vmatprep.subr.mxu0 0.0
    %1158 = vmatpush1.msra.mxu0 %v567
    %1159 = vmatprep.subr.mxu0 0.0
    %1160 = vmatpush1.msra.mxu0 %v568
    %1161 = vmatprep.subr.mxu0 0.0
    %1162 = vmatpush1.msra.mxu0 0.0
    %1163 = vmatprep.subr.mxu0 0.0
    %1164 = vmatpush1.msra.mxu0 0.0
    %1165 = vmatprep.subr.mxu0 0.0
    %1166 = vmatpush1.msra.mxu0 0.0
    %1167 = vmatprep.subr.mxu0 0.0
    %1168 = vmatpush1.msra.mxu0 0.0
    %1169 = vmatprep.subr.mxu0 0.0
    %1170 = vmatpush1.msra.mxu0 0.0
    %1171 = vmatprep.subr.mxu0 0.0
    %1172 = vmatpush1.msra.mxu0 0.0
    %1173 = vmatprep.subr.mxu0 0.0
    %1174 = vmatpush1.msra.mxu0 0.0
    %1175 = vmatprep.subr.mxu0 0.0
    %1176 = vmatpush1.msra.mxu0 0.0
    %1177 = vmatprep.subr.mxu0 0.0
    %1178 = vmatpush1.msra.mxu0 0.0
    %1179 = vmatprep.subr.mxu0 0.0
    %1180 = vmatpush1.msra.mxu0 0.0
    %1181 = vmatprep.subr.mxu0 0.0
    %1182 = vmatpush1.msra.mxu0 0.0
    %1183 = vmatprep.subr.mxu0 0.0
    %1184 = vmatpush1.msra.mxu0 0.0
    %1185 = vmatprep.subr.mxu0 0.0
    %1186 = vmatpush1.msra.mxu0 0.0
    %1187 = vmatprep.subr.mxu0 0.0
    %1188 = vmatpush1.msra.mxu0 0.0
    %1189 = vmatprep.subr.mxu0 0.0
    %1190 = vmatpush1.msra.mxu0 0.0
    %1191 = vmatprep.subr.mxu0 0.0
    %1192 = vmatpush1.msra.mxu0 0.0
    %1193 = vmatprep.mubr.f32.mxu0 0.0
    %1194 = vmatmul.mubr.f32.gmra.mrb[0].mxu0 %v1126
    %v1195 = vpop.f32.mrb[0].mxu0
    %v1196 = vadd.f32 0.0, %v1195
    %v1197 = vpop.f32.mrb[0].mxu0
    %1198 = vdwg.mxu0
    %v1199 = vadd.f32 %v1128, %v1196
    %v1200 = vxor.u32 %v1199, 2147483648
    %v1201 = vmul.f32 %v1200, 1.442695
    %v1202 = vpow.pop %v1201
    %v1203 = vadd.f32 %v1202, 1.0
    %v1204 = vrcp.pop %v1203
    %v1205 = vmul.f32 1.0, %v1204
    %1206 = vrot.lane.b32.xlu0 %v1205, 64
    %v1207 = vpop.permute.xlu0 %1206
    %v1208 = vadd.f32 %v1196, %v654
    %v1209 = vmul.f32 %v1207, %v1208
    %v1210 = vadd.f32 %v1128, %v1209
    %v1211 = vtanh.pop %v1210
    %1212 = vrot.lane.b32.xlu0 %v1205, 96
    %v1213 = vpop.permute.xlu0 %1212
    %1214 = vrot.lane.b32.xlu0 %v1211, 64
    %v1215 = vpop.permute.xlu0 %1214
    %v1216 = vsub.f32 %v1126, %v1215
    %v1217 = vmul.f32 %v1213, %v1216
    %v1218 = vadd.f32 %v1215, %v1217
    %1219 = vst [vmem:[#allocation2 + $0x30] sm:$0xff] %v1218
    %v1220 = vld [vmem:[#allocation3 + $0x38] sm:$0xff]
    %1221 = vmatprep.subr.mxu0 0.0
    %1222 = vmatpush1.msra.mxu0 %v553
    %1223 = vmatprep.subr.mxu0 0.0
    %1224 = vmatpush1.msra.mxu0 %v554
    %1225 = vmatprep.subr.mxu0 0.0
    %1226 = vmatpush1.msra.mxu0 %v555
    %1227 = vmatprep.subr.mxu0 0.0
    %1228 = vmatpush1.msra.mxu0 %v556
    %1229 = vmatprep.subr.mxu0 0.0
    %1230 = vmatpush1.msra.mxu0 %v557
    %1231 = vmatprep.subr.mxu0 0.0
    %1232 = vmatpush1.msra.mxu0 %v558
    %1233 = vmatprep.subr.mxu0 0.0
    %1234 = vmatpush1.msra.mxu0 %v559
    %1235 = vmatprep.subr.mxu0 0.0
    %1236 = vmatpush1.msra.mxu0 %v560
    %1237 = vmatprep.subr.mxu0 0.0
    %1238 = vmatpush1.msra.mxu0 %v561
    %1239 = vmatprep.subr.mxu0 0.0
    %1240 = vmatpush1.msra.mxu0 %v562
    %1241 = vmatprep.subr.mxu0 0.0
    %1242 = vmatpush1.msra.mxu0 %v563
    %1243 = vmatprep.subr.mxu0 0.0
    %1244 = vmatpush1.msra.mxu0 %v564
    %1245 = vmatprep.subr.mxu0 0.0
    %1246 = vmatpush1.msra.mxu0 %v565
    %1247 = vmatprep.subr.mxu0 0.0
    %1248 = vmatpush1.msra.mxu0 %v566
    %1249 = vmatprep.subr.mxu0 0.0
    %1250 = vmatpush1.msra.mxu0 %v567
    %1251 = vmatprep.subr.mxu0 0.0
    %1252 = vmatpush1.msra.mxu0 %v568
    %1253 = vmatprep.subr.mxu0 0.0
    %1254 = vmatpush1.msra.mxu0 0.0
    %1255 = vmatprep.subr.mxu0 0.0
    %1256 = vmatpush1.msra.mxu0 0.0
    %1257 = vmatprep.subr.mxu0 0.0
    %1258 = vmatpush1.msra.mxu0 0.0
    %1259 = vmatprep.subr.mxu0 0.0
    %1260 = vmatpush1.msra.mxu0 0.0
    %1261 = vmatprep.subr.mxu0 0.0
    %1262 = vmatpush1.msra.mxu0 0.0
    %1263 = vmatprep.subr.mxu0 0.0
    %1264 = vmatpush1.msra.mxu0 0.0
    %1265 = vmatprep.subr.mxu0 0.0
    %1266 = vmatpush1.msra.mxu0 0.0
    %1267 = vmatprep.subr.mxu0 0.0
    %1268 = vmatpush1.msra.mxu0 0.0
    %1269 = vmatprep.subr.mxu0 0.0
    %1270 = vmatpush1.msra.mxu0 0.0
    %1271 = vmatprep.subr.mxu0 0.0
    %1272 = vmatpush1.msra.mxu0 0.0
    %1273 = vmatprep.subr.mxu0 0.0
    %1274 = vmatpush1.msra.mxu0 0.0
    %1275 = vmatprep.subr.mxu0 0.0
    %1276 = vmatpush1.msra.mxu0 0.0
    %1277 = vmatprep.subr.mxu0 0.0
    %1278 = vmatpush1.msra.mxu0 0.0
    %1279 = vmatprep.subr.mxu0 0.0
    %1280 = vmatpush1.msra.mxu0 0.0
    %1281 = vmatprep.subr.mxu0 0.0
    %1282 = vmatpush1.msra.mxu0 0.0
    %1283 = vmatprep.subr.mxu0 0.0
    %1284 = vmatpush1.msra.mxu0 0.0
    %1285 = vmatprep.mubr.f32.mxu0 0.0
    %1286 = vmatmul.mubr.f32.gmra.mrb[0].mxu0 %v1218
    %v1287 = vpop.f32.mrb[0].mxu0
    %v1288 = vadd.f32 0.0, %v1287
    %v1289 = vpop.f32.mrb[0].mxu0
    %1290 = vdwg.mxu0
    %v1291 = vadd.f32 %v1220, %v1288
    %v1292 = vxor.u32 %v1291, 2147483648
    %v1293 = vmul.f32 %v1292, 1.442695
    %v1294 = vpow.pop %v1293
    %v1295 = vadd.f32 %v1294, 1.0
    %v1296 = vrcp.pop %v1295
    %v1297 = vmul.f32 1.0, %v1296
    %1298 = vrot.lane.b32.xlu0 %v1297, 64
    %v1299 = vpop.permute.xlu0 %1298
    %v1300 = vadd.f32 %v1288, %v654
    %v1301 = vmul.f32 %v1299, %v1300
    %v1302 = vadd.f32 %v1220, %v1301
    %v1303 = vtanh.pop %v1302
    %1304 = vrot.lane.b32.xlu0 %v1297, 96
    %v1305 = vpop.permute.xlu0 %1304
    %1306 = vrot.lane.b32.xlu0 %v1303, 64
    %v1307 = vpop.permute.xlu0 %1306
    %v1308 = vsub.f32 %v1218, %v1307
    %v1309 = vmul.f32 %v1305, %v1308
    %v1310 = vadd.f32 %v1307, %v1309
    %1311 = vst [vmem:[#allocation2 + $0x38] sm:$0xff] %v1310
    %v1312 = vld [vmem:[#allocation2] sm:$0xff]
    %v1313 = vld [vmem:[#allocation2 + $0x8] sm:$0xff]
    %v1314 = vld [vmem:[#allocation2 + $0x10] sm:$0xff]
    %v1315 = vld [vmem:[#allocation2 + $0x18] sm:$0xff]
    %v1316 = vld [vmem:[#allocation2 + $0x20] sm:$0xff]
    %v1317 = vld [vmem:[#allocation2 + $0x28] sm:$0xff]
    %v1318 = vld [vmem:[#allocation2 + $0x30] sm:$0xff]
    %v1319 = vld [vmem:[#allocation2 + $0x38] sm:$0xff]
    %v1320 = vld [vmem:[#allocation11] sm:$0xff]
    %v1321 = vld [vmem:[#allocation11 + $0x8] sm:$0xff]
    %v1322 = vld [vmem:[#allocation11 + $0x10] sm:$0xff]
    %v1323 = vld [vmem:[#allocation11 + $0x18] sm:$0xff]
    %v1324 = vld [vmem:[#allocation11 + $0x20] sm:$0xff]
    %v1325 = vld [vmem:[#allocation11 + $0x28] sm:$0xff]
    %v1326 = vld [vmem:[#allocation11 + $0x30] sm:$0xff]
    %v1327 = vld [vmem:[#allocation11 + $0x38] sm:$0xff]
    %v1328 = vld [vmem:[#allocation11 + $0x40] sm:$0xff]
    %v1329 = vld [vmem:[#allocation11 + $0x48] sm:$0xff]
    %v1330 = vld [vmem:[#allocation11 + $0x50] sm:$0xff]
    %v1331 = vld [vmem:[#allocation11 + $0x58] sm:$0xff]
    %v1332 = vld [vmem:[#allocation11 + $0x60] sm:$0xff]
    %v1333 = vld [vmem:[#allocation11 + $0x68] sm:$0xff]
    %v1334 = vld [vmem:[#allocation11 + $0x70] sm:$0xff]
    %v1335 = vld [vmem:[#allocation11 + $0x78] sm:$0xff]
    %v1336 = vld [vmem:[%s9] sm:$0x1]
    %v1338 = vlaneseq
    %v1339 = vshrl.u32 %v1338, 7
    %v1340 = vsub.s32 0, %v1339
    %v1341 = vrot.slane %v1336, %v1340
    %1343 = vmatprep.subr.mxu0 0.0
    %1344 = vmatpush1.msra.mxu0 %v1320
    %1345 = vmatprep.subr.mxu0 0.0
    %1346 = vmatpush1.msra.mxu0 %v1321
    %1347 = vmatprep.subr.mxu0 0.0
    %1348 = vmatpush1.msra.mxu0 %v1322
    %1349 = vmatprep.subr.mxu0 0.0
    %1350 = vmatpush1.msra.mxu0 %v1323
    %1351 = vmatprep.subr.mxu0 0.0
    %1352 = vmatpush1.msra.mxu0 %v1324
    %1353 = vmatprep.subr.mxu0 0.0
    %1354 = vmatpush1.msra.mxu0 %v1325
    %1355 = vmatprep.subr.mxu0 0.0
    %1356 = vmatpush1.msra.mxu0 %v1326
    %1357 = vmatprep.subr.mxu0 0.0
    %1358 = vmatpush1.msra.mxu0 %v1327
    %1359 = vmatprep.subr.mxu0 0.0
    %1360 = vmatpush1.msra.mxu0 %v1328
    %1361 = vmatprep.subr.mxu0 0.0
    %1362 = vmatpush1.msra.mxu0 %v1329
    %1363 = vmatprep.subr.mxu0 0.0
    %1364 = vmatpush1.msra.mxu0 %v1330
    %1365 = vmatprep.subr.mxu0 0.0
    %1366 = vmatpush1.msra.mxu0 %v1331
    %1367 = vmatprep.subr.mxu0 0.0
    %1368 = vmatpush1.msra.mxu0 %v1332
    %1369 = vmatprep.subr.mxu0 0.0
    %1370 = vmatpush1.msra.mxu0 %v1333
    %1371 = vmatprep.subr.mxu0 0.0
    %1372 = vmatpush1.msra.mxu0 %v1334
    %1373 = vmatprep.subr.mxu0 0.0
    %1374 = vmatpush1.msra.mxu0 %v1335
    %1375 = vmatprep.subr.mxu0 0.0
    %1376 = vmatpush1.msra.mxu0 0.0
    %1377 = vmatprep.subr.mxu0 0.0
    %1378 = vmatpush1.msra.mxu0 0.0
    %1379 = vmatprep.subr.mxu0 0.0
    %1380 = vmatpush1.msra.mxu0 0.0
    %1381 = vmatprep.subr.mxu0 0.0
    %1382 = vmatpush1.msra.mxu0 0.0
    %1383 = vmatprep.subr.mxu0 0.0
    %1384 = vmatpush1.msra.mxu0 0.0
    %1385 = vmatprep.subr.mxu0 0.0
    %1386 = vmatpush1.msra.mxu0 0.0
    %1387 = vmatprep.subr.mxu0 0.0
    %1388 = vmatpush1.msra.mxu0 0.0
    %1389 = vmatprep.subr.mxu0 0.0
    %1390 = vmatpush1.msra.mxu0 0.0
    %1391 = vmatprep.subr.mxu0 0.0
    %1392 = vmatpush1.msra.mxu0 0.0
    %1393 = vmatprep.subr.mxu0 0.0
    %1394 = vmatpush1.msra.mxu0 0.0
    %1395 = vmatprep.subr.mxu0 0.0
    %1396 = vmatpush1.msra.mxu0 0.0
    %1397 = vmatprep.subr.mxu0 0.0
    %1398 = vmatpush1.msra.mxu0 0.0
    %1399 = vmatprep.subr.mxu0 0.0
    %1400 = vmatpush1.msra.mxu0 0.0
    %1401 = vmatprep.subr.mxu0 0.0
    %1402 = vmatpush1.msra.mxu0 0.0
    %1403 = vmatprep.subr.mxu0 0.0
    %1404 = vmatpush1.msra.mxu0 0.0
    %1405 = vmatprep.subr.mxu0 0.0
    %1406 = vmatpush1.msra.mxu0 0.0
    %1407 = vmatprep.mubr.f32.mxu0 0.0
    %1408 = vmatmul.mubr.f32.gmra.mrb[0].mxu0 %v1312
    %v1409 = vpop.f32.mrb[0].mxu0
    %v1410 = vadd.f32 %v1341, %v1409
    %v1411 = vpop.f32.mrb[0].mxu0
    %1412 = vmatprep.mubr.f32.mxu0 0.0
    %1413 = vmatmul.mubr.f32.gmra.mrb[0].mxu0 %v1313
    %v1414 = vpop.f32.mrb[0].mxu0
    %v1415 = vadd.f32 %v1341, %v1414
    %v1416 = vpop.f32.mrb[0].mxu0
    %1417 = vmatprep.mubr.f32.mxu0 0.0
    %1418 = vmatmul.mubr.f32.gmra.mrb[0].mxu0 %v1314
    %v1419 = vpop.f32.mrb[0].mxu0
    %v1420 = vadd.f32 %v1341, %v1419
    %v1421 = vpop.f32.mrb[0].mxu0
    %1422 = vmatprep.mubr.f32.mxu0 0.0
    %1423 = vmatmul.mubr.f32.gmra.mrb[0].mxu0 %v1315
    %v1424 = vpop.f32.mrb[0].mxu0
    %v1425 = vadd.f32 %v1341, %v1424
    %v1426 = vpop.f32.mrb[0].mxu0
    %1427 = vmatprep.mubr.f32.mxu0 0.0
    %1428 = vmatmul.mubr.f32.gmra.mrb[0].mxu0 %v1316
    %v1429 = vpop.f32.mrb[0].mxu0
    %v1430 = vadd.f32 %v1341, %v1429
    %v1431 = vpop.f32.mrb[0].mxu0
    %1432 = vmatprep.mubr.f32.mxu0 0.0
    %1433 = vmatmul.mubr.f32.gmra.mrb[0].mxu0 %v1317
    %v1434 = vpop.f32.mrb[0].mxu0
    %v1435 = vadd.f32 %v1341, %v1434
    %v1436 = vpop.f32.mrb[0].mxu0
    %1437 = vmatprep.mubr.f32.mxu0 0.0
    %1438 = vmatmul.mubr.f32.gmra.mrb[0].mxu0 %v1318
    %v1439 = vpop.f32.mrb[0].mxu0
    %v1440 = vadd.f32 %v1341, %v1439
    %v1441 = vpop.f32.mrb[0].mxu0
    %1442 = vmatprep.mubr.f32.mxu0 0.0
    %1443 = vmatmul.mubr.f32.gmra.mrb[0].mxu0 %v1319
    %v1444 = vpop.f32.mrb[0].mxu0
    %v1445 = vadd.f32 %v1341, %v1444
    %v1446 = vpop.f32.mrb[0].mxu0
    %1447 = vdwg.mxu0
    %1448 = vst [vmem:[#allocation3] sm:$0xff] %v1410
    %1449 = vst [vmem:[#allocation3 + $0x8] sm:$0xff] %v1415
    %1450 = vst [vmem:[#allocation3 + $0x10] sm:$0xff] %v1420
    %1451 = vst [vmem:[#allocation3 + $0x18] sm:$0xff] %v1425
    %1452 = vst [vmem:[#allocation3 + $0x20] sm:$0xff] %v1430
    %1453 = vst [vmem:[#allocation3 + $0x28] sm:$0xff] %v1435
    %1454 = vst [vmem:[#allocation3 + $0x30] sm:$0xff] %v1440
    %1455 = vst [vmem:[#allocation3 + $0x38] sm:$0xff] %v1445
    %v1456 = vld [vmem:[#allocation13] sm:$0xff]
    %v1457 = vld [vmem:[#allocation13 + $0x8] sm:$0xff]
    %v1458 = vld [vmem:[#allocation13 + $0x10] sm:$0xff]
    %v1459 = vld [vmem:[#allocation13 + $0x18] sm:$0xff]
    %v1460 = vld [vmem:[#allocation13 + $0x20] sm:$0xff]
    %v1461 = vld [vmem:[#allocation13 + $0x28] sm:$0xff]
    %v1462 = vld [vmem:[#allocation13 + $0x30] sm:$0xff]
    %v1463 = vld [vmem:[#allocation13 + $0x38] sm:$0xff]
    %v1464 = vld [vmem:[#allocation13 + $0x40] sm:$0xff]
    %v1465 = vld [vmem:[#allocation13 + $0x48] sm:$0xff]
    %v1466 = vld [vmem:[#allocation13 + $0x50] sm:$0xff]
    %v1467 = vld [vmem:[#allocation13 + $0x58] sm:$0xff]
    %v1468 = vld [vmem:[#allocation13 + $0x60] sm:$0xff]
    %v1469 = vld [vmem:[#allocation13 + $0x68] sm:$0xff]
    %v1470 = vld [vmem:[#allocation13 + $0x70] sm:$0xff]
    %v1471 = vld [vmem:[#allocation13 + $0x78] sm:$0xff]
    %v1472 = vld [vmem:[%s10] sm:$0x1]
    %v1473 = vld [vmem:[#allocation3] sm:$0xff]
    %1474 = vmatprep.subr.mxu0 0.0
    %1475 = vmatpush1.msra.mxu0 %v1456
    %1476 = vmatprep.subr.mxu0 0.0
    %1477 = vmatpush1.msra.mxu0 %v1457
    %1478 = vmatprep.subr.mxu0 0.0
    %1479 = vmatpush1.msra.mxu0 %v1458
    %1480 = vmatprep.subr.mxu0 0.0
    %1481 = vmatpush1.msra.mxu0 %v1459
    %1482 = vmatprep.subr.mxu0 0.0
    %1483 = vmatpush1.msra.mxu0 %v1460
    %1484 = vmatprep.subr.mxu0 0.0
    %1485 = vmatpush1.msra.mxu0 %v1461
    %1486 = vmatprep.subr.mxu0 0.0
    %1487 = vmatpush1.msra.mxu0 %v1462
    %1488 = vmatprep.subr.mxu0 0.0
    %1489 = vmatpush1.msra.mxu0 %v1463
    %1490 = vmatprep.subr.mxu0 0.0
    %1491 = vmatpush1.msra.mxu0 %v1464
    %1492 = vmatprep.subr.mxu0 0.0
    %1493 = vmatpush1.msra.mxu0 %v1465
    %1494 = vmatprep.subr.mxu0 0.0
    %1495 = vmatpush1.msra.mxu0 %v1466
    %1496 = vmatprep.subr.mxu0 0.0
    %1497 = vmatpush1.msra.mxu0 %v1467
    %1498 = vmatprep.subr.mxu0 0.0
    %1499 = vmatpush1.msra.mxu0 %v1468
    %1500 = vmatprep.subr.mxu0 0.0
    %1501 = vmatpush1.msra.mxu0 %v1469
    %1502 = vmatprep.subr.mxu0 0.0
    %1503 = vmatpush1.msra.mxu0 %v1470
    %1504 = vmatprep.subr.mxu0 0.0
    %1505 = vmatpush1.msra.mxu0 %v1471
    %1506 = vmatprep.subr.mxu0 0.0
    %1507 = vmatpush1.msra.mxu0 0.0
    %1508 = vmatprep.subr.mxu0 0.0
    %1509 = vmatpush1.msra.mxu0 0.0
    %1510 = vmatprep.subr.mxu0 0.0
    %1511 = vmatpush1.msra.mxu0 0.0
    %1512 = vmatprep.subr.mxu0 0.0
    %1513 = vmatpush1.msra.mxu0 0.0
    %1514 = vmatprep.subr.mxu0 0.0
    %1515 = vmatpush1.msra.mxu0 0.0
    %1516 = vmatprep.subr.mxu0 0.0
    %1517 = vmatpush1.msra.mxu0 0.0
    %1518 = vmatprep.subr.mxu0 0.0
    %1519 = vmatpush1.msra.mxu0 0.0
    %1520 = vmatprep.subr.mxu0 0.0
    %1521 = vmatpush1.msra.mxu0 0.0
    %1522 = vmatprep.subr.mxu0 0.0
    %1523 = vmatpush1.msra.mxu0 0.0
    %1524 = vmatprep.subr.mxu0 0.0
    %1525 = vmatpush1.msra.mxu0 0.0
    %1526 = vmatprep.subr.mxu0 0.0
    %1527 = vmatpush1.msra.mxu0 0.0
    %1528 = vmatprep.subr.mxu0 0.0
    %1529 = vmatpush1.msra.mxu0 0.0
    %1530 = vmatprep.subr.mxu0 0.0
    %1531 = vmatpush1.msra.mxu0 0.0
    %1532 = vmatprep.subr.mxu0 0.0
    %1533 = vmatpush1.msra.mxu0 0.0
    %1534 = vmatprep.subr.mxu0 0.0
    %1535 = vmatpush1.msra.mxu0 0.0
    %1536 = vmatprep.subr.mxu0 0.0
    %1537 = vmatpush1.msra.mxu0 0.0
    %1538 = vmatprep.mubr.f32.mxu0 0.0
    %1539 = vmatmul.mubr.f32.gmra.mrb[0].mxu0 0.0
    %v1540 = vpop.f32.mrb[0].mxu0
    %v1541 = vadd.f32 0.0, %v1540
    %v1542 = vpop.f32.mrb[0].mxu0
    %1543 = vdwg.mxu0
    %v1544 = vadd.f32 %v1473, %v1541
    %v1545 = vxor.u32 %v1544, 2147483648
    %v1546 = vmul.f32 %v1545, 1.442695
    %v1547 = vpow.pop %v1546
    %v1548 = vadd.f32 %v1547, 1.0
    %v1549 = vrcp.pop %v1548
    %v1550 = vmul.f32 1.0, %v1549
    %1551 = vrot.lane.b32.xlu0 %v1550, 64
    %v1552 = vpop.permute.xlu0 %1551
    %v1554 = vlaneseq
    %v1555 = vshrl.u32 %v1554, 7
    %v1556 = vsub.s32 0, %v1555
    %v1557 = vrot.slane %v1472, %v1556
    %v1559 = vadd.f32 %v1541, %v1557
    %v1560 = vmul.f32 %v1552, %v1559
    %v1561 = vadd.f32 %v1473, %v1560
    %v1562 = vtanh.pop %v1561
    %1563 = vrot.lane.b32.xlu0 %v1550, 96
    %v1564 = vpop.permute.xlu0 %1563
    %1565 = vrot.lane.b32.xlu0 %v1562, 64
    %v1566 = vpop.permute.xlu0 %1565
    %v1567 = vsub.f32 0.0, %v1566
    %v1568 = vmul.f32 %v1564, %v1567
    %v1569 = vadd.f32 %v1566, %v1568
    %1570 = vst [vmem:[%s16] sm:$0xff] %v1569
    %v1571 = vld [vmem:[#allocation3 + $0x8] sm:$0xff]
    %1572 = vmatprep.subr.mxu0 0.0
    %1573 = vmatpush1.msra.mxu0 %v1456
    %1574 = vmatprep.subr.mxu0 0.0
    %1575 = vmatpush1.msra.mxu0 %v1457
    %1576 = vmatprep.subr.mxu0 0.0
    %1577 = vmatpush1.msra.mxu0 %v1458
    %1578 = vmatprep.subr.mxu0 0.0
    %1579 = vmatpush1.msra.mxu0 %v1459
    %1580 = vmatprep.subr.mxu0 0.0
    %1581 = vmatpush1.msra.mxu0 %v1460
    %1582 = vmatprep.subr.mxu0 0.0
    %1583 = vmatpush1.msra.mxu0 %v1461
    %1584 = vmatprep.subr.mxu0 0.0
    %1585 = vmatpush1.msra.mxu0 %v1462
    %1586 = vmatprep.subr.mxu0 0.0
    %1587 = vmatpush1.msra.mxu0 %v1463
    %1588 = vmatprep.subr.mxu0 0.0
    %1589 = vmatpush1.msra.mxu0 %v1464
    %1590 = vmatprep.subr.mxu0 0.0
    %1591 = vmatpush1.msra.mxu0 %v1465
    %1592 = vmatprep.subr.mxu0 0.0
    %1593 = vmatpush1.msra.mxu0 %v1466
    %1594 = vmatprep.subr.mxu0 0.0
    %1595 = vmatpush1.msra.mxu0 %v1467
    %1596 = vmatprep.subr.mxu0 0.0
    %1597 = vmatpush1.msra.mxu0 %v1468
    %1598 = vmatprep.subr.mxu0 0.0
    %1599 = vmatpush1.msra.mxu0 %v1469
    %1600 = vmatprep.subr.mxu0 0.0
    %1601 = vmatpush1.msra.mxu0 %v1470
    %1602 = vmatprep.subr.mxu0 0.0
    %1603 = vmatpush1.msra.mxu0 %v1471
    %1604 = vmatprep.subr.mxu0 0.0
    %1605 = vmatpush1.msra.mxu0 0.0
    %1606 = vmatprep.subr.mxu0 0.0
    %1607 = vmatpush1.msra.mxu0 0.0
    %1608 = vmatprep.subr.mxu0 0.0
    %1609 = vmatpush1.msra.mxu0 0.0
    %1610 = vmatprep.subr.mxu0 0.0
    %1611 = vmatpush1.msra.mxu0 0.0
    %1612 = vmatprep.subr.mxu0 0.0
    %1613 = vmatpush1.msra.mxu0 0.0
    %1614 = vmatprep.subr.mxu0 0.0
    %1615 = vmatpush1.msra.mxu0 0.0
    %1616 = vmatprep.subr.mxu0 0.0
    %1617 = vmatpush1.msra.mxu0 0.0
    %1618 = vmatprep.subr.mxu0 0.0
    %1619 = vmatpush1.msra.mxu0 0.0
    %1620 = vmatprep.subr.mxu0 0.0
    %1621 = vmatpush1.msra.mxu0 0.0
    %1622 = vmatprep.subr.mxu0 0.0
    %1623 = vmatpush1.msra.mxu0 0.0
    %1624 = vmatprep.subr.mxu0 0.0
    %1625 = vmatpush1.msra.mxu0 0.0
    %1626 = vmatprep.subr.mxu0 0.0
    %1627 = vmatpush1.msra.mxu0 0.0
    %1628 = vmatprep.subr.mxu0 0.0
    %1629 = vmatpush1.msra.mxu0 0.0
    %1630 = vmatprep.subr.mxu0 0.0
    %1631 = vmatpush1.msra.mxu0 0.0
    %1632 = vmatprep.subr.mxu0 0.0
    %1633 = vmatpush1.msra.mxu0 0.0
    %1634 = vmatprep.subr.mxu0 0.0
    %1635 = vmatpush1.msra.mxu0 0.0
    %1636 = vmatprep.mubr.f32.mxu0 0.0
    %1637 = vmatmul.mubr.f32.gmra.mrb[0].mxu0 %v1569
    %v1638 = vpop.f32.mrb[0].mxu0
    %v1639 = vadd.f32 0.0, %v1638
    %v1640 = vpop.f32.mrb[0].mxu0
    %1641 = vdwg.mxu0
    %v1642 = vadd.f32 %v1571, %v1639
    %v1643 = vxor.u32 %v1642, 2147483648
    %v1644 = vmul.f32 %v1643, 1.442695
    %v1645 = vpow.pop %v1644
    %v1646 = vadd.f32 %v1645, 1.0
    %v1647 = vrcp.pop %v1646
    %v1648 = vmul.f32 1.0, %v1647
    %1649 = vrot.lane.b32.xlu0 %v1648, 64
    %v1650 = vpop.permute.xlu0 %1649
    %v1651 = vadd.f32 %v1639, %v1557
    %v1652 = vmul.f32 %v1650, %v1651
    %v1653 = vadd.f32 %v1571, %v1652
    %v1654 = vtanh.pop %v1653
    %1655 = vrot.lane.b32.xlu0 %v1648, 96
    %v1656 = vpop.permute.xlu0 %1655
    %1657 = vrot.lane.b32.xlu0 %v1654, 64
    %v1658 = vpop.permute.xlu0 %1657
    %v1659 = vsub.f32 %v1569, %v1658
    %v1660 = vmul.f32 %v1656, %v1659
    %v1661 = vadd.f32 %v1658, %v1660
    %1662 = vst [vmem:[%s16 + $0x8] sm:$0xff] %v1661
    %v1663 = vld [vmem:[#allocation3 + $0x10] sm:$0xff]
    %1664 = vmatprep.subr.mxu0 0.0
    %1665 = vmatpush1.msra.mxu0 %v1456
    %1666 = vmatprep.subr.mxu0 0.0
    %1667 = vmatpush1.msra.mxu0 %v1457
    %1668 = vmatprep.subr.mxu0 0.0
    %1669 = vmatpush1.msra.mxu0 %v1458
    %1670 = vmatprep.subr.mxu0 0.0
    %1671 = vmatpush1.msra.mxu0 %v1459
    %1672 = vmatprep.subr.mxu0 0.0
    %1673 = vmatpush1.msra.mxu0 %v1460
    %1674 = vmatprep.subr.mxu0 0.0
    %1675 = vmatpush1.msra.mxu0 %v1461
    %1676 = vmatprep.subr.mxu0 0.0
    %1677 = vmatpush1.msra.mxu0 %v1462
    %1678 = vmatprep.subr.mxu0 0.0
    %1679 = vmatpush1.msra.mxu0 %v1463
    %1680 = vmatprep.subr.mxu0 0.0
    %1681 = vmatpush1.msra.mxu0 %v1464
    %1682 = vmatprep.subr.mxu0 0.0
    %1683 = vmatpush1.msra.mxu0 %v1465
    %1684 = vmatprep.subr.mxu0 0.0
    %1685 = vmatpush1.msra.mxu0 %v1466
    %1686 = vmatprep.subr.mxu0 0.0
    %1687 = vmatpush1.msra.mxu0 %v1467
    %1688 = vmatprep.subr.mxu0 0.0
    %1689 = vmatpush1.msra.mxu0 %v1468
    %1690 = vmatprep.subr.mxu0 0.0
    %1691 = vmatpush1.msra.mxu0 %v1469
    %1692 = vmatprep.subr.mxu0 0.0
    %1693 = vmatpush1.msra.mxu0 %v1470
    %1694 = vmatprep.subr.mxu0 0.0
    %1695 = vmatpush1.msra.mxu0 %v1471
    %1696 = vmatprep.subr.mxu0 0.0
    %1697 = vmatpush1.msra.mxu0 0.0
    %1698 = vmatprep.subr.mxu0 0.0
    %1699 = vmatpush1.msra.mxu0 0.0
    %1700 = vmatprep.subr.mxu0 0.0
    %1701 = vmatpush1.msra.mxu0 0.0
    %1702 = vmatprep.subr.mxu0 0.0
    %1703 = vmatpush1.msra.mxu0 0.0
    %1704 = vmatprep.subr.mxu0 0.0
    %1705 = vmatpush1.msra.mxu0 0.0
    %1706 = vmatprep.subr.mxu0 0.0
    %1707 = vmatpush1.msra.mxu0 0.0
    %1708 = vmatprep.subr.mxu0 0.0
    %1709 = vmatpush1.msra.mxu0 0.0
    %1710 = vmatprep.subr.mxu0 0.0
    %1711 = vmatpush1.msra.mxu0 0.0
    %1712 = vmatprep.subr.mxu0 0.0
    %1713 = vmatpush1.msra.mxu0 0.0
    %1714 = vmatprep.subr.mxu0 0.0
    %1715 = vmatpush1.msra.mxu0 0.0
    %1716 = vmatprep.subr.mxu0 0.0
    %1717 = vmatpush1.msra.mxu0 0.0
    %1718 = vmatprep.subr.mxu0 0.0
    %1719 = vmatpush1.msra.mxu0 0.0
    %1720 = vmatprep.subr.mxu0 0.0
    %1721 = vmatpush1.msra.mxu0 0.0
    %1722 = vmatprep.subr.mxu0 0.0
    %1723 = vmatpush1.msra.mxu0 0.0
    %1724 = vmatprep.subr.mxu0 0.0
    %1725 = vmatpush1.msra.mxu0 0.0
    %1726 = vmatprep.subr.mxu0 0.0
    %1727 = vmatpush1.msra.mxu0 0.0
    %1728 = vmatprep.mubr.f32.mxu0 0.0
    %1729 = vmatmul.mubr.f32.gmra.mrb[0].mxu0 %v1661
    %v1730 = vpop.f32.mrb[0].mxu0
    %v1731 = vadd.f32 0.0, %v1730
    %v1732 = vpop.f32.mrb[0].mxu0
    %1733 = vdwg.mxu0
    %v1734 = vadd.f32 %v1663, %v1731
    %v1735 = vxor.u32 %v1734, 2147483648
    %v1736 = vmul.f32 %v1735, 1.442695
    %v1737 = vpow.pop %v1736
    %v1738 = vadd.f32 %v1737, 1.0
    %v1739 = vrcp.pop %v1738
    %v1740 = vmul.f32 1.0, %v1739
    %1741 = vrot.lane.b32.xlu0 %v1740, 64
    %v1742 = vpop.permute.xlu0 %1741
    %v1743 = vadd.f32 %v1731, %v1557
    %v1744 = vmul.f32 %v1742, %v1743
    %v1745 = vadd.f32 %v1663, %v1744
    %v1746 = vtanh.pop %v1745
    %1747 = vrot.lane.b32.xlu0 %v1740, 96
    %v1748 = vpop.permute.xlu0 %1747
    %1749 = vrot.lane.b32.xlu0 %v1746, 64
    %v1750 = vpop.permute.xlu0 %1749
    %v1751 = vsub.f32 %v1661, %v1750
    %v1752 = vmul.f32 %v1748, %v1751
    %v1753 = vadd.f32 %v1750, %v1752
    %1754 = vst [vmem:[%s16 + $0x10] sm:$0xff] %v1753
    %v1755 = vld [vmem:[#allocation3 + $0x18] sm:$0xff]
    %1756 = vmatprep.subr.mxu0 0.0
    %1757 = vmatpush1.msra.mxu0 %v1456
    %1758 = vmatprep.subr.mxu0 0.0
    %1759 = vmatpush1.msra.mxu0 %v1457
    %1760 = vmatprep.subr.mxu0 0.0
    %1761 = vmatpush1.msra.mxu0 %v1458
    %1762 = vmatprep.subr.mxu0 0.0
    %1763 = vmatpush1.msra.mxu0 %v1459
    %1764 = vmatprep.subr.mxu0 0.0
    %1765 = vmatpush1.msra.mxu0 %v1460
    %1766 = vmatprep.subr.mxu0 0.0
    %1767 = vmatpush1.msra.mxu0 %v1461
    %1768 = vmatprep.subr.mxu0 0.0
    %1769 = vmatpush1.msra.mxu0 %v1462
    %1770 = vmatprep.subr.mxu0 0.0
    %1771 = vmatpush1.msra.mxu0 %v1463
    %1772 = vmatprep.subr.mxu0 0.0
    %1773 = vmatpush1.msra.mxu0 %v1464
    %1774 = vmatprep.subr.mxu0 0.0
    %1775 = vmatpush1.msra.mxu0 %v1465
    %1776 = vmatprep.subr.mxu0 0.0
    %1777 = vmatpush1.msra.mxu0 %v1466
    %1778 = vmatprep.subr.mxu0 0.0
    %1779 = vmatpush1.msra.mxu0 %v1467
    %1780 = vmatprep.subr.mxu0 0.0
    %1781 = vmatpush1.msra.mxu0 %v1468
    %1782 = vmatprep.subr.mxu0 0.0
    %1783 = vmatpush1.msra.mxu0 %v1469
    %1784 = vmatprep.subr.mxu0 0.0
    %1785 = vmatpush1.msra.mxu0 %v1470
    %1786 = vmatprep.subr.mxu0 0.0
    %1787 = vmatpush1.msra.mxu0 %v1471
    %1788 = vmatprep.subr.mxu0 0.0
    %1789 = vmatpush1.msra.mxu0 0.0
    %1790 = vmatprep.subr.mxu0 0.0
    %1791 = vmatpush1.msra.mxu0 0.0
    %1792 = vmatprep.subr.mxu0 0.0
    %1793 = vmatpush1.msra.mxu0 0.0
    %1794 = vmatprep.subr.mxu0 0.0
    %1795 = vmatpush1.msra.mxu0 0.0
    %1796 = vmatprep.subr.mxu0 0.0
    %1797 = vmatpush1.msra.mxu0 0.0
    %1798 = vmatprep.subr.mxu0 0.0
    %1799 = vmatpush1.msra.mxu0 0.0
    %1800 = vmatprep.subr.mxu0 0.0
    %1801 = vmatpush1.msra.mxu0 0.0
    %1802 = vmatprep.subr.mxu0 0.0
    %1803 = vmatpush1.msra.mxu0 0.0
    %1804 = vmatprep.subr.mxu0 0.0
    %1805 = vmatpush1.msra.mxu0 0.0
    %1806 = vmatprep.subr.mxu0 0.0
    %1807 = vmatpush1.msra.mxu0 0.0
    %1808 = vmatprep.subr.mxu0 0.0
    %1809 = vmatpush1.msra.mxu0 0.0
    %1810 = vmatprep.subr.mxu0 0.0
    %1811 = vmatpush1.msra.mxu0 0.0
    %1812 = vmatprep.subr.mxu0 0.0
    %1813 = vmatpush1.msra.mxu0 0.0
    %1814 = vmatprep.subr.mxu0 0.0
    %1815 = vmatpush1.msra.mxu0 0.0
    %1816 = vmatprep.subr.mxu0 0.0
    %1817 = vmatpush1.msra.mxu0 0.0
    %1818 = vmatprep.subr.mxu0 0.0
    %1819 = vmatpush1.msra.mxu0 0.0
    %1820 = vmatprep.mubr.f32.mxu0 0.0
    %1821 = vmatmul.mubr.f32.gmra.mrb[0].mxu0 %v1753
    %v1822 = vpop.f32.mrb[0].mxu0
    %v1823 = vadd.f32 0.0, %v1822
    %v1824 = vpop.f32.mrb[0].mxu0
    %1825 = vdwg.mxu0
    %v1826 = vadd.f32 %v1755, %v1823
    %v1827 = vxor.u32 %v1826, 2147483648
    %v1828 = vmul.f32 %v1827, 1.442695
    %v1829 = vpow.pop %v1828
    %v1830 = vadd.f32 %v1829, 1.0
    %v1831 = vrcp.pop %v1830
    %v1832 = vmul.f32 1.0, %v1831
    %1833 = vrot.lane.b32.xlu0 %v1832, 64
    %v1834 = vpop.permute.xlu0 %1833
    %v1835 = vadd.f32 %v1823, %v1557
    %v1836 = vmul.f32 %v1834, %v1835
    %v1837 = vadd.f32 %v1755, %v1836
    %v1838 = vtanh.pop %v1837
    %1839 = vrot.lane.b32.xlu0 %v1832, 96
    %v1840 = vpop.permute.xlu0 %1839
    %1841 = vrot.lane.b32.xlu0 %v1838, 64
    %v1842 = vpop.permute.xlu0 %1841
    %v1843 = vsub.f32 %v1753, %v1842
    %v1844 = vmul.f32 %v1840, %v1843
    %v1845 = vadd.f32 %v1842, %v1844
    %1846 = vst [vmem:[%s16 + $0x18] sm:$0xff] %v1845
    %v1847 = vld [vmem:[#allocation3 + $0x20] sm:$0xff]
    %1848 = vmatprep.subr.mxu0 0.0
    %1849 = vmatpush1.msra.mxu0 %v1456
    %1850 = vmatprep.subr.mxu0 0.0
    %1851 = vmatpush1.msra.mxu0 %v1457
    %1852 = vmatprep.subr.mxu0 0.0
    %1853 = vmatpush1.msra.mxu0 %v1458
    %1854 = vmatprep.subr.mxu0 0.0
    %1855 = vmatpush1.msra.mxu0 %v1459
    %1856 = vmatprep.subr.mxu0 0.0
    %1857 = vmatpush1.msra.mxu0 %v1460
    %1858 = vmatprep.subr.mxu0 0.0
    %1859 = vmatpush1.msra.mxu0 %v1461
    %1860 = vmatprep.subr.mxu0 0.0
    %1861 = vmatpush1.msra.mxu0 %v1462
    %1862 = vmatprep.subr.mxu0 0.0
    %1863 = vmatpush1.msra.mxu0 %v1463
    %1864 = vmatprep.subr.mxu0 0.0
    %1865 = vmatpush1.msra.mxu0 %v1464
    %1866 = vmatprep.subr.mxu0 0.0
    %1867 = vmatpush1.msra.mxu0 %v1465
    %1868 = vmatprep.subr.mxu0 0.0
    %1869 = vmatpush1.msra.mxu0 %v1466
    %1870 = vmatprep.subr.mxu0 0.0
    %1871 = vmatpush1.msra.mxu0 %v1467
    %1872 = vmatprep.subr.mxu0 0.0
    %1873 = vmatpush1.msra.mxu0 %v1468
    %1874 = vmatprep.subr.mxu0 0.0
    %1875 = vmatpush1.msra.mxu0 %v1469
    %1876 = vmatprep.subr.mxu0 0.0
    %1877 = vmatpush1.msra.mxu0 %v1470
    %1878 = vmatprep.subr.mxu0 0.0
    %1879 = vmatpush1.msra.mxu0 %v1471
    %1880 = vmatprep.subr.mxu0 0.0
    %1881 = vmatpush1.msra.mxu0 0.0
    %1882 = vmatprep.subr.mxu0 0.0
    %1883 = vmatpush1.msra.mxu0 0.0
    %1884 = vmatprep.subr.mxu0 0.0
    %1885 = vmatpush1.msra.mxu0 0.0
    %1886 = vmatprep.subr.mxu0 0.0
    %1887 = vmatpush1.msra.mxu0 0.0
    %1888 = vmatprep.subr.mxu0 0.0
    %1889 = vmatpush1.msra.mxu0 0.0
    %1890 = vmatprep.subr.mxu0 0.0
    %1891 = vmatpush1.msra.mxu0 0.0
    %1892 = vmatprep.subr.mxu0 0.0
    %1893 = vmatpush1.msra.mxu0 0.0
    %1894 = vmatprep.subr.mxu0 0.0
    %1895 = vmatpush1.msra.mxu0 0.0
    %1896 = vmatprep.subr.mxu0 0.0
    %1897 = vmatpush1.msra.mxu0 0.0
    %1898 = vmatprep.subr.mxu0 0.0
    %1899 = vmatpush1.msra.mxu0 0.0
    %1900 = vmatprep.subr.mxu0 0.0
    %1901 = vmatpush1.msra.mxu0 0.0
    %1902 = vmatprep.subr.mxu0 0.0
    %1903 = vmatpush1.msra.mxu0 0.0
    %1904 = vmatprep.subr.mxu0 0.0
    %1905 = vmatpush1.msra.mxu0 0.0
    %1906 = vmatprep.subr.mxu0 0.0
    %1907 = vmatpush1.msra.mxu0 0.0
    %1908 = vmatprep.subr.mxu0 0.0
    %1909 = vmatpush1.msra.mxu0 0.0
    %1910 = vmatprep.subr.mxu0 0.0
    %1911 = vmatpush1.msra.mxu0 0.0
    %1912 = vmatprep.mubr.f32.mxu0 0.0
    %1913 = vmatmul.mubr.f32.gmra.mrb[0].mxu0 %v1845
    %v1914 = vpop.f32.mrb[0].mxu0
    %v1915 = vadd.f32 0.0, %v1914
    %v1916 = vpop.f32.mrb[0].mxu0
    %1917 = vdwg.mxu0
    %v1918 = vadd.f32 %v1847, %v1915
    %v1919 = vxor.u32 %v1918, 2147483648
    %v1920 = vmul.f32 %v1919, 1.442695
    %v1921 = vpow.pop %v1920
    %v1922 = vadd.f32 %v1921, 1.0
    %v1923 = vrcp.pop %v1922
    %v1924 = vmul.f32 1.0, %v1923
    %1925 = vrot.lane.b32.xlu0 %v1924, 64
    %v1926 = vpop.permute.xlu0 %1925
    %v1927 = vadd.f32 %v1915, %v1557
    %v1928 = vmul.f32 %v1926, %v1927
    %v1929 = vadd.f32 %v1847, %v1928
    %v1930 = vtanh.pop %v1929
    %1931 = vrot.lane.b32.xlu0 %v1924, 96
    %v1932 = vpop.permute.xlu0 %1931
    %1933 = vrot.lane.b32.xlu0 %v1930, 64
    %v1934 = vpop.permute.xlu0 %1933
    %v1935 = vsub.f32 %v1845, %v1934
    %v1936 = vmul.f32 %v1932, %v1935
    %v1937 = vadd.f32 %v1934, %v1936
    %1938 = vst [vmem:[%s16 + $0x20] sm:$0xff] %v1937
    %v1939 = vld [vmem:[#allocation3 + $0x28] sm:$0xff]
    %1940 = vmatprep.subr.mxu0 0.0
    %1941 = vmatpush1.msra.mxu0 %v1456
    %1942 = vmatprep.subr.mxu0 0.0
    %1943 = vmatpush1.msra.mxu0 %v1457
    %1944 = vmatprep.subr.mxu0 0.0
    %1945 = vmatpush1.msra.mxu0 %v1458
    %1946 = vmatprep.subr.mxu0 0.0
    %1947 = vmatpush1.msra.mxu0 %v1459
    %1948 = vmatprep.subr.mxu0 0.0
    %1949 = vmatpush1.msra.mxu0 %v1460
    %1950 = vmatprep.subr.mxu0 0.0
    %1951 = vmatpush1.msra.mxu0 %v1461
    %1952 = vmatprep.subr.mxu0 0.0
    %1953 = vmatpush1.msra.mxu0 %v1462
    %1954 = vmatprep.subr.mxu0 0.0
    %1955 = vmatpush1.msra.mxu0 %v1463
    %1956 = vmatprep.subr.mxu0 0.0
    %1957 = vmatpush1.msra.mxu0 %v1464
    %1958 = vmatprep.subr.mxu0 0.0
    %1959 = vmatpush1.msra.mxu0 %v1465
    %1960 = vmatprep.subr.mxu0 0.0
    %1961 = vmatpush1.msra.mxu0 %v1466
    %1962 = vmatprep.subr.mxu0 0.0
    %1963 = vmatpush1.msra.mxu0 %v1467
    %1964 = vmatprep.subr.mxu0 0.0
    %1965 = vmatpush1.msra.mxu0 %v1468
    %1966 = vmatprep.subr.mxu0 0.0
    %1967 = vmatpush1.msra.mxu0 %v1469
    %1968 = vmatprep.subr.mxu0 0.0
    %1969 = vmatpush1.msra.mxu0 %v1470
    %1970 = vmatprep.subr.mxu0 0.0
    %1971 = vmatpush1.msra.mxu0 %v1471
    %1972 = vmatprep.subr.mxu0 0.0
    %1973 = vmatpush1.msra.mxu0 0.0
    %1974 = vmatprep.subr.mxu0 0.0
    %1975 = vmatpush1.msra.mxu0 0.0
    %1976 = vmatprep.subr.mxu0 0.0
    %1977 = vmatpush1.msra.mxu0 0.0
    %1978 = vmatprep.subr.mxu0 0.0
    %1979 = vmatpush1.msra.mxu0 0.0
    %1980 = vmatprep.subr.mxu0 0.0
    %1981 = vmatpush1.msra.mxu0 0.0
    %1982 = vmatprep.subr.mxu0 0.0
    %1983 = vmatpush1.msra.mxu0 0.0
    %1984 = vmatprep.subr.mxu0 0.0
    %1985 = vmatpush1.msra.mxu0 0.0
    %1986 = vmatprep.subr.mxu0 0.0
    %1987 = vmatpush1.msra.mxu0 0.0
    %1988 = vmatprep.subr.mxu0 0.0
    %1989 = vmatpush1.msra.mxu0 0.0
    %1990 = vmatprep.subr.mxu0 0.0
    %1991 = vmatpush1.msra.mxu0 0.0
    %1992 = vmatprep.subr.mxu0 0.0
    %1993 = vmatpush1.msra.mxu0 0.0
    %1994 = vmatprep.subr.mxu0 0.0
    %1995 = vmatpush1.msra.mxu0 0.0
    %1996 = vmatprep.subr.mxu0 0.0
    %1997 = vmatpush1.msra.mxu0 0.0
    %1998 = vmatprep.subr.mxu0 0.0
    %1999 = vmatpush1.msra.mxu0 0.0
    %2000 = vmatprep.subr.mxu0 0.0
    %2001 = vmatpush1.msra.mxu0 0.0
    %2002 = vmatprep.subr.mxu0 0.0
    %2003 = vmatpush1.msra.mxu0 0.0
    %2004 = vmatprep.mubr.f32.mxu0 0.0
    %2005 = vmatmul.mubr.f32.gmra.mrb[0].mxu0 %v1937
    %v2006 = vpop.f32.mrb[0].mxu0
    %v2007 = vadd.f32 0.0, %v2006
    %v2008 = vpop.f32.mrb[0].mxu0
    %2009 = vdwg.mxu0
    %v2010 = vadd.f32 %v1939, %v2007
    %v2011 = vxor.u32 %v2010, 2147483648
    %v2012 = vmul.f32 %v2011, 1.442695
    %v2013 = vpow.pop %v2012
    %v2014 = vadd.f32 %v2013, 1.0
    %v2015 = vrcp.pop %v2014
    %v2016 = vmul.f32 1.0, %v2015
    %2017 = vrot.lane.b32.xlu0 %v2016, 64
    %v2018 = vpop.permute.xlu0 %2017
    %v2019 = vadd.f32 %v2007, %v1557
    %v2020 = vmul.f32 %v2018, %v2019
    %v2021 = vadd.f32 %v1939, %v2020
    %v2022 = vtanh.pop %v2021
    %2023 = vrot.lane.b32.xlu0 %v2016, 96
    %v2024 = vpop.permute.xlu0 %2023
    %2025 = vrot.lane.b32.xlu0 %v2022, 64
    %v2026 = vpop.permute.xlu0 %2025
    %v2027 = vsub.f32 %v1937, %v2026
    %v2028 = vmul.f32 %v2024, %v2027
    %v2029 = vadd.f32 %v2026, %v2028
    %2030 = vst [vmem:[%s16 + $0x28] sm:$0xff] %v2029
    %v2031 = vld [vmem:[#allocation3 + $0x30] sm:$0xff]
    %2032 = vmatprep.subr.mxu0 0.0
    %2033 = vmatpush1.msra.mxu0 %v1456
    %2034 = vmatprep.subr.mxu0 0.0
    %2035 = vmatpush1.msra.mxu0 %v1457
    %2036 = vmatprep.subr.mxu0 0.0
    %2037 = vmatpush1.msra.mxu0 %v1458
    %2038 = vmatprep.subr.mxu0 0.0
    %2039 = vmatpush1.msra.mxu0 %v1459
    %2040 = vmatprep.subr.mxu0 0.0
    %2041 = vmatpush1.msra.mxu0 %v1460
    %2042 = vmatprep.subr.mxu0 0.0
    %2043 = vmatpush1.msra.mxu0 %v1461
    %2044 = vmatprep.subr.mxu0 0.0
    %2045 = vmatpush1.msra.mxu0 %v1462
    %2046 = vmatprep.subr.mxu0 0.0
    %2047 = vmatpush1.msra.mxu0 %v1463
    %2048 = vmatprep.subr.mxu0 0.0
    %2049 = vmatpush1.msra.mxu0 %v1464
    %2050 = vmatprep.subr.mxu0 0.0
    %2051 = vmatpush1.msra.mxu0 %v1465
    %2052 = vmatprep.subr.mxu0 0.0
    %2053 = vmatpush1.msra.mxu0 %v1466
    %2054 = vmatprep.subr.mxu0 0.0
    %2055 = vmatpush1.msra.mxu0 %v1467
    %2056 = vmatprep.subr.mxu0 0.0
    %2057 = vmatpush1.msra.mxu0 %v1468
    %2058 = vmatprep.subr.mxu0 0.0
    %2059 = vmatpush1.msra.mxu0 %v1469
    %2060 = vmatprep.subr.mxu0 0.0
    %2061 = vmatpush1.msra.mxu0 %v1470
    %2062 = vmatprep.subr.mxu0 0.0
    %2063 = vmatpush1.msra.mxu0 %v1471
    %2064 = vmatprep.subr.mxu0 0.0
    %2065 = vmatpush1.msra.mxu0 0.0
    %2066 = vmatprep.subr.mxu0 0.0
    %2067 = vmatpush1.msra.mxu0 0.0
    %2068 = vmatprep.subr.mxu0 0.0
    %2069 = vmatpush1.msra.mxu0 0.0
    %2070 = vmatprep.subr.mxu0 0.0
    %2071 = vmatpush1.msra.mxu0 0.0
    %2072 = vmatprep.subr.mxu0 0.0
    %2073 = vmatpush1.msra.mxu0 0.0
    %2074 = vmatprep.subr.mxu0 0.0
    %2075 = vmatpush1.msra.mxu0 0.0
    %2076 = vmatprep.subr.mxu0 0.0
    %2077 = vmatpush1.msra.mxu0 0.0
    %2078 = vmatprep.subr.mxu0 0.0
    %2079 = vmatpush1.msra.mxu0 0.0
    %2080 = vmatprep.subr.mxu0 0.0
    %2081 = vmatpush1.msra.mxu0 0.0
    %2082 = vmatprep.subr.mxu0 0.0
    %2083 = vmatpush1.msra.mxu0 0.0
    %2084 = vmatprep.subr.mxu0 0.0
    %2085 = vmatpush1.msra.mxu0 0.0
    %2086 = vmatprep.subr.mxu0 0.0
    %2087 = vmatpush1.msra.mxu0 0.0
    %2088 = vmatprep.subr.mxu0 0.0
    %2089 = vmatpush1.msra.mxu0 0.0
    %2090 = vmatprep.subr.mxu0 0.0
    %2091 = vmatpush1.msra.mxu0 0.0
    %2092 = vmatprep.subr.mxu0 0.0
    %2093 = vmatpush1.msra.mxu0 0.0
    %2094 = vmatprep.subr.mxu0 0.0
    %2095 = vmatpush1.msra.mxu0 0.0
    %2096 = vmatprep.mubr.f32.mxu0 0.0
    %2097 = vmatmul.mubr.f32.gmra.mrb[0].mxu0 %v2029
    %v2098 = vpop.f32.mrb[0].mxu0
    %v2099 = vadd.f32 0.0, %v2098
    %v2100 = vpop.f32.mrb[0].mxu0
    %2101 = vdwg.mxu0
    %v2102 = vadd.f32 %v2031, %v2099
    %v2103 = vxor.u32 %v2102, 2147483648
    %v2104 = vmul.f32 %v2103, 1.442695
    %v2105 = vpow.pop %v2104
    %v2106 = vadd.f32 %v2105, 1.0
    %v2107 = vrcp.pop %v2106
    %v2108 = vmul.f32 1.0, %v2107
    %2109 = vrot.lane.b32.xlu0 %v2108, 64
    %v2110 = vpop.permute.xlu0 %2109
    %v2111 = vadd.f32 %v2099, %v1557
    %v2112 = vmul.f32 %v2110, %v2111
    %v2113 = vadd.f32 %v2031, %v2112
    %v2114 = vtanh.pop %v2113
    %2115 = vrot.lane.b32.xlu0 %v2108, 96
    %v2116 = vpop.permute.xlu0 %2115
    %2117 = vrot.lane.b32.xlu0 %v2114, 64
    %v2118 = vpop.permute.xlu0 %2117
    %v2119 = vsub.f32 %v2029, %v2118
    %v2120 = vmul.f32 %v2116, %v2119
    %v2121 = vadd.f32 %v2118, %v2120
    %2122 = vst [vmem:[%s16 + $0x30] sm:$0xff] %v2121
    %v2123 = vld [vmem:[#allocation3 + $0x38] sm:$0xff]
    %2124 = vmatprep.subr.mxu0 0.0
    %2125 = vmatpush1.msra.mxu0 %v1456
    %2126 = vmatprep.subr.mxu0 0.0
    %2127 = vmatpush1.msra.mxu0 %v1457
    %2128 = vmatprep.subr.mxu0 0.0
    %2129 = vmatpush1.msra.mxu0 %v1458
    %2130 = vmatprep.subr.mxu0 0.0
    %2131 = vmatpush1.msra.mxu0 %v1459
    %2132 = vmatprep.subr.mxu0 0.0
    %2133 = vmatpush1.msra.mxu0 %v1460
    %2134 = vmatprep.subr.mxu0 0.0
    %2135 = vmatpush1.msra.mxu0 %v1461
    %2136 = vmatprep.subr.mxu0 0.0
    %2137 = vmatpush1.msra.mxu0 %v1462
    %2138 = vmatprep.subr.mxu0 0.0
    %2139 = vmatpush1.msra.mxu0 %v1463
    %2140 = vmatprep.subr.mxu0 0.0
    %2141 = vmatpush1.msra.mxu0 %v1464
    %2142 = vmatprep.subr.mxu0 0.0
    %2143 = vmatpush1.msra.mxu0 %v1465
    %2144 = vmatprep.subr.mxu0 0.0
    %2145 = vmatpush1.msra.mxu0 %v1466
    %2146 = vmatprep.subr.mxu0 0.0
    %2147 = vmatpush1.msra.mxu0 %v1467
    %2148 = vmatprep.subr.mxu0 0.0
    %2149 = vmatpush1.msra.mxu0 %v1468
    %2150 = vmatprep.subr.mxu0 0.0
    %2151 = vmatpush1.msra.mxu0 %v1469
    %2152 = vmatprep.subr.mxu0 0.0
    %2153 = vmatpush1.msra.mxu0 %v1470
    %2154 = vmatprep.subr.mxu0 0.0
    %2155 = vmatpush1.msra.mxu0 %v1471
    %2156 = vmatprep.subr.mxu0 0.0
    %2157 = vmatpush1.msra.mxu0 0.0
    %2158 = vmatprep.subr.mxu0 0.0
    %2159 = vmatpush1.msra.mxu0 0.0
    %2160 = vmatprep.subr.mxu0 0.0
    %2161 = vmatpush1.msra.mxu0 0.0
    %2162 = vmatprep.subr.mxu0 0.0
    %2163 = vmatpush1.msra.mxu0 0.0
    %2164 = vmatprep.subr.mxu0 0.0
    %2165 = vmatpush1.msra.mxu0 0.0
    %2166 = vmatprep.subr.mxu0 0.0
    %2167 = vmatpush1.msra.mxu0 0.0
    %2168 = vmatprep.subr.mxu0 0.0
    %2169 = vmatpush1.msra.mxu0 0.0
    %2170 = vmatprep.subr.mxu0 0.0
    %2171 = vmatpush1.msra.mxu0 0.0
    %2172 = vmatprep.subr.mxu0 0.0
    %2173 = vmatpush1.msra.mxu0 0.0
    %2174 = vmatprep.subr.mxu0 0.0
    %2175 = vmatpush1.msra.mxu0 0.0
    %2176 = vmatprep.subr.mxu0 0.0
    %2177 = vmatpush1.msra.mxu0 0.0
    %2178 = vmatprep.subr.mxu0 0.0
    %2179 = vmatpush1.msra.mxu0 0.0
    %2180 = vmatprep.subr.mxu0 0.0
    %2181 = vmatpush1.msra.mxu0 0.0
    %2182 = vmatprep.subr.mxu0 0.0
    %2183 = vmatpush1.msra.mxu0 0.0
    %2184 = vmatprep.subr.mxu0 0.0
    %2185 = vmatpush1.msra.mxu0 0.0
    %2186 = vmatprep.subr.mxu0 0.0
    %2187 = vmatpush1.msra.mxu0 0.0
    %2188 = vmatprep.mubr.f32.mxu0 0.0
    %2189 = vmatmul.mubr.f32.gmra.mrb[0].mxu0 %v2121
    %v2190 = vpop.f32.mrb[0].mxu0
    %v2191 = vadd.f32 0.0, %v2190
    %v2192 = vpop.f32.mrb[0].mxu0
    %2193 = vdwg.mxu0
    %v2194 = vadd.f32 %v2123, %v2191
    %v2195 = vxor.u32 %v2194, 2147483648
    %v2196 = vmul.f32 %v2195, 1.442695
    %v2197 = vpow.pop %v2196
    %v2198 = vadd.f32 %v2197, 1.0
    %v2199 = vrcp.pop %v2198
    %v2200 = vmul.f32 1.0, %v2199
    %2201 = vrot.lane.b32.xlu0 %v2200, 64
    %v2202 = vpop.permute.xlu0 %2201
    %v2203 = vadd.f32 %v2191, %v1557
    %v2204 = vmul.f32 %v2202, %v2203
    %v2205 = vadd.f32 %v2123, %v2204
    %v2206 = vtanh.pop %v2205
    %2207 = vrot.lane.b32.xlu0 %v2200, 96
    %v2208 = vpop.permute.xlu0 %2207
    %2209 = vrot.lane.b32.xlu0 %v2206, 64
    %v2210 = vpop.permute.xlu0 %2209
    %v2211 = vsub.f32 %v2121, %v2210
    %v2212 = vmul.f32 %v2208, %v2211
    %v2213 = vadd.f32 %v2210, %v2212
    %2214 = vst [vmem:[%s16 + $0x38] sm:$0xff] %v2213
    %v2215 = vld [vmem:[%s13] sm:$0x1]
    %v2216 = vld [vmem:[%s2] sm:$0xff]
    %v2218 = vlaneseq
    %v2219 = vshrl.u32 %v2218, 7
    %v2220 = vsub.s32 0, %v2219
    %v2221 = vrot.slane %v2215, %v2220
    %v2223 = vadd.f32 %v2221, %v2216
    %v2224 = vld [vmem:[#allocation14] sm:$0xff]
    %v2225 = vld [vmem:[#allocation14 + $0x8] sm:$0xff]
    %v2226 = vld [vmem:[#allocation14 + $0x10] sm:$0xff]
    %v2227 = vld [vmem:[#allocation14 + $0x18] sm:$0xff]
    %v2228 = vld [vmem:[#allocation14 + $0x20] sm:$0xff]
    %v2229 = vld [vmem:[#allocation14 + $0x28] sm:$0xff]
    %v2230 = vld [vmem:[#allocation14 + $0x30] sm:$0xff]
    %v2231 = vld [vmem:[#allocation14 + $0x38] sm:$0xff]
    %v2232 = vld [vmem:[#allocation14 + $0x40] sm:$0xff]
    %v2233 = vld [vmem:[#allocation14 + $0x48] sm:$0xff]
    %v2234 = vld [vmem:[#allocation14 + $0x50] sm:$0xff]
    %v2235 = vld [vmem:[#allocation14 + $0x58] sm:$0xff]
    %v2236 = vld [vmem:[#allocation14 + $0x60] sm:$0xff]
    %v2237 = vld [vmem:[#allocation14 + $0x68] sm:$0xff]
    %v2238 = vld [vmem:[#allocation14 + $0x70] sm:$0xff]
    %v2239 = vld [vmem:[#allocation14 + $0x78] sm:$0xff]
    %2240 = vmatprep.subr.mxu0 0.0
    %2241 = vmatpush1.msra.mxu0 %v2224
    %2242 = vmatprep.subr.mxu0 0.0
    %2243 = vmatpush1.msra.mxu0 %v2225
    %2244 = vmatprep.subr.mxu0 0.0
    %2245 = vmatpush1.msra.mxu0 %v2226
    %2246 = vmatprep.subr.mxu0 0.0
    %2247 = vmatpush1.msra.mxu0 %v2227
    %2248 = vmatprep.subr.mxu0 0.0
    %2249 = vmatpush1.msra.mxu0 %v2228
    %2250 = vmatprep.subr.mxu0 0.0
    %2251 = vmatpush1.msra.mxu0 %v2229
    %2252 = vmatprep.subr.mxu0 0.0
    %2253 = vmatpush1.msra.mxu0 %v2230
    %2254 = vmatprep.subr.mxu0 0.0
    %2255 = vmatpush1.msra.mxu0 %v2231
    %2256 = vmatprep.subr.mxu0 0.0
    %2257 = vmatpush1.msra.mxu0 %v2232
    %2258 = vmatprep.subr.mxu0 0.0
    %2259 = vmatpush1.msra.mxu0 %v2233
    %2260 = vmatprep.subr.mxu0 0.0
    %2261 = vmatpush1.msra.mxu0 %v2234
    %2262 = vmatprep.subr.mxu0 0.0
    %2263 = vmatpush1.msra.mxu0 %v2235
    %2264 = vmatprep.subr.mxu0 0.0
    %2265 = vmatpush1.msra.mxu0 %v2236
    %2266 = vmatprep.subr.mxu0 0.0
    %2267 = vmatpush1.msra.mxu0 %v2237
    %2268 = vmatprep.subr.mxu0 0.0
    %2269 = vmatpush1.msra.mxu0 %v2238
    %2270 = vmatprep.subr.mxu0 0.0
    %2271 = vmatpush1.msra.mxu0 %v2239
    %2272 = vmatprep.subr.mxu0 0.0
    %2273 = vmatpush1.msra.mxu0 0.0
    %2274 = vmatprep.subr.mxu0 0.0
    %2275 = vmatpush1.msra.mxu0 0.0
    %2276 = vmatprep.subr.mxu0 0.0
    %2277 = vmatpush1.msra.mxu0 0.0
    %2278 = vmatprep.subr.mxu0 0.0
    %2279 = vmatpush1.msra.mxu0 0.0
    %2280 = vmatprep.subr.mxu0 0.0
    %2281 = vmatpush1.msra.mxu0 0.0
    %2282 = vmatprep.subr.mxu0 0.0
    %2283 = vmatpush1.msra.mxu0 0.0
    %2284 = vmatprep.subr.mxu0 0.0
    %2285 = vmatpush1.msra.mxu0 0.0
    %2286 = vmatprep.subr.mxu0 0.0
    %2287 = vmatpush1.msra.mxu0 0.0
    %2288 = vmatprep.subr.mxu0 0.0
    %2289 = vmatpush1.msra.mxu0 0.0
    %2290 = vmatprep.subr.mxu0 0.0
    %2291 = vmatpush1.msra.mxu0 0.0
    %2292 = vmatprep.subr.mxu0 0.0
    %2293 = vmatpush1.msra.mxu0 0.0
    %2294 = vmatprep.subr.mxu0 0.0
    %2295 = vmatpush1.msra.mxu0 0.0
    %2296 = vmatprep.subr.mxu0 0.0
    %2297 = vmatpush1.msra.mxu0 0.0
    %2298 = vmatprep.subr.mxu0 0.0
    %2299 = vmatpush1.msra.mxu0 0.0
    %2300 = vmatprep.subr.mxu0 0.0
    %2301 = vmatpush1.msra.mxu0 0.0
    %2302 = vmatprep.subr.mxu0 0.0
    %2303 = vmatpush1.msra.mxu0 0.0
    %2304 = vmatprep.mubr.f32.mxu0 0.0
    %2305 = vmatmul.mubr.f32.gmra.mrb[0].mxu0 %v1310
    %v2306 = vpop.f32.mrb[0].mxu0
    %v2307 = vadd.f32 0.0, %v2306
    %v2308 = vpop.f32.mrb[0].mxu0
    %2309 = vdwg.mxu0
    %v2310 = vadd.f32 %v2223, %v2307
    %v2311 = vld [vmem:[#allocation16] sm:$0xff]
    %v2312 = vld [vmem:[#allocation16 + $0x8] sm:$0xff]
    %v2313 = vld [vmem:[#allocation16 + $0x10] sm:$0xff]
    %v2314 = vld [vmem:[#allocation16 + $0x18] sm:$0xff]
    %v2315 = vld [vmem:[#allocation16 + $0x20] sm:$0xff]
    %v2316 = vld [vmem:[#allocation16 + $0x28] sm:$0xff]
    %v2317 = vld [vmem:[#allocation16 + $0x30] sm:$0xff]
    %v2318 = vld [vmem:[#allocation16 + $0x38] sm:$0xff]
    %v2319 = vld [vmem:[#allocation16 + $0x40] sm:$0xff]
    %v2320 = vld [vmem:[#allocation16 + $0x48] sm:$0xff]
    %v2321 = vld [vmem:[#allocation16 + $0x50] sm:$0xff]
    %v2322 = vld [vmem:[#allocation16 + $0x58] sm:$0xff]
    %v2323 = vld [vmem:[#allocation16 + $0x60] sm:$0xff]
    %v2324 = vld [vmem:[#allocation16 + $0x68] sm:$0xff]
    %v2325 = vld [vmem:[#allocation16 + $0x70] sm:$0xff]
    %v2326 = vld [vmem:[#allocation16 + $0x78] sm:$0xff]
    %2327 = vmatprep.subr.mxu0 0.0
    %2328 = vmatpush1.msra.mxu0 %v2311
    %2329 = vmatprep.subr.mxu0 0.0
    %2330 = vmatpush1.msra.mxu0 %v2312
    %2331 = vmatprep.subr.mxu0 0.0
    %2332 = vmatpush1.msra.mxu0 %v2313
    %2333 = vmatprep.subr.mxu0 0.0
    %2334 = vmatpush1.msra.mxu0 %v2314
    %2335 = vmatprep.subr.mxu0 0.0
    %2336 = vmatpush1.msra.mxu0 %v2315
    %2337 = vmatprep.subr.mxu0 0.0
    %2338 = vmatpush1.msra.mxu0 %v2316
    %2339 = vmatprep.subr.mxu0 0.0
    %2340 = vmatpush1.msra.mxu0 %v2317
    %2341 = vmatprep.subr.mxu0 0.0
    %2342 = vmatpush1.msra.mxu0 %v2318
    %2343 = vmatprep.subr.mxu0 0.0
    %2344 = vmatpush1.msra.mxu0 %v2319
    %2345 = vmatprep.subr.mxu0 0.0
    %2346 = vmatpush1.msra.mxu0 %v2320
    %2347 = vmatprep.subr.mxu0 0.0
    %2348 = vmatpush1.msra.mxu0 %v2321
    %2349 = vmatprep.subr.mxu0 0.0
    %2350 = vmatpush1.msra.mxu0 %v2322
    %2351 = vmatprep.subr.mxu0 0.0
    %2352 = vmatpush1.msra.mxu0 %v2323
    %2353 = vmatprep.subr.mxu0 0.0
    %2354 = vmatpush1.msra.mxu0 %v2324
    %2355 = vmatprep.subr.mxu0 0.0
    %2356 = vmatpush1.msra.mxu0 %v2325
    %2357 = vmatprep.subr.mxu0 0.0
    %2358 = vmatpush1.msra.mxu0 %v2326
    %2359 = vmatprep.subr.mxu0 0.0
    %2360 = vmatpush1.msra.mxu0 0.0
    %2361 = vmatprep.subr.mxu0 0.0
    %2362 = vmatpush1.msra.mxu0 0.0
    %2363 = vmatprep.subr.mxu0 0.0
    %2364 = vmatpush1.msra.mxu0 0.0
    %2365 = vmatprep.subr.mxu0 0.0
    %2366 = vmatpush1.msra.mxu0 0.0
    %2367 = vmatprep.subr.mxu0 0.0
    %2368 = vmatpush1.msra.mxu0 0.0
    %2369 = vmatprep.subr.mxu0 0.0
    %2370 = vmatpush1.msra.mxu0 0.0
    %2371 = vmatprep.subr.mxu0 0.0
    %2372 = vmatpush1.msra.mxu0 0.0
    %2373 = vmatprep.subr.mxu0 0.0
    %2374 = vmatpush1.msra.mxu0 0.0
    %2375 = vmatprep.subr.mxu0 0.0
    %2376 = vmatpush1.msra.mxu0 0.0
    %2377 = vmatprep.subr.mxu0 0.0
    %2378 = vmatpush1.msra.mxu0 0.0
    %2379 = vmatprep.subr.mxu0 0.0
    %2380 = vmatpush1.msra.mxu0 0.0
    %2381 = vmatprep.subr.mxu0 0.0
    %2382 = vmatpush1.msra.mxu0 0.0
    %2383 = vmatprep.subr.mxu0 0.0
    %2384 = vmatpush1.msra.mxu0 0.0
    %2385 = vmatprep.subr.mxu0 0.0
    %2386 = vmatpush1.msra.mxu0 0.0
    %2387 = vmatprep.subr.mxu0 0.0
    %2388 = vmatpush1.msra.mxu0 0.0
    %2389 = vmatprep.subr.mxu0 0.0
    %2390 = vmatpush1.msra.mxu0 0.0
    %2391 = vmatprep.mubr.f32.mxu0 0.0
    %2392 = vmatmul.mubr.f32.gmra.mrb[0].mxu0 %v2213
    %v2393 = vpop.f32.mrb[0].mxu0
    %v2394 = vadd.f32 0.0, %v2393
    %v2395 = vpop.f32.mrb[0].mxu0
    %2396 = vdwg.mxu0
    %v2397 = vadd.f32 %v2310, %v2394
    %v2398 = vtanh.pop %v2397
    %2399 = vst [vmem:[%s17] sm:$0xff] %v2398
    %v2400 = vld [vmem:[#allocation17] sm:$0xff]
    %v2401 = vld [vmem:[#allocation17 + $0x8] sm:$0xff]
    %v2402 = vld [vmem:[#allocation17 + $0x10] sm:$0xff]
    %v2403 = vld [vmem:[#allocation17 + $0x18] sm:$0xff]
    %v2404 = vld [vmem:[#allocation17 + $0x20] sm:$0xff]
    %v2405 = vld [vmem:[#allocation17 + $0x28] sm:$0xff]
    %v2406 = vld [vmem:[#allocation17 + $0x30] sm:$0xff]
    %v2407 = vld [vmem:[#allocation17 + $0x38] sm:$0xff]
    %v2408 = vld [vmem:[#allocation17 + $0x40] sm:$0xff]
    %v2409 = vld [vmem:[#allocation17 + $0x48] sm:$0xff]
    %v2410 = vld [vmem:[#allocation17 + $0x50] sm:$0xff]
    %v2411 = vld [vmem:[#allocation17 + $0x58] sm:$0xff]
    %v2412 = vld [vmem:[#allocation17 + $0x60] sm:$0xff]
    %v2413 = vld [vmem:[#allocation17 + $0x68] sm:$0xff]
    %v2414 = vld [vmem:[#allocation17 + $0x70] sm:$0xff]
    %v2415 = vld [vmem:[#allocation17 + $0x78] sm:$0xff]
    %v2416 = vld [vmem:[%s15] sm:$0x1]
    %v2418 = vlaneseq
    %v2419 = vshrl.u32 %v2418, 7
    %v2420 = vsub.s32 0, %v2419
    %v2421 = vrot.slane %v2416, %v2420
    %2423 = vmatprep.subr.mxu0 0.0
    %2424 = vmatpush1.msra.mxu0 %v2400
    %2425 = vmatprep.subr.mxu0 0.0
    %2426 = vmatpush1.msra.mxu0 %v2401
    %2427 = vmatprep.subr.mxu0 0.0
    %2428 = vmatpush1.msra.mxu0 %v2402
    %2429 = vmatprep.subr.mxu0 0.0
    %2430 = vmatpush1.msra.mxu0 %v2403
    %2431 = vmatprep.subr.mxu0 0.0
    %2432 = vmatpush1.msra.mxu0 %v2404
    %2433 = vmatprep.subr.mxu0 0.0
    %2434 = vmatpush1.msra.mxu0 %v2405
    %2435 = vmatprep.subr.mxu0 0.0
    %2436 = vmatpush1.msra.mxu0 %v2406
    %2437 = vmatprep.subr.mxu0 0.0
    %2438 = vmatpush1.msra.mxu0 %v2407
    %2439 = vmatprep.subr.mxu0 0.0
    %2440 = vmatpush1.msra.mxu0 %v2408
    %2441 = vmatprep.subr.mxu0 0.0
    %2442 = vmatpush1.msra.mxu0 %v2409
    %2443 = vmatprep.subr.mxu0 0.0
    %2444 = vmatpush1.msra.mxu0 %v2410
    %2445 = vmatprep.subr.mxu0 0.0
    %2446 = vmatpush1.msra.mxu0 %v2411
    %2447 = vmatprep.subr.mxu0 0.0
    %2448 = vmatpush1.msra.mxu0 %v2412
    %2449 = vmatprep.subr.mxu0 0.0
    %2450 = vmatpush1.msra.mxu0 %v2413
    %2451 = vmatprep.subr.mxu0 0.0
    %2452 = vmatpush1.msra.mxu0 %v2414
    %2453 = vmatprep.subr.mxu0 0.0
    %2454 = vmatpush1.msra.mxu0 %v2415
    %2455 = vmatprep.subr.mxu0 0.0
    %2456 = vmatpush1.msra.mxu0 0.0
    %2457 = vmatprep.subr.mxu0 0.0
    %2458 = vmatpush1.msra.mxu0 0.0
    %2459 = vmatprep.subr.mxu0 0.0
    %2460 = vmatpush1.msra.mxu0 0.0
    %2461 = vmatprep.subr.mxu0 0.0
    %2462 = vmatpush1.msra.mxu0 0.0
    %2463 = vmatprep.subr.mxu0 0.0
    %2464 = vmatpush1.msra.mxu0 0.0
    %2465 = vmatprep.subr.mxu0 0.0
    %2466 = vmatpush1.msra.mxu0 0.0
    %2467 = vmatprep.subr.mxu0 0.0
    %2468 = vmatpush1.msra.mxu0 0.0
    %2469 = vmatprep.subr.mxu0 0.0
    %2470 = vmatpush1.msra.mxu0 0.0
    %2471 = vmatprep.subr.mxu0 0.0
    %2472 = vmatpush1.msra.mxu0 0.0
    %2473 = vmatprep.subr.mxu0 0.0
    %2474 = vmatpush1.msra.mxu0 0.0
    %2475 = vmatprep.subr.mxu0 0.0
    %2476 = vmatpush1.msra.mxu0 0.0
    %2477 = vmatprep.subr.mxu0 0.0
    %2478 = vmatpush1.msra.mxu0 0.0
    %2479 = vmatprep.subr.mxu0 0.0
    %2480 = vmatpush1.msra.mxu0 0.0
    %2481 = vmatprep.subr.mxu0 0.0
    %2482 = vmatpush1.msra.mxu0 0.0
    %2483 = vmatprep.subr.mxu0 0.0
    %2484 = vmatpush1.msra.mxu0 0.0
    %2485 = vmatprep.subr.mxu0 0.0
    %2486 = vmatpush1.msra.mxu0 0.0
    %2487 = vmatprep.mubr.f32.mxu0 0.0
    %2488 = vmatmul.mubr.f32.gmra.mrb[0].mxu0 %v2398
    %v2489 = vpop.f32.mrb[0].mxu0
    %v2490 = vadd.f32 %v2421, %v2489
    %v2491 = vpop.f32.mrb[0].mxu0
    %2492 = vdwg.mxu0
    %2493 = vst [vmem:[%s18] sm:$0xff] %v2490
    // Predicated region
    $region102: #{encoder_forward.1} parent=1 // pred_check
      _
    $region103: #{encoder_forward.1} parent=1 // pred_check_branch
      %2495 = sbr.rel (0) target = $region105
    $region104: #{encoder_forward.1} parent=1 // pred_region
      _
    $region105: #{encoder_forward.1} parent=1 // pred_fallthru
      _
    // Predicated region
    $region106: #{encoder_forward.1} parent=1 // pred_check
      _
    $region107: #{encoder_forward.1} parent=1 // pred_check_branch
      %2497 = sbr.rel (0) target = $region109
    $region108: #{encoder_forward.1} parent=1 // pred_region
      _
    $region109: #{encoder_forward.1} parent=1 // pred_fallthru
      _
    // Predicated region
    $region110: #{encoder_forward.1} parent=1 // pred_check
      _
    $region111: #{encoder_forward.1} parent=1 // pred_check_branch
      %2499 = sbr.rel (0) target = $region113
    $region112: #{encoder_forward.1} parent=1 // pred_region
      _
    $region113: #{encoder_forward.1} parent=1 // pred_fallthru
      _
    // Predicated region
    $region114: #{encoder_forward.1} parent=1 // pred_check
      _
    $region115: #{encoder_forward.1} parent=1 // pred_check_branch
      %2501 = sbr.rel (0) target = $region117
    $region116: #{encoder_forward.1} parent=1 // pred_region
      _
    $region117: #{encoder_forward.1} parent=1 // pred_fallthru
      _
    // Predicated region
    $region118: #{encoder_forward.1} parent=1 // pred_check
      _
    $region119: #{encoder_forward.1} parent=1 // pred_check_branch
      %2503 = sbr.rel (0) target = $region121
    $region120: #{encoder_forward.1} parent=1 // pred_region
      _
    $region121: #{encoder_forward.1} parent=1 // pred_fallthru
      _
    // Predicated region
    $region122: #{encoder_forward.1} parent=1 // pred_check
      _
    $region123: #{encoder_forward.1} parent=1 // pred_check_branch
      %2505 = sbr.rel (0) target = $region125
    $region124: #{encoder_forward.1} parent=1 // pred_region
      _
    $region125: #{encoder_forward.1} parent=1 // pred_fallthru
      _
    %2506 = vsyncpa [#allocation5], 1
    %2507 = vsyncpa [#allocation9], 1
    %2508 = vsyncpa [#allocation12], 1
    %2509 = vsyncpa [#allocation15], 1
    %2510 = vsyncpa [#allocation18], 1
    %2511 = vsyncpa [#allocation6], 1

</llo_original>
